<compile_context>
chip_gen: v7x
topology: tpu7x:2x2x1
jax: 0.10.0
libtpu: 0.0.40
codegen_flags: <defaults>
</compile_context>

<pallas_src>
import functools

import jax
import jax.numpy as jnp
from jax.experimental import pallas as pl
from jax.experimental.pallas import tpu as pltpu

BN_EPS = 1e-5


def _round_up(v, m):
    return (v + m - 1) // m * m


def mlp_residual_kernel(alpha, b_actual,
                        x_ref, w0_ref, b0_ref, gamma_ref, beta_ref,
                        w1_ref, c1_ref, w2_ref, c2_ref, wfc_ref, bfc_ref,
                        logits_ref, emb_ref, h_ref):
    d = pl.program_id(0)

    # ---- prologue (grid step 0): first Linear + BatchNorm1d (training stats) ----
    @pl.when(d == 0)
    def _():
        x = x_ref[...].astype(jnp.bfloat16)
        h = (jnp.dot(x, w0_ref[...], preferred_element_type=jnp.float32)
             + b0_ref[...])
        # BatchNorm statistics over the *valid* batch rows only (batch is
        # zero-padded up to the (8,128) sublane tile).
        b_pad = h.shape[0]
        row_mask = (jax.lax.broadcasted_iota(jnp.int32, (b_pad, 1), 0)
                    < b_actual).astype(jnp.float32)
        inv_b = 1.0 / b_actual
        mean = jnp.sum(h * row_mask, axis=0, keepdims=True) * inv_b
        centered = h - mean
        var = jnp.sum(centered * centered * row_mask, axis=0,
                      keepdims=True) * inv_b
        h_ref[...] = (gamma_ref[...] * centered * jax.lax.rsqrt(var + BN_EPS)
                      + beta_ref[...])

    # ---- one residual FC block per grid step (weights streamed via BlockSpec) ----
    h = h_ref[...]
    z = (jnp.dot(h.astype(jnp.bfloat16), w1_ref[0],
                 preferred_element_type=jnp.float32) + c1_ref[0])
    z = jnp.maximum(z, 0.0)                                   # ReLU
    z = (jnp.dot(z.astype(jnp.bfloat16), w2_ref[0],
                 preferred_element_type=jnp.float32) + c2_ref[0])
    h = h + alpha * z
    h_ref[...] = h
    emb_ref[0, :, :] = h                                      # embedding for block d

    # ---- epilogue (last grid step): final classifier ----
    @pl.when(d == pl.num_programs(0) - 1)
    def _():
        logits_ref[...] = (jnp.dot(h.astype(jnp.bfloat16), wfc_ref[...],
                                   preferred_element_type=jnp.float32)
                           + bfc_ref[...])


def mlp_residual_forward(x, params, *, alpha, depth):
    B = x.shape[0]
    x_flat = x.reshape(B, -1).astype(jnp.float32)   # same as torch .view(B, -1)
    d_in = x_flat.shape[1]
    width = params["w0"].shape[1]
    n_cls = params["wfc"].shape[1]

    # Lane-/sublane-dense padding: f32 tile is (8, 128).
    B_pad = _round_up(max(B, 8), 8)
    W_pad = _round_up(width, 128)
    NC_pad = _round_up(n_cls, 128)

    def pad2(a, rows, cols):
        return jnp.pad(a, ((0, rows - a.shape[0]), (0, cols - a.shape[1])))

    def pad3(a, d1, d2):
        return jnp.pad(a, ((0, 0), (0, d1 - a.shape[1]), (0, d2 - a.shape[2])))

    x_p = pad2(x_flat, B_pad, d_in)
    w0_p = pad2(params["w0"], d_in, W_pad)
    b0_p = pad2(params["b0"], 1, W_pad)
    gamma_p = pad2(params["gamma"], 1, W_pad)
    beta_p = pad2(params["beta"], 1, W_pad)
    w1_p = pad3(params["w1"], W_pad, W_pad)
    c1_p = pad3(params["c1"], 1, W_pad)
    w2_p = pad3(params["w2"], W_pad, W_pad)
    c2_p = pad3(params["c2"], 1, W_pad)
    wfc_p = pad2(params["wfc"], W_pad, NC_pad)
    bfc_p = pad2(params["bfc"], 1, NC_pad)

    kern = functools.partial(mlp_residual_kernel, alpha, B)

    grid_spec = pltpu.PrefetchScalarGridSpec(
        num_scalar_prefetch=0,
        grid=(depth,),
        in_specs=[
            pl.BlockSpec((B_pad, d_in), lambda d: (0, 0)),          # x (resident)
            pl.BlockSpec((d_in, W_pad), lambda d: (0, 0)),          # w0 (resident)
            pl.BlockSpec((1, W_pad), lambda d: (0, 0)),             # b0
            pl.BlockSpec((1, W_pad), lambda d: (0, 0)),             # gamma
            pl.BlockSpec((1, W_pad), lambda d: (0, 0)),             # beta
            pl.BlockSpec((1, W_pad, W_pad), lambda d: (d, 0, 0)),   # w1 (streamed)
            pl.BlockSpec((1, 1, W_pad), lambda d: (d, 0, 0)),       # c1 (streamed)
            pl.BlockSpec((1, W_pad, W_pad), lambda d: (d, 0, 0)),   # w2 (streamed)
            pl.BlockSpec((1, 1, W_pad), lambda d: (d, 0, 0)),       # c2 (streamed)
            pl.BlockSpec((W_pad, NC_pad), lambda d: (0, 0)),        # wfc (resident)
            pl.BlockSpec((1, NC_pad), lambda d: (0, 0)),            # bfc
        ],
        out_specs=(
            pl.BlockSpec((B_pad, NC_pad), lambda d: (0, 0)),        # logits
            pl.BlockSpec((1, B_pad, W_pad), lambda d: (d, 0, 0)),   # embeddings
        ),
        scratch_shapes=[pltpu.VMEM((B_pad, W_pad), jnp.float32)],   # persistent h
    )

    logits_p, emb_p = pl.pallas_call(
        kern,
        out_shape=(jax.ShapeDtypeStruct((B_pad, NC_pad), jnp.float32),
                   jax.ShapeDtypeStruct((depth, B_pad, W_pad), jnp.float32)),
        grid_spec=grid_spec,
        compiler_params=pltpu.CompilerParams(
            dimension_semantics=("arbitrary",),     # depth axis carries h (sequential)
            vmem_limit_bytes=32 * 1024 * 1024),
    )(x_p, w0_p, b0_p, gamma_p, beta_p,
      w1_p, c1_p, w2_p, c2_p, wfc_p, bfc_p)

    # Strip batch / lane padding.
    return logits_p[:B, :n_cls], emb_p[:, :B, :width]


def init_params(key, d_in, width, depth, n_classes):
    """PyTorch-Linear-style init; weights stored bf16, biases/BN params f32."""
    def linear(k, fan_in, fan_out):
        kw, kb = jax.random.split(k)
        bound = 1.0 / jnp.sqrt(float(fan_in))
        w = jax.random.uniform(kw, (fan_in, fan_out), jnp.float32, -bound, bound)
        b = jax.random.uniform(kb, (1, fan_out), jnp.float32, -bound, bound)
        return w.astype(jnp.bfloat16), b

    keys = jax.random.split(key, 2 + 2 * depth)
    w0, b0 = linear(keys[0], d_in, width)
    gamma = jnp.ones((1, width), jnp.float32)
    beta = jnp.zeros((1, width), jnp.float32)

    w1s, c1s, w2s, c2s = [], [], [], []
    for d in range(depth):
        wa, ba = linear(keys[1 + 2 * d], width, width)
        wb, bb = linear(keys[2 + 2 * d], width, width)
        w1s.append(wa); c1s.append(ba.reshape(1, 1, width))
        w2s.append(wb); c2s.append(bb.reshape(1, 1, width))

    wfc, bfc = linear(keys[-1], width, n_classes)
    return dict(
        w0=w0, b0=b0, gamma=gamma, beta=beta,
        w1=jnp.stack(w1s), c1=jnp.concatenate(c1s, axis=0),
        w2=jnp.stack(w2s), c2=jnp.concatenate(c2s, axis=0),
        wfc=wfc, bfc=bfc,
    )


def reference_forward(x, params, *, alpha, depth):
    """Pure-JAX reference mirroring the PyTorch forward (training-mode BN) with
    the same bf16-operand / f32-accumulate matmul precision as the kernel."""
    def mm(a, w):
        return jnp.dot(a.astype(jnp.bfloat16), w,
                       preferred_element_type=jnp.float32)

    h = x.reshape(x.shape[0], -1).astype(jnp.float32)
    h = mm(h, params["w0"]) + params["b0"]
    mean = jnp.mean(h, axis=0, keepdims=True)
    var = jnp.mean((h - mean) ** 2, axis=0, keepdims=True)
    h = params["gamma"] * (h - mean) * jax.lax.rsqrt(var + BN_EPS) + params["beta"]
    embs = []
    for d in range(depth):
        z = jnp.maximum(mm(h, params["w1"][d]) + params["c1"][d], 0.0)
        z = mm(z, params["w2"][d]) + params["c2"][d]
        h = h + alpha * z
        embs.append(h)
    logits = mm(h, params["wfc"]) + params["bfc"]
    return logits, jnp.stack(embs)


if __name__ == "__main__":
    # settings: num_input_channels=4, width=32, depth=2, alpha=0.5, classes=10
    B, C = 2, 4                              # spatial must be 32x32 per the module
    width, depth, alpha, n_classes = 32, 2, 0.5, 10
    d_in = C * 32 * 32

    key = jax.random.PRNGKey(0)
    kx, kp = jax.random.split(key)
    x = jax.random.normal(kx, (B, C, 32, 32), jnp.float32)
    params = init_params(kp, d_in, width, depth, n_classes)

    logits, embeddings = mlp_residual_forward(x, params, alpha=alpha, depth=depth)
    logits = jax.block_until_ready(logits)
    embeddings = jax.block_until_ready(embeddings)

    ref_logits, ref_embs = reference_forward(x, params, alpha=alpha, depth=depth)

    assert logits.shape == (B, n_classes)
    assert embeddings.shape == (depth, B, width)
    assert jnp.allclose(logits, ref_logits, atol=1e-3, rtol=1e-3), (
        float(jnp.max(jnp.abs(logits - ref_logits))))
    assert jnp.allclose(embeddings, ref_embs, atol=1e-3, rtol=1e-3), (
        float(jnp.max(jnp.abs(embeddings - ref_embs))))

    print("KERNEL_OK")
</pallas_src>

<mosaic_0001>
module attributes {stable_mosaic.version = 11 : i64} {
  func.func @mlp_residual_kernel(%arg0: i32, %arg1: memref<8x4096xf32, #tpu.memory_space<vmem>>, %arg2: memref<4096x128xbf16, #tpu.memory_space<vmem>>, %arg3: memref<1x128xf32, #tpu.memory_space<vmem>>, %arg4: memref<1x128xf32, #tpu.memory_space<vmem>>, %arg5: memref<1x128xf32, #tpu.memory_space<vmem>>, %arg6: memref<1x128x128xbf16, #tpu.memory_space<vmem>>, %arg7: memref<1x1x128xf32, #tpu.memory_space<vmem>>, %arg8: memref<1x128x128xbf16, #tpu.memory_space<vmem>>, %arg9: memref<1x1x128xf32, #tpu.memory_space<vmem>>, %arg10: memref<128x128xbf16, #tpu.memory_space<vmem>>, %arg11: memref<1x128xf32, #tpu.memory_space<vmem>>, %arg12: memref<8x128xf32, #tpu.memory_space<vmem>>, %arg13: memref<1x8x128xf32, #tpu.memory_space<vmem>>, %arg14: memref<8x128xf32, #tpu.memory_space<vmem>>) attributes {dimension_semantics = [#tpu.dimension_semantics<arbitrary>], iteration_bounds = array<i64: 2>, scalar_prefetch = 0 : i64, scratch_operands = 1 : i64, tpu.core_type = #tpu.core_type<tc>, window_params = [{pipeline_mode = #tpu.pipeline_mode<synchronous>, transform_indices = @transform_0, window_bounds = array<i64: 8, 4096>}, {pipeline_mode = #tpu.pipeline_mode<synchronous>, transform_indices = @transform_1, window_bounds = array<i64: 4096, 128>}, {pipeline_mode = #tpu.pipeline_mode<synchronous>, transform_indices = @transform_2, window_bounds = array<i64: 1, 128>}, {pipeline_mode = #tpu.pipeline_mode<synchronous>, transform_indices = @transform_3, window_bounds = array<i64: 1, 128>}, {pipeline_mode = #tpu.pipeline_mode<synchronous>, transform_indices = @transform_4, window_bounds = array<i64: 1, 128>}, {transform_indices = @transform_5, window_bounds = array<i64: 1, 128, 128>}, {transform_indices = @transform_6, window_bounds = array<i64: 1, 1, 128>}, {transform_indices = @transform_7, window_bounds = array<i64: 1, 128, 128>}, {transform_indices = @transform_8, window_bounds = array<i64: 1, 1, 128>}, {pipeline_mode = #tpu.pipeline_mode<synchronous>, transform_indices = @transform_9, window_bounds = array<i64: 128, 128>}, {pipeline_mode = #tpu.pipeline_mode<synchronous>, transform_indices = @transform_10, window_bounds = array<i64: 1, 128>}, {pipeline_mode = #tpu.pipeline_mode<synchronous>, transform_indices = @transform_11, window_bounds = array<i64: 8, 128>}, {transform_indices = @transform_12, window_bounds = array<i64: 1, 8, 128>}]} {
    %c0_i32 = arith.constant 0 : i32
    %0 = arith.cmpi eq, %arg0, %c0_i32 : i32
    %1 = arith.extui %0 : i1 to i32
    %c0_i32_0 = arith.constant 0 : i32
    %2 = arith.cmpi ne, %1, %c0_i32_0 : i32
    scf.if %2 {
      %c0_23 = arith.constant 0 : index
      %c0_24 = arith.constant 0 : index
      %32 = vector.load %arg1[%c0_23, %c0_24] : memref<8x4096xf32, #tpu.memory_space<vmem>>, vector<8x4096xf32>
      %33 = arith.truncf %32 : vector<8x4096xf32> to vector<8x4096xbf16>
      %c0_25 = arith.constant 0 : index
      %c0_26 = arith.constant 0 : index
      %34 = vector.load %arg2[%c0_25, %c0_26] : memref<4096x128xbf16, #tpu.memory_space<vmem>>, vector<4096x128xbf16>
      %cst_27 = arith.constant dense<0.000000e+00> : vector<8x128xf32>
      %35 = tpu.matmul %33, %34, %cst_27 {dimension_numbers = #tpu.dot_dimension_numbers<[1], [0], [0], [1], [0, 0, 1, 1], [], []>} : vector<8x4096xbf16>, vector<4096x128xbf16>, vector<8x128xf32> -> vector<8x128xf32>
      %c0_28 = arith.constant 0 : index
      %c0_29 = arith.constant 0 : index
      %36 = vector.load %arg3[%c0_28, %c0_29] : memref<1x128xf32, #tpu.memory_space<vmem>>, vector<1x128xf32>
      %37 = vector.broadcast %36 : vector<1x128xf32> to vector<8x128xf32>
      %38 = arith.addf %35, %37 : vector<8x128xf32>
      %39 = tpu.iota {dimensions = array<i32: 0>} : vector<8x1xi32>
      %c2_i32 = arith.constant 2 : i32
      %40 = vector.broadcast %c2_i32 : i32 to vector<8x1xi32>
      %41 = arith.cmpi slt, %39, %40 : vector<8x1xi32>
      %42 = arith.extui %41 : vector<8x1xi1> to vector<8x1xi32>
      %43 = arith.sitofp %42 : vector<8x1xi32> to vector<8x1xf32>
      %44 = vector.broadcast %43 : vector<8x1xf32> to vector<8x128xf32>
      %45 = arith.mulf %38, %44 : vector<8x128xf32>
      %cst_30 = arith.constant dense<0.000000e+00> : vector<128xf32>
      %46 = vector.multi_reduction <add>, %45, %cst_30 [0] : vector<8x128xf32> to vector<128xf32>
      %47 = vector.shape_cast %46 : vector<128xf32> to vector<1x128xf32>
      %cst_31 = arith.constant 5.000000e-01 : f32
      %48 = vector.broadcast %cst_31 : f32 to vector<1x128xf32>
      %49 = arith.mulf %47, %48 : vector<1x128xf32>
      %50 = vector.broadcast %49 : vector<1x128xf32> to vector<8x128xf32>
      %51 = arith.subf %38, %50 : vector<8x128xf32>
      %52 = arith.mulf %51, %51 : vector<8x128xf32>
      %53 = vector.broadcast %43 : vector<8x1xf32> to vector<8x128xf32>
      %54 = arith.mulf %52, %53 : vector<8x128xf32>
      %cst_32 = arith.constant dense<0.000000e+00> : vector<128xf32>
      %55 = vector.multi_reduction <add>, %54, %cst_32 [0] : vector<8x128xf32> to vector<128xf32>
      %56 = vector.shape_cast %55 : vector<128xf32> to vector<1x128xf32>
      %cst_33 = arith.constant 5.000000e-01 : f32
      %57 = vector.broadcast %cst_33 : f32 to vector<1x128xf32>
      %58 = arith.mulf %56, %57 : vector<1x128xf32>
      %c0_34 = arith.constant 0 : index
      %c0_35 = arith.constant 0 : index
      %59 = vector.load %arg4[%c0_34, %c0_35] : memref<1x128xf32, #tpu.memory_space<vmem>>, vector<1x128xf32>
      %60 = vector.broadcast %59 : vector<1x128xf32> to vector<8x128xf32>
      %61 = arith.mulf %60, %51 : vector<8x128xf32>
      %cst_36 = arith.constant 9.99999974E-6 : f32
      %62 = vector.broadcast %cst_36 : f32 to vector<1x128xf32>
      %63 = arith.addf %58, %62 : vector<1x128xf32>
      %64 = math.rsqrt %63 : vector<1x128xf32>
      %65 = vector.broadcast %64 : vector<1x128xf32> to vector<8x128xf32>
      %66 = arith.mulf %61, %65 : vector<8x128xf32>
      %c0_37 = arith.constant 0 : index
      %c0_38 = arith.constant 0 : index
      %67 = vector.load %arg5[%c0_37, %c0_38] : memref<1x128xf32, #tpu.memory_space<vmem>>, vector<1x128xf32>
      %68 = vector.broadcast %67 : vector<1x128xf32> to vector<8x128xf32>
      %69 = arith.addf %66, %68 : vector<8x128xf32>
      %c0_39 = arith.constant 0 : index
      %c0_40 = arith.constant 0 : index
      %70 = vector.load %arg14[%c0_39, %c0_40] : memref<8x128xf32, #tpu.memory_space<vmem>>, vector<8x128xf32>
      tpu.vector_store %arg14[%c0_39, %c0_40], %69 {strides = array<i32>} : memref<8x128xf32, #tpu.memory_space<vmem>>, vector<8x128xf32>,
    } else {
    }
    %c0 = arith.constant 0 : index
    %c0_1 = arith.constant 0 : index
    %3 = vector.load %arg14[%c0, %c0_1] : memref<8x128xf32, #tpu.memory_space<vmem>>, vector<8x128xf32>
    %4 = arith.truncf %3 : vector<8x128xf32> to vector<8x128xbf16>
    %c0_2 = arith.constant 0 : index
    %c0_3 = arith.constant 0 : index
    %c0_4 = arith.constant 0 : index
    %5 = vector.load %arg6[%c0_2, %c0_3, %c0_4] : memref<1x128x128xbf16, #tpu.memory_space<vmem>>, vector<1x128x128xbf16>
    %6 = vector.shape_cast %5 : vector<1x128x128xbf16> to vector<128x128xbf16>
    %cst = arith.constant dense<0.000000e+00> : vector<8x128xf32>
    %7 = tpu.matmul %4, %6, %cst {dimension_numbers = #tpu.dot_dimension_numbers<[1], [0], [0], [1], [0, 0, 1, 1], [], []>} : vector<8x128xbf16>, vector<128x128xbf16>, vector<8x128xf32> -> vector<8x128xf32>
    %c0_5 = arith.constant 0 : index
    %c0_6 = arith.constant 0 : index
    %c0_7 = arith.constant 0 : index
    %8 = vector.load %arg7[%c0_5, %c0_6, %c0_7] : memref<1x1x128xf32, #tpu.memory_space<vmem>>, vector<1x1x128xf32>
    %9 = vector.shape_cast %8 : vector<1x1x128xf32> to vector<1x128xf32>
    %10 = vector.broadcast %9 : vector<1x128xf32> to vector<8x128xf32>
    %11 = arith.addf %7, %10 : vector<8x128xf32>
    %cst_8 = arith.constant 0.000000e+00 : f32
    %12 = vector.broadcast %cst_8 : f32 to vector<8x128xf32>
    %13 = arith.maximumf %11, %12 : vector<8x128xf32>
    %14 = arith.truncf %13 : vector<8x128xf32> to vector<8x128xbf16>
    %c0_9 = arith.constant 0 : index
    %c0_10 = arith.constant 0 : index
    %c0_11 = arith.constant 0 : index
    %15 = vector.load %arg8[%c0_9, %c0_10, %c0_11] : memref<1x128x128xbf16, #tpu.memory_space<vmem>>, vector<1x128x128xbf16>
    %16 = vector.shape_cast %15 : vector<1x128x128xbf16> to vector<128x128xbf16>
    %cst_12 = arith.constant dense<0.000000e+00> : vector<8x128xf32>
    %17 = tpu.matmul %14, %16, %cst_12 {dimension_numbers = #tpu.dot_dimension_numbers<[1], [0], [0], [1], [0, 0, 1, 1], [], []>} : vector<8x128xbf16>, vector<128x128xbf16>, vector<8x128xf32> -> vector<8x128xf32>
    %c0_13 = arith.constant 0 : index
    %c0_14 = arith.constant 0 : index
    %c0_15 = arith.constant 0 : index
    %18 = vector.load %arg9[%c0_13, %c0_14, %c0_15] : memref<1x1x128xf32, #tpu.memory_space<vmem>>, vector<1x1x128xf32>
    %19 = vector.shape_cast %18 : vector<1x1x128xf32> to vector<1x128xf32>
    %20 = vector.broadcast %19 : vector<1x128xf32> to vector<8x128xf32>
    %21 = arith.addf %17, %20 : vector<8x128xf32>
    %cst_16 = arith.constant 5.000000e-01 : f32
    %22 = vector.broadcast %cst_16 : f32 to vector<8x128xf32>
    %23 = arith.mulf %22, %21 : vector<8x128xf32>
    %24 = arith.addf %3, %23 : vector<8x128xf32>
    %c0_17 = arith.constant 0 : index
    %c0_18 = arith.constant 0 : index
    %25 = vector.load %arg14[%c0_17, %c0_18] : memref<8x128xf32, #tpu.memory_space<vmem>>, vector<8x128xf32>
    tpu.vector_store %arg14[%c0_17, %c0_18], %24 {strides = array<i32>} : memref<8x128xf32, #tpu.memory_space<vmem>>, vector<8x128xf32>,
    %c0_19 = arith.constant 0 : index
    %c0_20 = arith.constant 0 : index
    %c0_21 = arith.constant 0 : index
    %26 = vector.load %arg13[%c0_19, %c0_20, %c0_21] : memref<1x8x128xf32, #tpu.memory_space<vmem>>, vector<1x8x128xf32>
    %27 = vector.shape_cast %26 : vector<1x8x128xf32> to vector<8x128xf32>
    %28 = vector.shape_cast %24 : vector<8x128xf32> to vector<1x8x128xf32>
    tpu.vector_store %arg13[%c0_19, %c0_20, %c0_21], %28 {strides = array<i32>} : memref<1x8x128xf32, #tpu.memory_space<vmem>>, vector<1x8x128xf32>,
    %c1_i32 = arith.constant 1 : i32
    %29 = arith.cmpi eq, %arg0, %c1_i32 : i32
    %30 = arith.extui %29 : i1 to i32
    %c0_i32_22 = arith.constant 0 : i32
    %31 = arith.cmpi ne, %30, %c0_i32_22 : i32
    scf.if %31 {
      %32 = arith.truncf %24 : vector<8x128xf32> to vector<8x128xbf16>
      %c0_23 = arith.constant 0 : index
      %c0_24 = arith.constant 0 : index
      %33 = vector.load %arg10[%c0_23, %c0_24] : memref<128x128xbf16, #tpu.memory_space<vmem>>, vector<128x128xbf16>
      %cst_25 = arith.constant dense<0.000000e+00> : vector<8x128xf32>
      %34 = tpu.matmul %32, %33, %cst_25 {dimension_numbers = #tpu.dot_dimension_numbers<[1], [0], [0], [1], [0, 0, 1, 1], [], []>} : vector<8x128xbf16>, vector<128x128xbf16>, vector<8x128xf32> -> vector<8x128xf32>
      %c0_26 = arith.constant 0 : index
      %c0_27 = arith.constant 0 : index
      %35 = vector.load %arg11[%c0_26, %c0_27] : memref<1x128xf32, #tpu.memory_space<vmem>>, vector<1x128xf32>
      %36 = vector.broadcast %35 : vector<1x128xf32> to vector<8x128xf32>
      %37 = arith.addf %34, %36 : vector<8x128xf32>
      %c0_28 = arith.constant 0 : index
      %c0_29 = arith.constant 0 : index
      %38 = vector.load %arg12[%c0_28, %c0_29] : memref<8x128xf32, #tpu.memory_space<vmem>>, vector<8x128xf32>
      tpu.vector_store %arg12[%c0_28, %c0_29], %37 {strides = array<i32>} : memref<8x128xf32, #tpu.memory_space<vmem>>, vector<8x128xf32>,
    } else {
    }
    return
  }
  func.func @transform_0(%arg0: i32) -> (i32, i32) {
    %c0_i32 = arith.constant 0 : i32
    %c0_i32_0 = arith.constant 0 : i32
    %c0_i32_1 = arith.constant 0 : i32
    return %c0_i32, %c0_i32_0 : i32, i32
  }
  func.func @transform_1(%arg0: i32) -> (i32, i32) {
    %c0_i32 = arith.constant 0 : i32
    %c0_i32_0 = arith.constant 0 : i32
    %c0_i32_1 = arith.constant 0 : i32
    return %c0_i32, %c0_i32_0 : i32, i32
  }
  func.func @transform_2(%arg0: i32) -> (i32, i32) {
    %c0_i32 = arith.constant 0 : i32
    %c0_i32_0 = arith.constant 0 : i32
    %c0_i32_1 = arith.constant 0 : i32
    return %c0_i32, %c0_i32_0 : i32, i32
  }
  func.func @transform_3(%arg0: i32) -> (i32, i32) {
    %c0_i32 = arith.constant 0 : i32
    %c0_i32_0 = arith.constant 0 : i32
    %c0_i32_1 = arith.constant 0 : i32
    return %c0_i32, %c0_i32_0 : i32, i32
  }
  func.func @transform_4(%arg0: i32) -> (i32, i32) {
    %c0_i32 = arith.constant 0 : i32
    %c0_i32_0 = arith.constant 0 : i32
    %c0_i32_1 = arith.constant 0 : i32
    return %c0_i32, %c0_i32_0 : i32, i32
  }
  func.func @transform_5(%arg0: i32) -> (i32, i32, i32) {
    %c0_i32 = arith.constant 0 : i32
    %c0_i32_0 = arith.constant 0 : i32
    %c0_i32_1 = arith.constant 0 : i32
    return %arg0, %c0_i32, %c0_i32_0 : i32, i32, i32
  }
  func.func @transform_6(%arg0: i32) -> (i32, i32, i32) {
    %c0_i32 = arith.constant 0 : i32
    %c0_i32_0 = arith.constant 0 : i32
    %c0_i32_1 = arith.constant 0 : i32
    return %arg0, %c0_i32, %c0_i32_0 : i32, i32, i32
  }
  func.func @transform_7(%arg0: i32) -> (i32, i32, i32) {
    %c0_i32 = arith.constant 0 : i32
    %c0_i32_0 = arith.constant 0 : i32
    %c0_i32_1 = arith.constant 0 : i32
    return %arg0, %c0_i32, %c0_i32_0 : i32, i32, i32
  }
  func.func @transform_8(%arg0: i32) -> (i32, i32, i32) {
    %c0_i32 = arith.constant 0 : i32
    %c0_i32_0 = arith.constant 0 : i32
    %c0_i32_1 = arith.constant 0 : i32
    return %arg0, %c0_i32, %c0_i32_0 : i32, i32, i32
  }
  func.func @transform_9(%arg0: i32) -> (i32, i32) {
    %c0_i32 = arith.constant 0 : i32
    %c0_i32_0 = arith.constant 0 : i32
    %c0_i32_1 = arith.constant 0 : i32
    return %c0_i32, %c0_i32_0 : i32, i32
  }
  func.func @transform_10(%arg0: i32) -> (i32, i32) {
    %c0_i32 = arith.constant 0 : i32
    %c0_i32_0 = arith.constant 0 : i32
    %c0_i32_1 = arith.constant 0 : i32
    return %c0_i32, %c0_i32_0 : i32, i32
  }
  func.func @transform_11(%arg0: i32) -> (i32, i32) {
    %c0_i32 = arith.constant 0 : i32
    %c0_i32_0 = arith.constant 0 : i32
    %c0_i32_1 = arith.constant 0 : i32
    return %c0_i32, %c0_i32_0 : i32, i32
  }
  func.func @transform_12(%arg0: i32) -> (i32, i32, i32) {
    %c0_i32 = arith.constant 0 : i32
    %c0_i32_0 = arith.constant 0 : i32
    %c0_i32_1 = arith.constant 0 : i32
    return %arg0, %c0_i32, %c0_i32_0 : i32, i32, i32
  }
}

</mosaic_0001>

<llo_original>
// kernel: tpu_custom_call.1
$region0: #{tpu_custom_call.1}
  #allocation0 [shape = 'u32[]', space=smem, size = 0x4, offset = 0x4, fixed_abs, tag = 'smem constant byte address 0x4 - core index']
  #allocation1 [shape = 'u32[144,128]{1,0:T(1,128)}', space=vmem, size = 0x12000, scoped, tag = 'internal scratch']
  #allocation2 [shape = 'f32[8,128]{1,0:T(8,128)}', space=vmem, size = 0x1000, scoped, tag = 'scratch operand']
  %s0 = inlined_call_operand.hbm [shape: f32[8,4096], index: 0, kind: input, shape index: {}]
  %s1 = inlined_call_operand.hbm [shape: bf16[4096,128], index: 1, kind: input, shape index: {}]
  %s2 = inlined_call_operand.vmem [shape: f32[1,128], index: 2, kind: input, shape index: {}]
  %s3 = inlined_call_operand.vmem [shape: f32[1,128], index: 3, kind: input, shape index: {}]
  %s4 = inlined_call_operand.vmem [shape: f32[1,128], index: 4, kind: input, shape index: {}]
  %s5 = inlined_call_operand.hbm [shape: bf16[2,128,128], index: 5, kind: input, shape index: {}]
  %s6 = inlined_call_operand.vmem [shape: f32[2,1,128], index: 6, kind: input, shape index: {}]
  %s7 = inlined_call_operand.hbm [shape: bf16[2,128,128], index: 7, kind: input, shape index: {}]
  %s8 = inlined_call_operand.vmem [shape: f32[2,1,128], index: 8, kind: input, shape index: {}]
  %s9 = inlined_call_operand.hbm [shape: bf16[128,128], index: 9, kind: input, shape index: {}]
  %s10 = inlined_call_operand.vmem [shape: f32[1,128], index: 10, kind: input, shape index: {}]
  %s11 = inlined_call_operand.hbm [shape: f32[8,128], index: 11, kind: output, shape index: {0}]
  %s12 = inlined_call_operand.hbm [shape: f32[2,8,128], index: 12, kind: output, shape index: {1}]
  %13 = xla_tuple %s11, %s12
  %s14 = sld [smem:[#allocation0]]
  $region113: #{tpu_custom_call.1} parent=0
    _
  %s16 = ssub.s32 1, %s14
  %s17 = scalar_select 0, %s16, %s14
  $region1: #{tpu_custom_call.1} parent=0
    #allocation3 [shape = 'u8[131072]{0}', space=vmem, size = 0x20000, scoped, tag = 'input window, operand 0, single buffered']
    #allocation4 [shape = 's32[2]{0}', space=sflag, size = 0x8, scoped, tag = 'scoped memory for tpu_custom_call.1']
    #allocation5 [shape = 's32[2]{0}', space=sflag, size = 0x8, scoped, tag = 'scoped memory for tpu_custom_call.1']
    #allocation6 [shape = 'u8[1048576]{0}', space=vmem, size = 0x100000, scoped, tag = 'input window, operand 1, single buffered']
    #allocation7 [shape = 's32[1]{0}', space=sflag, size = 0x4, scoped, tag = 'scoped memory for tpu_custom_call.1']
    #allocation8 [shape = 'u8[65536]{0}', space=vmem, size = 0x10000, scoped, tag = 'input window, operand 5']
    #allocation9 [shape = 'u8[65536]{0}', space=vmem, size = 0x10000, scoped, tag = 'input window, operand 7']
    #allocation10 [shape = 'u8[32768]{0}', space=vmem, size = 0x8000, scoped, tag = 'input window, operand 9, single buffered']
    #allocation11 [shape = 'u8[4096]{0}', space=vmem, size = 0x1000, scoped, tag = 'output window, operand 0, single buffered']
    #allocation12 [shape = 'u8[8192]{0}', space=vmem, size = 0x2000, scoped, tag = 'output window, operand 1']
    #allocation13 [shape = 's32[2]{0}', space=sflag, size = 0x8, scoped, tag = 'scoped memory for tpu_custom_call.1']
    %18 = vsyncpa [#allocation4], 0
    %19 = vsyncpa [#allocation7], 0
    %20 = vsyncpa [#allocation5], 0
    %21 = vsyncpa [#allocation13], 0
    %s22 = scalar_lea.sflag [#allocation13], 1
    %23 = vsyncpa %s22, 0
    loop: start=0, step=1, limit=4
    $region2: #{tpu_custom_call.1} parent=1 // loop_pre_header
      _
    $region3: #{tpu_custom_call.1} parent=1 // loop_header
      %s25 = sphi 0, %s29
      %p26 = scmp.ge.s32.totalorder %s25, 4
      %s33 = sphi 0, %s33
      %s35 = sphi 0, %s33
      %s36 = sphi 0, %s35
      %s50 = sphi 0, %s36
      %s54 = sphi 0, %s54
      %s56 = sphi 0, %s54
      %s57 = sphi 0, %s56
      %s71 = sphi 0, %s57
      %s75 = sphi 0, %s75
      %s77 = sphi 0, %s75
      %s78 = sphi 0, %s77
      %s92 = sphi 0, %s78
      %s96 = sphi 0, %s96
      %s98 = sphi 0, %s96
      %s99 = sphi 0, %s98
      %s113 = sphi 0, %s99
      %s117 = sphi 0, %s117
      %s119 = sphi 0, %s117
      %s120 = sphi 0, %s119
      %s134 = sphi 0, %s120
      %s140 = sphi 0, %s142
      %s143 = sphi 0, %s140
      %s144 = sphi 0, %s143
      %s160 = sphi 0, %s144
      %s166 = sphi 0, %s168
      %s169 = sphi 0, %s166
      %s170 = sphi 0, %s169
      %s186 = sphi 0, %s170
      %s192 = sphi 0, %s194
      %s195 = sphi 0, %s192
      %s196 = sphi 0, %s195
      %s212 = sphi 0, %s196
      %s218 = sphi 0, %s220
      %s221 = sphi 0, %s218
      %s222 = sphi 0, %s221
      %s238 = sphi 0, %s222
      %s242 = sphi 0, %s242
      %s244 = sphi 0, %s242
      %s245 = sphi 0, %s244
      %s259 = sphi 0, %s245
      %s263 = sphi 0, %s263
      %s265 = sphi 0, %s263
      %s266 = sphi 0, %s265
      %s280 = sphi 0, %s266
      %s284 = sphi 0, %s284
      %s286 = sphi 0, %s284
      %s287 = sphi 0, %s286
      %s301 = sphi 0, %s287
      %s307 = sphi 0, %s309
      %s310 = sphi 0, %s307
      %s311 = sphi 0, %s310
      %s327 = sphi 0, %s311
    $region4: #{tpu_custom_call.1} parent=1 // loop_header_branch
      %28 = sbr.rel (%p26) target = $region8
    $region5: #{tpu_custom_call.1} parent=1 // loop_body
      %s30 = ssub.s32 %s25, 1
      %s31 = ssub.s32 %s25, 2
      %s32 = sadd.s32 %s25, 1
      %s34 = sadd.s32 %s33, 1
      %p37 = scmp.eq.s32.totalorder %s25, 1
      %p38 = scmp.ne.s32.totalorder %s33, %s35
      %p39 = scmp.eq.s32.totalorder %s25, 0
      %p40 = por %p38, %p39
      %p41 = scmp.ne.s32.totalorder %s33, %s35
      %p42 = scmp.eq.s32.totalorder %s30, 1
      %p43 = por %p41, %p42
      %p44 = scmp.ne.s32.totalorder %s35, %s36
      %p45 = scmp.eq.s32.totalorder %s30, 0
      %p46 = por %p44, %p45
      %p47 = scmp.ne.s32.totalorder %s35, %s36
      %p48 = scmp.eq.s32.totalorder %s31, 1
      %p49 = por %p47, %p48
      %p51 = scmp.ne.s32.totalorder %s36, %s50
      %p52 = scmp.eq.s32.totalorder %s31, 0
      %p53 = por %p51, %p52
      %s55 = sadd.s32 %s54, 1
      %p58 = scmp.eq.s32.totalorder %s25, 1
      %p59 = scmp.ne.s32.totalorder %s54, %s56
      %p60 = scmp.eq.s32.totalorder %s25, 0
      %p61 = por %p59, %p60
      %p62 = scmp.ne.s32.totalorder %s54, %s56
      %p63 = scmp.eq.s32.totalorder %s30, 1
      %p64 = por %p62, %p63
      %p65 = scmp.ne.s32.totalorder %s56, %s57
      %p66 = scmp.eq.s32.totalorder %s30, 0
      %p67 = por %p65, %p66
      %p68 = scmp.ne.s32.totalorder %s56, %s57
      %p69 = scmp.eq.s32.totalorder %s31, 1
      %p70 = por %p68, %p69
      %p72 = scmp.ne.s32.totalorder %s57, %s71
      %p73 = scmp.eq.s32.totalorder %s31, 0
      %p74 = por %p72, %p73
      %s76 = sadd.s32 %s75, 1
      %p79 = scmp.eq.s32.totalorder %s25, 1
      %p80 = scmp.ne.s32.totalorder %s75, %s77
      %p81 = scmp.eq.s32.totalorder %s25, 0
      %p82 = por %p80, %p81
      %p83 = scmp.ne.s32.totalorder %s75, %s77
      %p84 = scmp.eq.s32.totalorder %s30, 1
      %p85 = por %p83, %p84
      %p86 = scmp.ne.s32.totalorder %s77, %s78
      %p87 = scmp.eq.s32.totalorder %s30, 0
      %p88 = por %p86, %p87
      %p89 = scmp.ne.s32.totalorder %s77, %s78
      %p90 = scmp.eq.s32.totalorder %s31, 1
      %p91 = por %p89, %p90
      %p93 = scmp.ne.s32.totalorder %s78, %s92
      %p94 = scmp.eq.s32.totalorder %s31, 0
      %p95 = por %p93, %p94
      %s97 = sadd.s32 %s96, 1
      %p100 = scmp.eq.s32.totalorder %s25, 1
      %p101 = scmp.ne.s32.totalorder %s96, %s98
      %p102 = scmp.eq.s32.totalorder %s25, 0
      %p103 = por %p101, %p102
      %p104 = scmp.ne.s32.totalorder %s96, %s98
      %p105 = scmp.eq.s32.totalorder %s30, 1
      %p106 = por %p104, %p105
      %p107 = scmp.ne.s32.totalorder %s98, %s99
      %p108 = scmp.eq.s32.totalorder %s30, 0
      %p109 = por %p107, %p108
      %p110 = scmp.ne.s32.totalorder %s98, %s99
      %p111 = scmp.eq.s32.totalorder %s31, 1
      %p112 = por %p110, %p111
      %p114 = scmp.ne.s32.totalorder %s99, %s113
      %p115 = scmp.eq.s32.totalorder %s31, 0
      %p116 = por %p114, %p115
      %s118 = sadd.s32 %s117, 1
      %p121 = scmp.eq.s32.totalorder %s25, 1
      %p122 = scmp.ne.s32.totalorder %s117, %s119
      %p123 = scmp.eq.s32.totalorder %s25, 0
      %p124 = por %p122, %p123
      %p125 = scmp.ne.s32.totalorder %s117, %s119
      %p126 = scmp.eq.s32.totalorder %s30, 1
      %p127 = por %p125, %p126
      %p128 = scmp.ne.s32.totalorder %s119, %s120
      %p129 = scmp.eq.s32.totalorder %s30, 0
      %p130 = por %p128, %p129
      %p131 = scmp.ne.s32.totalorder %s119, %s120
      %p132 = scmp.eq.s32.totalorder %s31, 1
      %p133 = por %p131, %p132
      %p135 = scmp.ne.s32.totalorder %s120, %s134
      %p136 = scmp.eq.s32.totalorder %s31, 0
      %p137 = por %p135, %p136
      %s138 = ssub.s32 %s25, %s32
      %p139 = scmp.eq.s32.totalorder %s138, 0
      %s141 = sadd.s32 %s140, 1
      %s142 = scalar_select %p139, %s140, %s141
      %p145 = pneg %p139
      %p146 = scmp.eq.s32.totalorder %s25, 1
      %p147 = por %p145, %p146
      %p148 = scmp.ne.s32.totalorder %s140, %s143
      %p149 = scmp.eq.s32.totalorder %s25, 0
      %p150 = por %p148, %p149
      %p151 = scmp.ne.s32.totalorder %s140, %s143
      %p152 = scmp.eq.s32.totalorder %s30, 1
      %p153 = por %p151, %p152
      %p154 = scmp.ne.s32.totalorder %s143, %s144
      %p155 = scmp.eq.s32.totalorder %s30, 0
      %p156 = por %p154, %p155
      %p157 = scmp.ne.s32.totalorder %s143, %s144
      %p158 = scmp.eq.s32.totalorder %s31, 1
      %p159 = por %p157, %p158
      %p161 = scmp.ne.s32.totalorder %s144, %s160
      %p162 = scmp.eq.s32.totalorder %s31, 0
      %p163 = por %p161, %p162
      %s164 = ssub.s32 %s25, %s32
      %p165 = scmp.eq.s32.totalorder %s164, 0
      %s167 = sadd.s32 %s166, 1
      %s168 = scalar_select %p165, %s166, %s167
      %p171 = pneg %p165
      %p172 = scmp.eq.s32.totalorder %s25, 1
      %p173 = por %p171, %p172
      %p174 = scmp.ne.s32.totalorder %s166, %s169
      %p175 = scmp.eq.s32.totalorder %s25, 0
      %p176 = por %p174, %p175
      %p177 = scmp.ne.s32.totalorder %s166, %s169
      %p178 = scmp.eq.s32.totalorder %s30, 1
      %p179 = por %p177, %p178
      %p180 = scmp.ne.s32.totalorder %s169, %s170
      %p181 = scmp.eq.s32.totalorder %s30, 0
      %p182 = por %p180, %p181
      %p183 = scmp.ne.s32.totalorder %s169, %s170
      %p184 = scmp.eq.s32.totalorder %s31, 1
      %p185 = por %p183, %p184
      %p187 = scmp.ne.s32.totalorder %s170, %s186
      %p188 = scmp.eq.s32.totalorder %s31, 0
      %p189 = por %p187, %p188
      %s190 = ssub.s32 %s25, %s32
      %p191 = scmp.eq.s32.totalorder %s190, 0
      %s193 = sadd.s32 %s192, 1
      %s194 = scalar_select %p191, %s192, %s193
      %p197 = pneg %p191
      %p198 = scmp.eq.s32.totalorder %s25, 1
      %p199 = por %p197, %p198
      %p200 = scmp.ne.s32.totalorder %s192, %s195
      %p201 = scmp.eq.s32.totalorder %s25, 0
      %p202 = por %p200, %p201
      %p203 = scmp.ne.s32.totalorder %s192, %s195
      %p204 = scmp.eq.s32.totalorder %s30, 1
      %p205 = por %p203, %p204
      %p206 = scmp.ne.s32.totalorder %s195, %s196
      %p207 = scmp.eq.s32.totalorder %s30, 0
      %p208 = por %p206, %p207
      %p209 = scmp.ne.s32.totalorder %s195, %s196
      %p210 = scmp.eq.s32.totalorder %s31, 1
      %p211 = por %p209, %p210
      %p213 = scmp.ne.s32.totalorder %s196, %s212
      %p214 = scmp.eq.s32.totalorder %s31, 0
      %p215 = por %p213, %p214
      %s216 = ssub.s32 %s25, %s32
      %p217 = scmp.eq.s32.totalorder %s216, 0
      %s219 = sadd.s32 %s218, 1
      %s220 = scalar_select %p217, %s218, %s219
      %p223 = pneg %p217
      %p224 = scmp.eq.s32.totalorder %s25, 1
      %p225 = por %p223, %p224
      %p226 = scmp.ne.s32.totalorder %s218, %s221
      %p227 = scmp.eq.s32.totalorder %s25, 0
      %p228 = por %p226, %p227
      %p229 = scmp.ne.s32.totalorder %s218, %s221
      %p230 = scmp.eq.s32.totalorder %s30, 1
      %p231 = por %p229, %p230
      %p232 = scmp.ne.s32.totalorder %s221, %s222
      %p233 = scmp.eq.s32.totalorder %s30, 0
      %p234 = por %p232, %p233
      %p235 = scmp.ne.s32.totalorder %s221, %s222
      %p236 = scmp.eq.s32.totalorder %s31, 1
      %p237 = por %p235, %p236
      %p239 = scmp.ne.s32.totalorder %s222, %s238
      %p240 = scmp.eq.s32.totalorder %s31, 0
      %p241 = por %p239, %p240
      %s243 = sadd.s32 %s242, 1
      %p246 = scmp.eq.s32.totalorder %s25, 1
      %p247 = scmp.ne.s32.totalorder %s242, %s244
      %p248 = scmp.eq.s32.totalorder %s25, 0
      %p249 = por %p247, %p248
      %p250 = scmp.ne.s32.totalorder %s242, %s244
      %p251 = scmp.eq.s32.totalorder %s30, 1
      %p252 = por %p250, %p251
      %p253 = scmp.ne.s32.totalorder %s244, %s245
      %p254 = scmp.eq.s32.totalorder %s30, 0
      %p255 = por %p253, %p254
      %p256 = scmp.ne.s32.totalorder %s244, %s245
      %p257 = scmp.eq.s32.totalorder %s31, 1
      %p258 = por %p256, %p257
      %p260 = scmp.ne.s32.totalorder %s245, %s259
      %p261 = scmp.eq.s32.totalorder %s31, 0
      %p262 = por %p260, %p261
      %s264 = sadd.s32 %s263, 1
      %p267 = scmp.eq.s32.totalorder %s25, 1
      %p268 = scmp.ne.s32.totalorder %s263, %s265
      %p269 = scmp.eq.s32.totalorder %s25, 0
      %p270 = por %p268, %p269
      %p271 = scmp.ne.s32.totalorder %s263, %s265
      %p272 = scmp.eq.s32.totalorder %s30, 1
      %p273 = por %p271, %p272
      %p274 = scmp.ne.s32.totalorder %s265, %s266
      %p275 = scmp.eq.s32.totalorder %s30, 0
      %p276 = por %p274, %p275
      %p277 = scmp.ne.s32.totalorder %s265, %s266
      %p278 = scmp.eq.s32.totalorder %s31, 1
      %p279 = por %p277, %p278
      %p281 = scmp.ne.s32.totalorder %s266, %s280
      %p282 = scmp.eq.s32.totalorder %s31, 0
      %p283 = por %p281, %p282
      %s285 = sadd.s32 %s284, 1
      %p288 = scmp.eq.s32.totalorder %s25, 1
      %p289 = scmp.ne.s32.totalorder %s284, %s286
      %p290 = scmp.eq.s32.totalorder %s25, 0
      %p291 = por %p289, %p290
      %p292 = scmp.ne.s32.totalorder %s284, %s286
      %p293 = scmp.eq.s32.totalorder %s30, 1
      %p294 = por %p292, %p293
      %p295 = scmp.ne.s32.totalorder %s286, %s287
      %p296 = scmp.eq.s32.totalorder %s30, 0
      %p297 = por %p295, %p296
      %p298 = scmp.ne.s32.totalorder %s286, %s287
      %p299 = scmp.eq.s32.totalorder %s31, 1
      %p300 = por %p298, %p299
      %p302 = scmp.ne.s32.totalorder %s287, %s301
      %p303 = scmp.eq.s32.totalorder %s31, 0
      %p304 = por %p302, %p303
      %s305 = ssub.s32 %s25, %s32
      %p306 = scmp.eq.s32.totalorder %s305, 0
      %s308 = sadd.s32 %s307, 1
      %s309 = scalar_select %p306, %s307, %s308
      %p312 = pneg %p306
      %p313 = scmp.eq.s32.totalorder %s25, 1
      %p314 = por %p312, %p313
      %p315 = scmp.ne.s32.totalorder %s307, %s310
      %p316 = scmp.eq.s32.totalorder %s25, 0
      %p317 = por %p315, %p316
      %p318 = scmp.ne.s32.totalorder %s307, %s310
      %p319 = scmp.eq.s32.totalorder %s30, 1
      %p320 = por %p318, %p319
      %p321 = scmp.ne.s32.totalorder %s310, %s311
      %p322 = scmp.eq.s32.totalorder %s30, 0
      %p323 = por %p321, %p322
      %p324 = scmp.ne.s32.totalorder %s310, %s311
      %p325 = scmp.eq.s32.totalorder %s31, 1
      %p326 = por %p324, %p325
      %p328 = scmp.ne.s32.totalorder %s311, %s327
      %p329 = scmp.eq.s32.totalorder %s31, 0
      %p330 = por %p328, %p329
      %p331 = scmp.le.s32.totalorder 1, %s25
      %p332 = scmp.lt.s32.totalorder %s25, 3
      %p333 = pnand %p331, %p332
      %p334 = pneg %p333
      // Predicated region
      $region9: #{tpu_custom_call.1} parent=5 // pred_check
        _
      $region10: #{tpu_custom_call.1} parent=5 // pred_check_branch
        %336 = sbr.rel (%p333) target = $region12
      $region11: #{tpu_custom_call.1} parent=5 // pred_region
        %s337 = ssub.s32 %s25, 1
        // Predicated region
        $region13: #{tpu_custom_call.1} parent=11 // pred_check
          %p338 = pneg %p46
        $region14: #{tpu_custom_call.1} parent=11 // pred_check_branch
          %340 = sbr.rel (%p338) target = $region16
        $region15: #{tpu_custom_call.1} parent=11 // pred_region
          %s342 = ssub.s32 4096, 4096
          %343 = vsyncadd [#allocation4], %s342
          %s345 = sshll.u32 [#allocation3], 4
          %s346 = int_to_ptr.vmem [resolvable:$true] %s345
          %348 = dma.hbm_to_vmem [thread:$0]  %s0, 4096, %s346, [#allocation4]
        $region16: #{tpu_custom_call.1} parent=11 // pred_fallthru
          _
        // Predicated region
        $region17: #{tpu_custom_call.1} parent=11 // pred_check
          %p349 = pneg %p67
        $region18: #{tpu_custom_call.1} parent=11 // pred_check_branch
          %351 = sbr.rel (%p349) target = $region20
        $region19: #{tpu_custom_call.1} parent=11 // pred_region
          %s353 = ssub.s32 32768, 32768
          %354 = vsyncadd [#allocation7], %s353
          %s355 = sshll.u32 [#allocation6], 4
          %s356 = int_to_ptr.vmem [resolvable:$true] %s355
          %361 = dma.hbm_to_vmem [thread:$0]  %s1, 32768, %s356, [#allocation7], 64, 64, 4
        $region20: #{tpu_custom_call.1} parent=11 // pred_fallthru
          _
        // Predicated region
        $region21: #{tpu_custom_call.1} parent=11 // pred_check
          %p362 = pneg %p88
        $region22: #{tpu_custom_call.1} parent=11 // pred_check_branch
          %364 = sbr.rel (%p362) target = $region24
        $region23: #{tpu_custom_call.1} parent=11 // pred_region
          _
        $region24: #{tpu_custom_call.1} parent=11 // pred_fallthru
          _
        // Predicated region
        $region25: #{tpu_custom_call.1} parent=11 // pred_check
          %p365 = pneg %p109
        $region26: #{tpu_custom_call.1} parent=11 // pred_check_branch
          %367 = sbr.rel (%p365) target = $region28
        $region27: #{tpu_custom_call.1} parent=11 // pred_region
          _
        $region28: #{tpu_custom_call.1} parent=11 // pred_fallthru
          _
        // Predicated region
        $region29: #{tpu_custom_call.1} parent=11 // pred_check
          %p368 = pneg %p130
        $region30: #{tpu_custom_call.1} parent=11 // pred_check_branch
          %370 = sbr.rel (%p368) target = $region32
        $region31: #{tpu_custom_call.1} parent=11 // pred_region
          _
        $region32: #{tpu_custom_call.1} parent=11 // pred_fallthru
          _
        // Predicated region
        $region33: #{tpu_custom_call.1} parent=11 // pred_check
          %p371 = pneg %p255
        $region34: #{tpu_custom_call.1} parent=11 // pred_check_branch
          %373 = sbr.rel (%p371) target = $region36
        $region35: #{tpu_custom_call.1} parent=11 // pred_region
          %s375 = ssub.s32 1024, 1024
          %376 = vsyncadd [#allocation7], %s375
          %s377 = sshll.u32 [#allocation10], 4
          %s378 = int_to_ptr.vmem [resolvable:$true] %s377
          %383 = dma.hbm_to_vmem [thread:$0]  %s9, 1024, %s378, [#allocation7], 64, 64, 4
        $region36: #{tpu_custom_call.1} parent=11 // pred_fallthru
          _
        // Predicated region
        $region37: #{tpu_custom_call.1} parent=11 // pred_check
          %p384 = pneg %p276
        $region38: #{tpu_custom_call.1} parent=11 // pred_check_branch
          %386 = sbr.rel (%p384) target = $region40
        $region39: #{tpu_custom_call.1} parent=11 // pred_region
          _
        $region40: #{tpu_custom_call.1} parent=11 // pred_fallthru
          _
      $region12: #{tpu_custom_call.1} parent=5 // pred_fallthru
        _
      %p387 = scmp.lt.s32.totalorder %s25, 2
      // Predicated region
      $region41: #{tpu_custom_call.1} parent=5 // pred_check
        %p388 = pneg %p387
      $region42: #{tpu_custom_call.1} parent=5 // pred_check_branch
        %390 = sbr.rel (%p388) target = $region44
      $region43: #{tpu_custom_call.1} parent=5 // pred_region
        // Predicated region
        $region45: #{tpu_custom_call.1} parent=43 // pred_check
          %p391 = pneg %p150
        $region46: #{tpu_custom_call.1} parent=43 // pred_check_branch
          %393 = sbr.rel (%p391) target = $region48
        $region47: #{tpu_custom_call.1} parent=43 // pred_region
          %s394 = sand.u32 %s25, 1
          %s395 = scalar_lea.sflag [#allocation4], %s394
          %s396 = sand.u32 %s140, 1
          %s397 = smul.addr %s396, 64
          %s398 = scalar_lea.vmem [#allocation8], %s397
          %s400 = ssub.s32 1024, 1024
          %401 = vsyncadd %s395, %s400
          %s402 = smul.addr %s25, 16
          %s403 = smul.addr %s402, 64
          %s404 = scalar_lea.hbm %s5, %s403
          %s405 = sshll.u32 %s398, 4
          %s406 = int_to_ptr.vmem [resolvable:$true] %s405
          %411 = dma.hbm_to_vmem [thread:$0]  %s404, 1024, %s406, %s395, 64, 64, 4
        $region48: #{tpu_custom_call.1} parent=43 // pred_fallthru
          _
        // Predicated region
        $region49: #{tpu_custom_call.1} parent=43 // pred_check
          %p412 = pneg %p176
        $region50: #{tpu_custom_call.1} parent=43 // pred_check_branch
          %414 = sbr.rel (%p412) target = $region52
        $region51: #{tpu_custom_call.1} parent=43 // pred_region
          %p415 = scmp.lt.s32.totalorder %s25, 1
          %s416 = scalar_select %p415, %s25, 1
          %s417 = scalar_lea.vmem %s6, %s416
        $region52: #{tpu_custom_call.1} parent=43 // pred_fallthru
          _
        // Predicated region
        $region53: #{tpu_custom_call.1} parent=43 // pred_check
          %p418 = pneg %p202
        $region54: #{tpu_custom_call.1} parent=43 // pred_check_branch
          %420 = sbr.rel (%p418) target = $region56
        $region55: #{tpu_custom_call.1} parent=43 // pred_region
          %s421 = sand.u32 %s25, 1
          %s422 = scalar_lea.sflag [#allocation4], %s421
          %s423 = sand.u32 %s192, 1
          %s424 = smul.addr %s423, 64
          %s425 = scalar_lea.vmem [#allocation9], %s424
          %s427 = ssub.s32 1024, 1024
          %428 = vsyncadd %s422, %s427
          %s429 = smul.addr %s25, 16
          %s430 = smul.addr %s429, 64
          %s431 = scalar_lea.hbm %s7, %s430
          %s432 = sshll.u32 %s425, 4
          %s433 = int_to_ptr.vmem [resolvable:$true] %s432
          %438 = dma.hbm_to_vmem [thread:$0]  %s431, 1024, %s433, %s422, 64, 64, 4
        $region56: #{tpu_custom_call.1} parent=43 // pred_fallthru
          _
        // Predicated region
        $region57: #{tpu_custom_call.1} parent=43 // pred_check
          %p439 = pneg %p228
        $region58: #{tpu_custom_call.1} parent=43 // pred_check_branch
          %441 = sbr.rel (%p439) target = $region60
        $region59: #{tpu_custom_call.1} parent=43 // pred_region
          %p442 = scmp.lt.s32.totalorder %s25, 1
          %s443 = scalar_select %p442, %s25, 1
          %s444 = scalar_lea.vmem %s8, %s443
        $region60: #{tpu_custom_call.1} parent=43 // pred_fallthru
          _
      $region44: #{tpu_custom_call.1} parent=5 // pred_fallthru
        _
      %p445 = scmp.le.s32.totalorder 1, %s25
      %p446 = scmp.lt.s32.totalorder %s25, 3
      %p447 = pnand %p445, %p446
      %p448 = pneg %p447
      // Predicated region
      $region61: #{tpu_custom_call.1} parent=5 // pred_check
        _
      $region62: #{tpu_custom_call.1} parent=5 // pred_check_branch
        %450 = sbr.rel (%p447) target = $region64
      $region63: #{tpu_custom_call.1} parent=5 // pred_region
        %s451 = ssub.s32 %s25, 1
        // Predicated region
        $region65: #{tpu_custom_call.1} parent=63 // pred_check
          %p452 = pneg %p46
        $region66: #{tpu_custom_call.1} parent=63 // pred_check_branch
          %454 = sbr.rel (%p452) target = $region68
        $region67: #{tpu_custom_call.1} parent=63 // pred_region
          %455 = dma.done [#allocation4], 4096
        $region68: #{tpu_custom_call.1} parent=63 // pred_fallthru
          _
        // Predicated region
        $region69: #{tpu_custom_call.1} parent=63 // pred_check
          %p456 = pneg %p67
        $region70: #{tpu_custom_call.1} parent=63 // pred_check_branch
          %458 = sbr.rel (%p456) target = $region72
        $region71: #{tpu_custom_call.1} parent=63 // pred_region
          %459 = dma.done [#allocation7], 32768
        $region72: #{tpu_custom_call.1} parent=63 // pred_fallthru
          _
        %s460 = sand.u32 %s30, 1
        %s461 = scalar_lea.sflag [#allocation4], %s460
        %s462 = sand.u32 %s143, 1
        %s463 = smul.addr %s462, 64
        %s464 = scalar_lea.vmem [#allocation8], %s463
        // Predicated region
        $region73: #{tpu_custom_call.1} parent=63 // pred_check
          %p465 = pneg %p156
        $region74: #{tpu_custom_call.1} parent=63 // pred_check_branch
          %467 = sbr.rel (%p465) target = $region76
        $region75: #{tpu_custom_call.1} parent=63 // pred_region
          %468 = dma.done %s461, 1024
        $region76: #{tpu_custom_call.1} parent=63 // pred_fallthru
          _
        %s469 = sand.u32 %s30, 1
        %s470 = scalar_lea.sflag [#allocation4], %s469
        %s471 = sand.u32 %s195, 1
        %s472 = smul.addr %s471, 64
        %s473 = scalar_lea.vmem [#allocation9], %s472
        // Predicated region
        $region77: #{tpu_custom_call.1} parent=63 // pred_check
          %p474 = pneg %p208
        $region78: #{tpu_custom_call.1} parent=63 // pred_check_branch
          %476 = sbr.rel (%p474) target = $region80
        $region79: #{tpu_custom_call.1} parent=63 // pred_region
          %477 = dma.done %s470, 1024
        $region80: #{tpu_custom_call.1} parent=63 // pred_fallthru
          _
        // Predicated region
        $region81: #{tpu_custom_call.1} parent=63 // pred_check
          %p478 = pneg %p255
        $region82: #{tpu_custom_call.1} parent=63 // pred_check_branch
          %480 = sbr.rel (%p478) target = $region84
        $region83: #{tpu_custom_call.1} parent=63 // pred_region
          %481 = dma.done [#allocation7], 1024
        $region84: #{tpu_custom_call.1} parent=63 // pred_fallthru
          _
        %p482 = pneg %p46
        %p483 = pneg %p43
        %p484 = pneg %p67
        %p485 = pneg %p64
        %p486 = pneg %p88
        %p487 = pneg %p85
        %p488 = pneg %p109
        %p489 = pneg %p106
        %p490 = pneg %p130
        %p491 = pneg %p127
        %s492 = sand.u32 %s30, 1
        %s493 = scalar_lea.sflag [#allocation4], %s492
        %s494 = sand.u32 %s143, 1
        %s495 = smul.addr %s494, 64
        %s496 = scalar_lea.vmem [#allocation8], %s495
        %p497 = pneg %p156
        %p498 = pneg %p153
        %p499 = scmp.lt.s32.totalorder %s30, 1
        %s500 = scalar_select %p499, %s30, 1
        %s501 = scalar_lea.vmem %s6, %s500
        %p502 = pneg %p182
        %p503 = pneg %p179
        %s504 = sand.u32 %s30, 1
        %s505 = scalar_lea.sflag [#allocation4], %s504
        %s506 = sand.u32 %s195, 1
        %s507 = smul.addr %s506, 64
        %s508 = scalar_lea.vmem [#allocation9], %s507
        %p509 = pneg %p208
        %p510 = pneg %p205
        %p511 = scmp.lt.s32.totalorder %s30, 1
        %s512 = scalar_select %p511, %s30, 1
        %s513 = scalar_lea.vmem %s8, %s512
        %p514 = pneg %p234
        %p515 = pneg %p231
        %p516 = pneg %p255
        %p517 = pneg %p252
        %p518 = pneg %p276
        %p519 = pneg %p273
        %p520 = pneg %p297
        %p521 = pneg %p294
        %p522 = pneg %p323
        %p523 = pneg %p320
        %s524 = sand.u32 %s310, 1
        %s525 = scalar_lea.sflag [#allocation13], %s524
        %s526 = sand.u32 %s310, 1
        %s527 = smul.addr %s526, 8
        %s528 = scalar_lea.vmem [#allocation12], %s527
        %p529 = scmp.lt.s32.totalorder %s30, 1
        %s530 = scalar_select %p529, %s30, 1
        %s531 = scalar_lea.vmem %s6, %s530
        %p532 = scmp.lt.s32.totalorder %s30, 1
        %s533 = scalar_select %p532, %s30, 1
        %s534 = scalar_lea.vmem %s8, %s533
        %p536 = scmp.eq.s32.totalorder %s30, 0
        // Predicated region
        $region85: #{tpu_custom_call.1} parent=63 // pred_check
          %p537 = pneg %p536
        $region86: #{tpu_custom_call.1} parent=63 // pred_check_branch
          %539 = sbr.rel (%p537) target = $region88
        $region87: #{tpu_custom_call.1} parent=63 // pred_region
          %v540 = vld [vmem:[#allocation3] sm:$0xff]
          %v541 = vld [vmem:[#allocation3 + $0x8] sm:$0xff]
          %v542 = vld [vmem:[#allocation3 + $0x10] sm:$0xff]
          %v543 = vld [vmem:[#allocation3 + $0x18] sm:$0xff]
          %v544 = vld [vmem:[#allocation3 + $0x20] sm:$0xff]
          %v545 = vld [vmem:[#allocation3 + $0x28] sm:$0xff]
          %v546 = vld [vmem:[#allocation3 + $0x30] sm:$0xff]
          %v547 = vld [vmem:[#allocation3 + $0x38] sm:$0xff]
          %v548 = vld [vmem:[#allocation3 + $0x40] sm:$0xff]
          %v549 = vld [vmem:[#allocation3 + $0x48] sm:$0xff]
          %v550 = vld [vmem:[#allocation3 + $0x50] sm:$0xff]
          %v551 = vld [vmem:[#allocation3 + $0x58] sm:$0xff]
          %v552 = vld [vmem:[#allocation3 + $0x60] sm:$0xff]
          %v553 = vld [vmem:[#allocation3 + $0x68] sm:$0xff]
          %v554 = vld [vmem:[#allocation3 + $0x70] sm:$0xff]
          %v555 = vld [vmem:[#allocation3 + $0x78] sm:$0xff]
          %v556 = vld [vmem:[#allocation3 + $0x80] sm:$0xff]
          %v557 = vld [vmem:[#allocation3 + $0x88] sm:$0xff]
          %v558 = vld [vmem:[#allocation3 + $0x90] sm:$0xff]
          %v559 = vld [vmem:[#allocation3 + $0x98] sm:$0xff]
          %v560 = vld [vmem:[#allocation3 + $0xa0] sm:$0xff]
          %v561 = vld [vmem:[#allocation3 + $0xa8] sm:$0xff]
          %v562 = vld [vmem:[#allocation3 + $0xb0] sm:$0xff]
          %v563 = vld [vmem:[#allocation3 + $0xb8] sm:$0xff]
          %v564 = vld [vmem:[#allocation3 + $0xc0] sm:$0xff]
          %v565 = vld [vmem:[#allocation3 + $0xc8] sm:$0xff]
          %v566 = vld [vmem:[#allocation3 + $0xd0] sm:$0xff]
          %v567 = vld [vmem:[#allocation3 + $0xd8] sm:$0xff]
          %v568 = vld [vmem:[#allocation3 + $0xe0] sm:$0xff]
          %v569 = vld [vmem:[#allocation3 + $0xe8] sm:$0xff]
          %v570 = vld [vmem:[#allocation3 + $0xf0] sm:$0xff]
          %v571 = vld [vmem:[#allocation3 + $0xf8] sm:$0xff]
          %v572 = vpack.c.bf16 %v540, %v540
          %v573 = vpack.c.bf16 %v541, %v541
          %v574 = vpack.c.bf16 %v542, %v542
          %v575 = vpack.c.bf16 %v543, %v543
          %v576 = vpack.c.bf16 %v544, %v544
          %v577 = vpack.c.bf16 %v545, %v545
          %v578 = vpack.c.bf16 %v546, %v546
          %v579 = vpack.c.bf16 %v547, %v547
          %v580 = vpack.c.bf16 %v548, %v548
          %v581 = vpack.c.bf16 %v549, %v549
          %v582 = vpack.c.bf16 %v550, %v550
          %v583 = vpack.c.bf16 %v551, %v551
          %v584 = vpack.c.bf16 %v552, %v552
          %v585 = vpack.c.bf16 %v553, %v553
          %v586 = vpack.c.bf16 %v554, %v554
          %v587 = vpack.c.bf16 %v555, %v555
          %v588 = vpack.c.bf16 %v556, %v556
          %v589 = vpack.c.bf16 %v557, %v557
          %v590 = vpack.c.bf16 %v558, %v558
          %v591 = vpack.c.bf16 %v559, %v559
          %v592 = vpack.c.bf16 %v560, %v560
          %v593 = vpack.c.bf16 %v561, %v561
          %v594 = vpack.c.bf16 %v562, %v562
          %v595 = vpack.c.bf16 %v563, %v563
          %v596 = vpack.c.bf16 %v564, %v564
          %v597 = vpack.c.bf16 %v565, %v565
          %v598 = vpack.c.bf16 %v566, %v566
          %v599 = vpack.c.bf16 %v567, %v567
          %v600 = vpack.c.bf16 %v568, %v568
          %v601 = vpack.c.bf16 %v569, %v569
          %v602 = vpack.c.bf16 %v570, %v570
          %v603 = vpack.c.bf16 %v571, %v571
          %v604 = vld [vmem:[#allocation6] sm:$0xf]
          %v605 = vld [vmem:[#allocation6 + $0x4] sm:$0xf]
          %v606 = vld [vmem:[#allocation6 + $0x8] sm:$0xf]
          %v607 = vld [vmem:[#allocation6 + $0xc] sm:$0xf]
          %v608 = vld [vmem:[#allocation6 + $0x10] sm:$0xf]
          %v609 = vld [vmem:[#allocation6 + $0x14] sm:$0xf]
          %v610 = vld [vmem:[#allocation6 + $0x18] sm:$0xf]
          %v611 = vld [vmem:[#allocation6 + $0x1c] sm:$0xf]
          %v612 = vld [vmem:[#allocation6 + $0x20] sm:$0xf]
          %v613 = vld [vmem:[#allocation6 + $0x24] sm:$0xf]
          %v614 = vld [vmem:[#allocation6 + $0x28] sm:$0xf]
          %v615 = vld [vmem:[#allocation6 + $0x2c] sm:$0xf]
          %v616 = vld [vmem:[#allocation6 + $0x30] sm:$0xf]
          %v617 = vld [vmem:[#allocation6 + $0x34] sm:$0xf]
          %v618 = vld [vmem:[#allocation6 + $0x38] sm:$0xf]
          %v619 = vld [vmem:[#allocation6 + $0x3c] sm:$0xf]
          %v620 = vld [vmem:[#allocation6 + $0x40] sm:$0xf]
          %v621 = vld [vmem:[#allocation6 + $0x44] sm:$0xf]
          %v622 = vld [vmem:[#allocation6 + $0x48] sm:$0xf]
          %v623 = vld [vmem:[#allocation6 + $0x4c] sm:$0xf]
          %v624 = vld [vmem:[#allocation6 + $0x50] sm:$0xf]
          %v625 = vld [vmem:[#allocation6 + $0x54] sm:$0xf]
          %v626 = vld [vmem:[#allocation6 + $0x58] sm:$0xf]
          %v627 = vld [vmem:[#allocation6 + $0x5c] sm:$0xf]
          %v628 = vld [vmem:[#allocation6 + $0x60] sm:$0xf]
          %v629 = vld [vmem:[#allocation6 + $0x64] sm:$0xf]
          %v630 = vld [vmem:[#allocation6 + $0x68] sm:$0xf]
          %v631 = vld [vmem:[#allocation6 + $0x6c] sm:$0xf]
          %v632 = vld [vmem:[#allocation6 + $0x70] sm:$0xf]
          %v633 = vld [vmem:[#allocation6 + $0x74] sm:$0xf]
          %v634 = vld [vmem:[#allocation6 + $0x78] sm:$0xf]
          %v635 = vld [vmem:[#allocation6 + $0x7c] sm:$0xf]
          %v636 = vld [vmem:[#allocation6 + $0x80] sm:$0xf]
          %v637 = vld [vmem:[#allocation6 + $0x84] sm:$0xf]
          %v638 = vld [vmem:[#allocation6 + $0x88] sm:$0xf]
          %v639 = vld [vmem:[#allocation6 + $0x8c] sm:$0xf]
          %v640 = vld [vmem:[#allocation6 + $0x90] sm:$0xf]
          %v641 = vld [vmem:[#allocation6 + $0x94] sm:$0xf]
          %v642 = vld [vmem:[#allocation6 + $0x98] sm:$0xf]
          %v643 = vld [vmem:[#allocation6 + $0x9c] sm:$0xf]
          %v644 = vld [vmem:[#allocation6 + $0xa0] sm:$0xf]
          %v645 = vld [vmem:[#allocation6 + $0xa4] sm:$0xf]
          %v646 = vld [vmem:[#allocation6 + $0xa8] sm:$0xf]
          %v647 = vld [vmem:[#allocation6 + $0xac] sm:$0xf]
          %v648 = vld [vmem:[#allocation6 + $0xb0] sm:$0xf]
          %v649 = vld [vmem:[#allocation6 + $0xb4] sm:$0xf]
          %v650 = vld [vmem:[#allocation6 + $0xb8] sm:$0xf]
          %v651 = vld [vmem:[#allocation6 + $0xbc] sm:$0xf]
          %v652 = vld [vmem:[#allocation6 + $0xc0] sm:$0xf]
          %v653 = vld [vmem:[#allocation6 + $0xc4] sm:$0xf]
          %v654 = vld [vmem:[#allocation6 + $0xc8] sm:$0xf]
          %v655 = vld [vmem:[#allocation6 + $0xcc] sm:$0xf]
          %v656 = vld [vmem:[#allocation6 + $0xd0] sm:$0xf]
          %v657 = vld [vmem:[#allocation6 + $0xd4] sm:$0xf]
          %v658 = vld [vmem:[#allocation6 + $0xd8] sm:$0xf]
          %v659 = vld [vmem:[#allocation6 + $0xdc] sm:$0xf]
          %v660 = vld [vmem:[#allocation6 + $0xe0] sm:$0xf]
          %v661 = vld [vmem:[#allocation6 + $0xe4] sm:$0xf]
          %v662 = vld [vmem:[#allocation6 + $0xe8] sm:$0xf]
          %v663 = vld [vmem:[#allocation6 + $0xec] sm:$0xf]
          %v664 = vld [vmem:[#allocation6 + $0xf0] sm:$0xf]
          %v665 = vld [vmem:[#allocation6 + $0xf4] sm:$0xf]
          %v666 = vld [vmem:[#allocation6 + $0xf8] sm:$0xf]
          %v667 = vld [vmem:[#allocation6 + $0xfc] sm:$0xf]
          %v668 = vld [vmem:[#allocation6 + $0x100] sm:$0xf]
          %v669 = vld [vmem:[#allocation6 + $0x104] sm:$0xf]
          %v670 = vld [vmem:[#allocation6 + $0x108] sm:$0xf]
          %v671 = vld [vmem:[#allocation6 + $0x10c] sm:$0xf]
          %v672 = vld [vmem:[#allocation6 + $0x110] sm:$0xf]
          %v673 = vld [vmem:[#allocation6 + $0x114] sm:$0xf]
          %v674 = vld [vmem:[#allocation6 + $0x118] sm:$0xf]
          %v675 = vld [vmem:[#allocation6 + $0x11c] sm:$0xf]
          %v676 = vld [vmem:[#allocation6 + $0x120] sm:$0xf]
          %v677 = vld [vmem:[#allocation6 + $0x124] sm:$0xf]
          %v678 = vld [vmem:[#allocation6 + $0x128] sm:$0xf]
          %v679 = vld [vmem:[#allocation6 + $0x12c] sm:$0xf]
          %v680 = vld [vmem:[#allocation6 + $0x130] sm:$0xf]
          %v681 = vld [vmem:[#allocation6 + $0x134] sm:$0xf]
          %v682 = vld [vmem:[#allocation6 + $0x138] sm:$0xf]
          %v683 = vld [vmem:[#allocation6 + $0x13c] sm:$0xf]
          %v684 = vld [vmem:[#allocation6 + $0x140] sm:$0xf]
          %v685 = vld [vmem:[#allocation6 + $0x144] sm:$0xf]
          %v686 = vld [vmem:[#allocation6 + $0x148] sm:$0xf]
          %v687 = vld [vmem:[#allocation6 + $0x14c] sm:$0xf]
          %v688 = vld [vmem:[#allocation6 + $0x150] sm:$0xf]
          %v689 = vld [vmem:[#allocation6 + $0x154] sm:$0xf]
          %v690 = vld [vmem:[#allocation6 + $0x158] sm:$0xf]
          %v691 = vld [vmem:[#allocation6 + $0x15c] sm:$0xf]
          %v692 = vld [vmem:[#allocation6 + $0x160] sm:$0xf]
          %v693 = vld [vmem:[#allocation6 + $0x164] sm:$0xf]
          %v694 = vld [vmem:[#allocation6 + $0x168] sm:$0xf]
          %v695 = vld [vmem:[#allocation6 + $0x16c] sm:$0xf]
          %v696 = vld [vmem:[#allocation6 + $0x170] sm:$0xf]
          %v697 = vld [vmem:[#allocation6 + $0x174] sm:$0xf]
          %v698 = vld [vmem:[#allocation6 + $0x178] sm:$0xf]
          %v699 = vld [vmem:[#allocation6 + $0x17c] sm:$0xf]
          %v700 = vld [vmem:[#allocation6 + $0x180] sm:$0xf]
          %v701 = vld [vmem:[#allocation6 + $0x184] sm:$0xf]
          %v702 = vld [vmem:[#allocation6 + $0x188] sm:$0xf]
          %v703 = vld [vmem:[#allocation6 + $0x18c] sm:$0xf]
          %v704 = vld [vmem:[#allocation6 + $0x190] sm:$0xf]
          %v705 = vld [vmem:[#allocation6 + $0x194] sm:$0xf]
          %v706 = vld [vmem:[#allocation6 + $0x198] sm:$0xf]
          %v707 = vld [vmem:[#allocation6 + $0x19c] sm:$0xf]
          %v708 = vld [vmem:[#allocation6 + $0x1a0] sm:$0xf]
          %v709 = vld [vmem:[#allocation6 + $0x1a4] sm:$0xf]
          %v710 = vld [vmem:[#allocation6 + $0x1a8] sm:$0xf]
          %v711 = vld [vmem:[#allocation6 + $0x1ac] sm:$0xf]
          %v712 = vld [vmem:[#allocation6 + $0x1b0] sm:$0xf]
          %v713 = vld [vmem:[#allocation6 + $0x1b4] sm:$0xf]
          %v714 = vld [vmem:[#allocation6 + $0x1b8] sm:$0xf]
          %v715 = vld [vmem:[#allocation6 + $0x1bc] sm:$0xf]
          %v716 = vld [vmem:[#allocation6 + $0x1c0] sm:$0xf]
          %v717 = vld [vmem:[#allocation6 + $0x1c4] sm:$0xf]
          %v718 = vld [vmem:[#allocation6 + $0x1c8] sm:$0xf]
          %v719 = vld [vmem:[#allocation6 + $0x1cc] sm:$0xf]
          %v720 = vld [vmem:[#allocation6 + $0x1d0] sm:$0xf]
          %v721 = vld [vmem:[#allocation6 + $0x1d4] sm:$0xf]
          %v722 = vld [vmem:[#allocation6 + $0x1d8] sm:$0xf]
          %v723 = vld [vmem:[#allocation6 + $0x1dc] sm:$0xf]
          %v724 = vld [vmem:[#allocation6 + $0x1e0] sm:$0xf]
          %v725 = vld [vmem:[#allocation6 + $0x1e4] sm:$0xf]
          %v726 = vld [vmem:[#allocation6 + $0x1e8] sm:$0xf]
          %v727 = vld [vmem:[#allocation6 + $0x1ec] sm:$0xf]
          %v728 = vld [vmem:[#allocation6 + $0x1f0] sm:$0xf]
          %v729 = vld [vmem:[#allocation6 + $0x1f4] sm:$0xf]
          %v730 = vld [vmem:[#allocation6 + $0x1f8] sm:$0xf]
          %v731 = vld [vmem:[#allocation6 + $0x1fc] sm:$0xf]
          %v732 = vld [vmem:[#allocation6 + $0x200] sm:$0xf]
          %v733 = vld [vmem:[#allocation6 + $0x204] sm:$0xf]
          %v734 = vld [vmem:[#allocation6 + $0x208] sm:$0xf]
          %v735 = vld [vmem:[#allocation6 + $0x20c] sm:$0xf]
          %v736 = vld [vmem:[#allocation6 + $0x210] sm:$0xf]
          %v737 = vld [vmem:[#allocation6 + $0x214] sm:$0xf]
          %v738 = vld [vmem:[#allocation6 + $0x218] sm:$0xf]
          %v739 = vld [vmem:[#allocation6 + $0x21c] sm:$0xf]
          %v740 = vld [vmem:[#allocation6 + $0x220] sm:$0xf]
          %v741 = vld [vmem:[#allocation6 + $0x224] sm:$0xf]
          %v742 = vld [vmem:[#allocation6 + $0x228] sm:$0xf]
          %v743 = vld [vmem:[#allocation6 + $0x22c] sm:$0xf]
          %v744 = vld [vmem:[#allocation6 + $0x230] sm:$0xf]
          %v745 = vld [vmem:[#allocation6 + $0x234] sm:$0xf]
          %v746 = vld [vmem:[#allocation6 + $0x238] sm:$0xf]
          %v747 = vld [vmem:[#allocation6 + $0x23c] sm:$0xf]
          %v748 = vld [vmem:[#allocation6 + $0x240] sm:$0xf]
          %v749 = vld [vmem:[#allocation6 + $0x244] sm:$0xf]
          %v750 = vld [vmem:[#allocation6 + $0x248] sm:$0xf]
          %v751 = vld [vmem:[#allocation6 + $0x24c] sm:$0xf]
          %v752 = vld [vmem:[#allocation6 + $0x250] sm:$0xf]
          %v753 = vld [vmem:[#allocation6 + $0x254] sm:$0xf]
          %v754 = vld [vmem:[#allocation6 + $0x258] sm:$0xf]
          %v755 = vld [vmem:[#allocation6 + $0x25c] sm:$0xf]
          %v756 = vld [vmem:[#allocation6 + $0x260] sm:$0xf]
          %v757 = vld [vmem:[#allocation6 + $0x264] sm:$0xf]
          %v758 = vld [vmem:[#allocation6 + $0x268] sm:$0xf]
          %v759 = vld [vmem:[#allocation6 + $0x26c] sm:$0xf]
          %v760 = vld [vmem:[#allocation6 + $0x270] sm:$0xf]
          %v761 = vld [vmem:[#allocation6 + $0x274] sm:$0xf]
          %v762 = vld [vmem:[#allocation6 + $0x278] sm:$0xf]
          %v763 = vld [vmem:[#allocation6 + $0x27c] sm:$0xf]
          %v764 = vld [vmem:[#allocation6 + $0x280] sm:$0xf]
          %v765 = vld [vmem:[#allocation6 + $0x284] sm:$0xf]
          %v766 = vld [vmem:[#allocation6 + $0x288] sm:$0xf]
          %v767 = vld [vmem:[#allocation6 + $0x28c] sm:$0xf]
          %v768 = vld [vmem:[#allocation6 + $0x290] sm:$0xf]
          %v769 = vld [vmem:[#allocation6 + $0x294] sm:$0xf]
          %v770 = vld [vmem:[#allocation6 + $0x298] sm:$0xf]
          %v771 = vld [vmem:[#allocation6 + $0x29c] sm:$0xf]
          %v772 = vld [vmem:[#allocation6 + $0x2a0] sm:$0xf]
          %v773 = vld [vmem:[#allocation6 + $0x2a4] sm:$0xf]
          %v774 = vld [vmem:[#allocation6 + $0x2a8] sm:$0xf]
          %v775 = vld [vmem:[#allocation6 + $0x2ac] sm:$0xf]
          %v776 = vld [vmem:[#allocation6 + $0x2b0] sm:$0xf]
          %v777 = vld [vmem:[#allocation6 + $0x2b4] sm:$0xf]
          %v778 = vld [vmem:[#allocation6 + $0x2b8] sm:$0xf]
          %v779 = vld [vmem:[#allocation6 + $0x2bc] sm:$0xf]
          %v780 = vld [vmem:[#allocation6 + $0x2c0] sm:$0xf]
          %v781 = vld [vmem:[#allocation6 + $0x2c4] sm:$0xf]
          %v782 = vld [vmem:[#allocation6 + $0x2c8] sm:$0xf]
          %v783 = vld [vmem:[#allocation6 + $0x2cc] sm:$0xf]
          %v784 = vld [vmem:[#allocation6 + $0x2d0] sm:$0xf]
          %v785 = vld [vmem:[#allocation6 + $0x2d4] sm:$0xf]
          %v786 = vld [vmem:[#allocation6 + $0x2d8] sm:$0xf]
          %v787 = vld [vmem:[#allocation6 + $0x2dc] sm:$0xf]
          %v788 = vld [vmem:[#allocation6 + $0x2e0] sm:$0xf]
          %v789 = vld [vmem:[#allocation6 + $0x2e4] sm:$0xf]
          %v790 = vld [vmem:[#allocation6 + $0x2e8] sm:$0xf]
          %v791 = vld [vmem:[#allocation6 + $0x2ec] sm:$0xf]
          %v792 = vld [vmem:[#allocation6 + $0x2f0] sm:$0xf]
          %v793 = vld [vmem:[#allocation6 + $0x2f4] sm:$0xf]
          %v794 = vld [vmem:[#allocation6 + $0x2f8] sm:$0xf]
          %v795 = vld [vmem:[#allocation6 + $0x2fc] sm:$0xf]
          %v796 = vld [vmem:[#allocation6 + $0x300] sm:$0xf]
          %v797 = vld [vmem:[#allocation6 + $0x304] sm:$0xf]
          %v798 = vld [vmem:[#allocation6 + $0x308] sm:$0xf]
          %v799 = vld [vmem:[#allocation6 + $0x30c] sm:$0xf]
          %v800 = vld [vmem:[#allocation6 + $0x310] sm:$0xf]
          %v801 = vld [vmem:[#allocation6 + $0x314] sm:$0xf]
          %v802 = vld [vmem:[#allocation6 + $0x318] sm:$0xf]
          %v803 = vld [vmem:[#allocation6 + $0x31c] sm:$0xf]
          %v804 = vld [vmem:[#allocation6 + $0x320] sm:$0xf]
          %v805 = vld [vmem:[#allocation6 + $0x324] sm:$0xf]
          %v806 = vld [vmem:[#allocation6 + $0x328] sm:$0xf]
          %v807 = vld [vmem:[#allocation6 + $0x32c] sm:$0xf]
          %v808 = vld [vmem:[#allocation6 + $0x330] sm:$0xf]
          %v809 = vld [vmem:[#allocation6 + $0x334] sm:$0xf]
          %v810 = vld [vmem:[#allocation6 + $0x338] sm:$0xf]
          %v811 = vld [vmem:[#allocation6 + $0x33c] sm:$0xf]
          %v812 = vld [vmem:[#allocation6 + $0x340] sm:$0xf]
          %v813 = vld [vmem:[#allocation6 + $0x344] sm:$0xf]
          %v814 = vld [vmem:[#allocation6 + $0x348] sm:$0xf]
          %v815 = vld [vmem:[#allocation6 + $0x34c] sm:$0xf]
          %v816 = vld [vmem:[#allocation6 + $0x350] sm:$0xf]
          %v817 = vld [vmem:[#allocation6 + $0x354] sm:$0xf]
          %v818 = vld [vmem:[#allocation6 + $0x358] sm:$0xf]
          %v819 = vld [vmem:[#allocation6 + $0x35c] sm:$0xf]
          %v820 = vld [vmem:[#allocation6 + $0x360] sm:$0xf]
          %v821 = vld [vmem:[#allocation6 + $0x364] sm:$0xf]
          %v822 = vld [vmem:[#allocation6 + $0x368] sm:$0xf]
          %v823 = vld [vmem:[#allocation6 + $0x36c] sm:$0xf]
          %v824 = vld [vmem:[#allocation6 + $0x370] sm:$0xf]
          %v825 = vld [vmem:[#allocation6 + $0x374] sm:$0xf]
          %v826 = vld [vmem:[#allocation6 + $0x378] sm:$0xf]
          %v827 = vld [vmem:[#allocation6 + $0x37c] sm:$0xf]
          %v828 = vld [vmem:[#allocation6 + $0x380] sm:$0xf]
          %v829 = vld [vmem:[#allocation6 + $0x384] sm:$0xf]
          %v830 = vld [vmem:[#allocation6 + $0x388] sm:$0xf]
          %v831 = vld [vmem:[#allocation6 + $0x38c] sm:$0xf]
          %v832 = vld [vmem:[#allocation6 + $0x390] sm:$0xf]
          %v833 = vld [vmem:[#allocation6 + $0x394] sm:$0xf]
          %v834 = vld [vmem:[#allocation6 + $0x398] sm:$0xf]
          %v835 = vld [vmem:[#allocation6 + $0x39c] sm:$0xf]
          %v836 = vld [vmem:[#allocation6 + $0x3a0] sm:$0xf]
          %v837 = vld [vmem:[#allocation6 + $0x3a4] sm:$0xf]
          %v838 = vld [vmem:[#allocation6 + $0x3a8] sm:$0xf]
          %v839 = vld [vmem:[#allocation6 + $0x3ac] sm:$0xf]
          %v840 = vld [vmem:[#allocation6 + $0x3b0] sm:$0xf]
          %v841 = vld [vmem:[#allocation6 + $0x3b4] sm:$0xf]
          %v842 = vld [vmem:[#allocation6 + $0x3b8] sm:$0xf]
          %v843 = vld [vmem:[#allocation6 + $0x3bc] sm:$0xf]
          %v844 = vld [vmem:[#allocation6 + $0x3c0] sm:$0xf]
          %v845 = vld [vmem:[#allocation6 + $0x3c4] sm:$0xf]
          %v846 = vld [vmem:[#allocation6 + $0x3c8] sm:$0xf]
          %v847 = vld [vmem:[#allocation6 + $0x3cc] sm:$0xf]
          %v848 = vld [vmem:[#allocation6 + $0x3d0] sm:$0xf]
          %v849 = vld [vmem:[#allocation6 + $0x3d4] sm:$0xf]
          %v850 = vld [vmem:[#allocation6 + $0x3d8] sm:$0xf]
          %v851 = vld [vmem:[#allocation6 + $0x3dc] sm:$0xf]
          %v852 = vld [vmem:[#allocation6 + $0x3e0] sm:$0xf]
          %v853 = vld [vmem:[#allocation6 + $0x3e4] sm:$0xf]
          %v854 = vld [vmem:[#allocation6 + $0x3e8] sm:$0xf]
          %v855 = vld [vmem:[#allocation6 + $0x3ec] sm:$0xf]
          %v856 = vld [vmem:[#allocation6 + $0x3f0] sm:$0xf]
          %v857 = vld [vmem:[#allocation6 + $0x3f4] sm:$0xf]
          %v858 = vld [vmem:[#allocation6 + $0x3f8] sm:$0xf]
          %v859 = vld [vmem:[#allocation6 + $0x3fc] sm:$0xf]
          %v860 = vld [vmem:[#allocation6 + $0x400] sm:$0xf]
          %v861 = vld [vmem:[#allocation6 + $0x404] sm:$0xf]
          %v862 = vld [vmem:[#allocation6 + $0x408] sm:$0xf]
          %v863 = vld [vmem:[#allocation6 + $0x40c] sm:$0xf]
          %v864 = vld [vmem:[#allocation6 + $0x410] sm:$0xf]
          %v865 = vld [vmem:[#allocation6 + $0x414] sm:$0xf]
          %v866 = vld [vmem:[#allocation6 + $0x418] sm:$0xf]
          %v867 = vld [vmem:[#allocation6 + $0x41c] sm:$0xf]
          %v868 = vld [vmem:[#allocation6 + $0x420] sm:$0xf]
          %v869 = vld [vmem:[#allocation6 + $0x424] sm:$0xf]
          %v870 = vld [vmem:[#allocation6 + $0x428] sm:$0xf]
          %v871 = vld [vmem:[#allocation6 + $0x42c] sm:$0xf]
          %v872 = vld [vmem:[#allocation6 + $0x430] sm:$0xf]
          %v873 = vld [vmem:[#allocation6 + $0x434] sm:$0xf]
          %v874 = vld [vmem:[#allocation6 + $0x438] sm:$0xf]
          %v875 = vld [vmem:[#allocation6 + $0x43c] sm:$0xf]
          %v876 = vld [vmem:[#allocation6 + $0x440] sm:$0xf]
          %v877 = vld [vmem:[#allocation6 + $0x444] sm:$0xf]
          %v878 = vld [vmem:[#allocation6 + $0x448] sm:$0xf]
          %v879 = vld [vmem:[#allocation6 + $0x44c] sm:$0xf]
          %v880 = vld [vmem:[#allocation6 + $0x450] sm:$0xf]
          %v881 = vld [vmem:[#allocation6 + $0x454] sm:$0xf]
          %v882 = vld [vmem:[#allocation6 + $0x458] sm:$0xf]
          %v883 = vld [vmem:[#allocation6 + $0x45c] sm:$0xf]
          %v884 = vld [vmem:[#allocation6 + $0x460] sm:$0xf]
          %v885 = vld [vmem:[#allocation6 + $0x464] sm:$0xf]
          %v886 = vld [vmem:[#allocation6 + $0x468] sm:$0xf]
          %v887 = vld [vmem:[#allocation6 + $0x46c] sm:$0xf]
          %v888 = vld [vmem:[#allocation6 + $0x470] sm:$0xf]
          %v889 = vld [vmem:[#allocation6 + $0x474] sm:$0xf]
          %v890 = vld [vmem:[#allocation6 + $0x478] sm:$0xf]
          %v891 = vld [vmem:[#allocation6 + $0x47c] sm:$0xf]
          %v892 = vld [vmem:[#allocation6 + $0x480] sm:$0xf]
          %v893 = vld [vmem:[#allocation6 + $0x484] sm:$0xf]
          %v894 = vld [vmem:[#allocation6 + $0x488] sm:$0xf]
          %v895 = vld [vmem:[#allocation6 + $0x48c] sm:$0xf]
          %v896 = vld [vmem:[#allocation6 + $0x490] sm:$0xf]
          %v897 = vld [vmem:[#allocation6 + $0x494] sm:$0xf]
          %v898 = vld [vmem:[#allocation6 + $0x498] sm:$0xf]
          %v899 = vld [vmem:[#allocation6 + $0x49c] sm:$0xf]
          %v900 = vld [vmem:[#allocation6 + $0x4a0] sm:$0xf]
          %v901 = vld [vmem:[#allocation6 + $0x4a4] sm:$0xf]
          %v902 = vld [vmem:[#allocation6 + $0x4a8] sm:$0xf]
          %v903 = vld [vmem:[#allocation6 + $0x4ac] sm:$0xf]
          %v904 = vld [vmem:[#allocation6 + $0x4b0] sm:$0xf]
          %v905 = vld [vmem:[#allocation6 + $0x4b4] sm:$0xf]
          %v906 = vld [vmem:[#allocation6 + $0x4b8] sm:$0xf]
          %v907 = vld [vmem:[#allocation6 + $0x4bc] sm:$0xf]
          %v908 = vld [vmem:[#allocation6 + $0x4c0] sm:$0xf]
          %v909 = vld [vmem:[#allocation6 + $0x4c4] sm:$0xf]
          %v910 = vld [vmem:[#allocation6 + $0x4c8] sm:$0xf]
          %v911 = vld [vmem:[#allocation6 + $0x4cc] sm:$0xf]
          %v912 = vld [vmem:[#allocation6 + $0x4d0] sm:$0xf]
          %v913 = vld [vmem:[#allocation6 + $0x4d4] sm:$0xf]
          %v914 = vld [vmem:[#allocation6 + $0x4d8] sm:$0xf]
          %v915 = vld [vmem:[#allocation6 + $0x4dc] sm:$0xf]
          %v916 = vld [vmem:[#allocation6 + $0x4e0] sm:$0xf]
          %v917 = vld [vmem:[#allocation6 + $0x4e4] sm:$0xf]
          %v918 = vld [vmem:[#allocation6 + $0x4e8] sm:$0xf]
          %v919 = vld [vmem:[#allocation6 + $0x4ec] sm:$0xf]
          %v920 = vld [vmem:[#allocation6 + $0x4f0] sm:$0xf]
          %v921 = vld [vmem:[#allocation6 + $0x4f4] sm:$0xf]
          %v922 = vld [vmem:[#allocation6 + $0x4f8] sm:$0xf]
          %v923 = vld [vmem:[#allocation6 + $0x4fc] sm:$0xf]
          %v924 = vld [vmem:[#allocation6 + $0x500] sm:$0xf]
          %v925 = vld [vmem:[#allocation6 + $0x504] sm:$0xf]
          %v926 = vld [vmem:[#allocation6 + $0x508] sm:$0xf]
          %v927 = vld [vmem:[#allocation6 + $0x50c] sm:$0xf]
          %v928 = vld [vmem:[#allocation6 + $0x510] sm:$0xf]
          %v929 = vld [vmem:[#allocation6 + $0x514] sm:$0xf]
          %v930 = vld [vmem:[#allocation6 + $0x518] sm:$0xf]
          %v931 = vld [vmem:[#allocation6 + $0x51c] sm:$0xf]
          %v932 = vld [vmem:[#allocation6 + $0x520] sm:$0xf]
          %v933 = vld [vmem:[#allocation6 + $0x524] sm:$0xf]
          %v934 = vld [vmem:[#allocation6 + $0x528] sm:$0xf]
          %v935 = vld [vmem:[#allocation6 + $0x52c] sm:$0xf]
          %v936 = vld [vmem:[#allocation6 + $0x530] sm:$0xf]
          %v937 = vld [vmem:[#allocation6 + $0x534] sm:$0xf]
          %v938 = vld [vmem:[#allocation6 + $0x538] sm:$0xf]
          %v939 = vld [vmem:[#allocation6 + $0x53c] sm:$0xf]
          %v940 = vld [vmem:[#allocation6 + $0x540] sm:$0xf]
          %v941 = vld [vmem:[#allocation6 + $0x544] sm:$0xf]
          %v942 = vld [vmem:[#allocation6 + $0x548] sm:$0xf]
          %v943 = vld [vmem:[#allocation6 + $0x54c] sm:$0xf]
          %v944 = vld [vmem:[#allocation6 + $0x550] sm:$0xf]
          %v945 = vld [vmem:[#allocation6 + $0x554] sm:$0xf]
          %v946 = vld [vmem:[#allocation6 + $0x558] sm:$0xf]
          %v947 = vld [vmem:[#allocation6 + $0x55c] sm:$0xf]
          %v948 = vld [vmem:[#allocation6 + $0x560] sm:$0xf]
          %v949 = vld [vmem:[#allocation6 + $0x564] sm:$0xf]
          %v950 = vld [vmem:[#allocation6 + $0x568] sm:$0xf]
          %v951 = vld [vmem:[#allocation6 + $0x56c] sm:$0xf]
          %v952 = vld [vmem:[#allocation6 + $0x570] sm:$0xf]
          %v953 = vld [vmem:[#allocation6 + $0x574] sm:$0xf]
          %v954 = vld [vmem:[#allocation6 + $0x578] sm:$0xf]
          %v955 = vld [vmem:[#allocation6 + $0x57c] sm:$0xf]
          %v956 = vld [vmem:[#allocation6 + $0x580] sm:$0xf]
          %v957 = vld [vmem:[#allocation6 + $0x584] sm:$0xf]
          %v958 = vld [vmem:[#allocation6 + $0x588] sm:$0xf]
          %v959 = vld [vmem:[#allocation6 + $0x58c] sm:$0xf]
          %v960 = vld [vmem:[#allocation6 + $0x590] sm:$0xf]
          %v961 = vld [vmem:[#allocation6 + $0x594] sm:$0xf]
          %v962 = vld [vmem:[#allocation6 + $0x598] sm:$0xf]
          %v963 = vld [vmem:[#allocation6 + $0x59c] sm:$0xf]
          %v964 = vld [vmem:[#allocation6 + $0x5a0] sm:$0xf]
          %v965 = vld [vmem:[#allocation6 + $0x5a4] sm:$0xf]
          %v966 = vld [vmem:[#allocation6 + $0x5a8] sm:$0xf]
          %v967 = vld [vmem:[#allocation6 + $0x5ac] sm:$0xf]
          %v968 = vld [vmem:[#allocation6 + $0x5b0] sm:$0xf]
          %v969 = vld [vmem:[#allocation6 + $0x5b4] sm:$0xf]
          %v970 = vld [vmem:[#allocation6 + $0x5b8] sm:$0xf]
          %v971 = vld [vmem:[#allocation6 + $0x5bc] sm:$0xf]
          %v972 = vld [vmem:[#allocation6 + $0x5c0] sm:$0xf]
          %v973 = vld [vmem:[#allocation6 + $0x5c4] sm:$0xf]
          %v974 = vld [vmem:[#allocation6 + $0x5c8] sm:$0xf]
          %v975 = vld [vmem:[#allocation6 + $0x5cc] sm:$0xf]
          %v976 = vld [vmem:[#allocation6 + $0x5d0] sm:$0xf]
          %v977 = vld [vmem:[#allocation6 + $0x5d4] sm:$0xf]
          %v978 = vld [vmem:[#allocation6 + $0x5d8] sm:$0xf]
          %v979 = vld [vmem:[#allocation6 + $0x5dc] sm:$0xf]
          %v980 = vld [vmem:[#allocation6 + $0x5e0] sm:$0xf]
          %v981 = vld [vmem:[#allocation6 + $0x5e4] sm:$0xf]
          %v982 = vld [vmem:[#allocation6 + $0x5e8] sm:$0xf]
          %v983 = vld [vmem:[#allocation6 + $0x5ec] sm:$0xf]
          %v984 = vld [vmem:[#allocation6 + $0x5f0] sm:$0xf]
          %v985 = vld [vmem:[#allocation6 + $0x5f4] sm:$0xf]
          %v986 = vld [vmem:[#allocation6 + $0x5f8] sm:$0xf]
          %v987 = vld [vmem:[#allocation6 + $0x5fc] sm:$0xf]
          %v988 = vld [vmem:[#allocation6 + $0x600] sm:$0xf]
          %v989 = vld [vmem:[#allocation6 + $0x604] sm:$0xf]
          %v990 = vld [vmem:[#allocation6 + $0x608] sm:$0xf]
          %v991 = vld [vmem:[#allocation6 + $0x60c] sm:$0xf]
          %v992 = vld [vmem:[#allocation6 + $0x610] sm:$0xf]
          %v993 = vld [vmem:[#allocation6 + $0x614] sm:$0xf]
          %v994 = vld [vmem:[#allocation6 + $0x618] sm:$0xf]
          %v995 = vld [vmem:[#allocation6 + $0x61c] sm:$0xf]
          %v996 = vld [vmem:[#allocation6 + $0x620] sm:$0xf]
          %v997 = vld [vmem:[#allocation6 + $0x624] sm:$0xf]
          %v998 = vld [vmem:[#allocation6 + $0x628] sm:$0xf]
          %v999 = vld [vmem:[#allocation6 + $0x62c] sm:$0xf]
          %v1000 = vld [vmem:[#allocation6 + $0x630] sm:$0xf]
          %v1001 = vld [vmem:[#allocation6 + $0x634] sm:$0xf]
          %v1002 = vld [vmem:[#allocation6 + $0x638] sm:$0xf]
          %v1003 = vld [vmem:[#allocation6 + $0x63c] sm:$0xf]
          %v1004 = vld [vmem:[#allocation6 + $0x640] sm:$0xf]
          %v1005 = vld [vmem:[#allocation6 + $0x644] sm:$0xf]
          %v1006 = vld [vmem:[#allocation6 + $0x648] sm:$0xf]
          %v1007 = vld [vmem:[#allocation6 + $0x64c] sm:$0xf]
          %v1008 = vld [vmem:[#allocation6 + $0x650] sm:$0xf]
          %v1009 = vld [vmem:[#allocation6 + $0x654] sm:$0xf]
          %v1010 = vld [vmem:[#allocation6 + $0x658] sm:$0xf]
          %v1011 = vld [vmem:[#allocation6 + $0x65c] sm:$0xf]
          %v1012 = vld [vmem:[#allocation6 + $0x660] sm:$0xf]
          %v1013 = vld [vmem:[#allocation6 + $0x664] sm:$0xf]
          %v1014 = vld [vmem:[#allocation6 + $0x668] sm:$0xf]
          %v1015 = vld [vmem:[#allocation6 + $0x66c] sm:$0xf]
          %v1016 = vld [vmem:[#allocation6 + $0x670] sm:$0xf]
          %v1017 = vld [vmem:[#allocation6 + $0x674] sm:$0xf]
          %v1018 = vld [vmem:[#allocation6 + $0x678] sm:$0xf]
          %v1019 = vld [vmem:[#allocation6 + $0x67c] sm:$0xf]
          %v1020 = vld [vmem:[#allocation6 + $0x680] sm:$0xf]
          %v1021 = vld [vmem:[#allocation6 + $0x684] sm:$0xf]
          %v1022 = vld [vmem:[#allocation6 + $0x688] sm:$0xf]
          %v1023 = vld [vmem:[#allocation6 + $0x68c] sm:$0xf]
          %v1024 = vld [vmem:[#allocation6 + $0x690] sm:$0xf]
          %v1025 = vld [vmem:[#allocation6 + $0x694] sm:$0xf]
          %v1026 = vld [vmem:[#allocation6 + $0x698] sm:$0xf]
          %v1027 = vld [vmem:[#allocation6 + $0x69c] sm:$0xf]
          %v1028 = vld [vmem:[#allocation6 + $0x6a0] sm:$0xf]
          %v1029 = vld [vmem:[#allocation6 + $0x6a4] sm:$0xf]
          %v1030 = vld [vmem:[#allocation6 + $0x6a8] sm:$0xf]
          %v1031 = vld [vmem:[#allocation6 + $0x6ac] sm:$0xf]
          %v1032 = vld [vmem:[#allocation6 + $0x6b0] sm:$0xf]
          %v1033 = vld [vmem:[#allocation6 + $0x6b4] sm:$0xf]
          %v1034 = vld [vmem:[#allocation6 + $0x6b8] sm:$0xf]
          %v1035 = vld [vmem:[#allocation6 + $0x6bc] sm:$0xf]
          %v1036 = vld [vmem:[#allocation6 + $0x6c0] sm:$0xf]
          %v1037 = vld [vmem:[#allocation6 + $0x6c4] sm:$0xf]
          %v1038 = vld [vmem:[#allocation6 + $0x6c8] sm:$0xf]
          %v1039 = vld [vmem:[#allocation6 + $0x6cc] sm:$0xf]
          %v1040 = vld [vmem:[#allocation6 + $0x6d0] sm:$0xf]
          %v1041 = vld [vmem:[#allocation6 + $0x6d4] sm:$0xf]
          %v1042 = vld [vmem:[#allocation6 + $0x6d8] sm:$0xf]
          %v1043 = vld [vmem:[#allocation6 + $0x6dc] sm:$0xf]
          %v1044 = vld [vmem:[#allocation6 + $0x6e0] sm:$0xf]
          %v1045 = vld [vmem:[#allocation6 + $0x6e4] sm:$0xf]
          %v1046 = vld [vmem:[#allocation6 + $0x6e8] sm:$0xf]
          %v1047 = vld [vmem:[#allocation6 + $0x6ec] sm:$0xf]
          %v1048 = vld [vmem:[#allocation6 + $0x6f0] sm:$0xf]
          %v1049 = vld [vmem:[#allocation6 + $0x6f4] sm:$0xf]
          %v1050 = vld [vmem:[#allocation6 + $0x6f8] sm:$0xf]
          %v1051 = vld [vmem:[#allocation6 + $0x6fc] sm:$0xf]
          %v1052 = vld [vmem:[#allocation6 + $0x700] sm:$0xf]
          %v1053 = vld [vmem:[#allocation6 + $0x704] sm:$0xf]
          %v1054 = vld [vmem:[#allocation6 + $0x708] sm:$0xf]
          %v1055 = vld [vmem:[#allocation6 + $0x70c] sm:$0xf]
          %v1056 = vld [vmem:[#allocation6 + $0x710] sm:$0xf]
          %v1057 = vld [vmem:[#allocation6 + $0x714] sm:$0xf]
          %v1058 = vld [vmem:[#allocation6 + $0x718] sm:$0xf]
          %v1059 = vld [vmem:[#allocation6 + $0x71c] sm:$0xf]
          %v1060 = vld [vmem:[#allocation6 + $0x720] sm:$0xf]
          %v1061 = vld [vmem:[#allocation6 + $0x724] sm:$0xf]
          %v1062 = vld [vmem:[#allocation6 + $0x728] sm:$0xf]
          %v1063 = vld [vmem:[#allocation6 + $0x72c] sm:$0xf]
          %v1064 = vld [vmem:[#allocation6 + $0x730] sm:$0xf]
          %v1065 = vld [vmem:[#allocation6 + $0x734] sm:$0xf]
          %v1066 = vld [vmem:[#allocation6 + $0x738] sm:$0xf]
          %v1067 = vld [vmem:[#allocation6 + $0x73c] sm:$0xf]
          %v1068 = vld [vmem:[#allocation6 + $0x740] sm:$0xf]
          %v1069 = vld [vmem:[#allocation6 + $0x744] sm:$0xf]
          %v1070 = vld [vmem:[#allocation6 + $0x748] sm:$0xf]
          %v1071 = vld [vmem:[#allocation6 + $0x74c] sm:$0xf]
          %v1072 = vld [vmem:[#allocation6 + $0x750] sm:$0xf]
          %v1073 = vld [vmem:[#allocation6 + $0x754] sm:$0xf]
          %v1074 = vld [vmem:[#allocation6 + $0x758] sm:$0xf]
          %v1075 = vld [vmem:[#allocation6 + $0x75c] sm:$0xf]
          %v1076 = vld [vmem:[#allocation6 + $0x760] sm:$0xf]
          %v1077 = vld [vmem:[#allocation6 + $0x764] sm:$0xf]
          %v1078 = vld [vmem:[#allocation6 + $0x768] sm:$0xf]
          %v1079 = vld [vmem:[#allocation6 + $0x76c] sm:$0xf]
          %v1080 = vld [vmem:[#allocation6 + $0x770] sm:$0xf]
          %v1081 = vld [vmem:[#allocation6 + $0x774] sm:$0xf]
          %v1082 = vld [vmem:[#allocation6 + $0x778] sm:$0xf]
          %v1083 = vld [vmem:[#allocation6 + $0x77c] sm:$0xf]
          %v1084 = vld [vmem:[#allocation6 + $0x780] sm:$0xf]
          %v1085 = vld [vmem:[#allocation6 + $0x784] sm:$0xf]
          %v1086 = vld [vmem:[#allocation6 + $0x788] sm:$0xf]
          %v1087 = vld [vmem:[#allocation6 + $0x78c] sm:$0xf]
          %v1088 = vld [vmem:[#allocation6 + $0x790] sm:$0xf]
          %v1089 = vld [vmem:[#allocation6 + $0x794] sm:$0xf]
          %v1090 = vld [vmem:[#allocation6 + $0x798] sm:$0xf]
          %v1091 = vld [vmem:[#allocation6 + $0x79c] sm:$0xf]
          %v1092 = vld [vmem:[#allocation6 + $0x7a0] sm:$0xf]
          %v1093 = vld [vmem:[#allocation6 + $0x7a4] sm:$0xf]
          %v1094 = vld [vmem:[#allocation6 + $0x7a8] sm:$0xf]
          %v1095 = vld [vmem:[#allocation6 + $0x7ac] sm:$0xf]
          %v1096 = vld [vmem:[#allocation6 + $0x7b0] sm:$0xf]
          %v1097 = vld [vmem:[#allocation6 + $0x7b4] sm:$0xf]
          %v1098 = vld [vmem:[#allocation6 + $0x7b8] sm:$0xf]
          %v1099 = vld [vmem:[#allocation6 + $0x7bc] sm:$0xf]
          %v1100 = vld [vmem:[#allocation6 + $0x7c0] sm:$0xf]
          %v1101 = vld [vmem:[#allocation6 + $0x7c4] sm:$0xf]
          %v1102 = vld [vmem:[#allocation6 + $0x7c8] sm:$0xf]
          %v1103 = vld [vmem:[#allocation6 + $0x7cc] sm:$0xf]
          %v1104 = vld [vmem:[#allocation6 + $0x7d0] sm:$0xf]
          %v1105 = vld [vmem:[#allocation6 + $0x7d4] sm:$0xf]
          %v1106 = vld [vmem:[#allocation6 + $0x7d8] sm:$0xf]
          %v1107 = vld [vmem:[#allocation6 + $0x7dc] sm:$0xf]
          %v1108 = vld [vmem:[#allocation6 + $0x7e0] sm:$0xf]
          %v1109 = vld [vmem:[#allocation6 + $0x7e4] sm:$0xf]
          %v1110 = vld [vmem:[#allocation6 + $0x7e8] sm:$0xf]
          %v1111 = vld [vmem:[#allocation6 + $0x7ec] sm:$0xf]
          %v1112 = vld [vmem:[#allocation6 + $0x7f0] sm:$0xf]
          %v1113 = vld [vmem:[#allocation6 + $0x7f4] sm:$0xf]
          %v1114 = vld [vmem:[#allocation6 + $0x7f8] sm:$0xf]
          %v1115 = vld [vmem:[#allocation6 + $0x7fc] sm:$0xf]
          %v1116 = vld [vmem:[%s2] sm:$0x1]
          %v1118 = vlaneseq
          %v1119 = vshrl.u32 %v1118, 7
          %v1120 = vsub.s32 0, %v1119
          %v1121 = vrot.slane %v1116, %v1120
          %v1635 = vunpack.c.l.b16 %v604
          %v1636 = vunpack.c.l.b16 %v605
          %v1637 = vunpack.c.l.b16 %v606
          %v1638 = vunpack.c.l.b16 %v607
          %v1639 = vunpack.c.l.b16 %v608
          %v1640 = vunpack.c.l.b16 %v609
          %v1641 = vunpack.c.l.b16 %v610
          %v1642 = vunpack.c.l.b16 %v611
          %v1643 = vunpack.c.l.b16 %v612
          %v1644 = vunpack.c.l.b16 %v613
          %v1645 = vunpack.c.l.b16 %v614
          %v1646 = vunpack.c.l.b16 %v615
          %v1647 = vunpack.c.l.b16 %v616
          %v1648 = vunpack.c.l.b16 %v617
          %v1649 = vunpack.c.l.b16 %v618
          %v1650 = vunpack.c.l.b16 %v619
          %v1651 = vunpack.c.l.b16 %v620
          %v1652 = vunpack.c.l.b16 %v621
          %v1653 = vunpack.c.l.b16 %v622
          %v1654 = vunpack.c.l.b16 %v623
          %v1655 = vunpack.c.l.b16 %v624
          %v1656 = vunpack.c.l.b16 %v625
          %v1657 = vunpack.c.l.b16 %v626
          %v1658 = vunpack.c.l.b16 %v627
          %v1659 = vunpack.c.l.b16 %v628
          %v1660 = vunpack.c.l.b16 %v629
          %v1661 = vunpack.c.l.b16 %v630
          %v1662 = vunpack.c.l.b16 %v631
          %v1663 = vunpack.c.l.b16 %v632
          %v1664 = vunpack.c.l.b16 %v633
          %v1665 = vunpack.c.l.b16 %v634
          %v1666 = vunpack.c.l.b16 %v635
          %v1667 = vunpack.c.l.b16 %v636
          %v1668 = vunpack.c.l.b16 %v637
          %v1669 = vunpack.c.l.b16 %v638
          %v1670 = vunpack.c.l.b16 %v639
          %v1671 = vunpack.c.l.b16 %v640
          %v1672 = vunpack.c.l.b16 %v641
          %v1673 = vunpack.c.l.b16 %v642
          %v1674 = vunpack.c.l.b16 %v643
          %v1675 = vunpack.c.l.b16 %v644
          %v1676 = vunpack.c.l.b16 %v645
          %v1677 = vunpack.c.l.b16 %v646
          %v1678 = vunpack.c.l.b16 %v647
          %v1679 = vunpack.c.l.b16 %v648
          %v1680 = vunpack.c.l.b16 %v649
          %v1681 = vunpack.c.l.b16 %v650
          %v1682 = vunpack.c.l.b16 %v651
          %v1683 = vunpack.c.l.b16 %v652
          %v1684 = vunpack.c.l.b16 %v653
          %v1685 = vunpack.c.l.b16 %v654
          %v1686 = vunpack.c.l.b16 %v655
          %v1687 = vunpack.c.l.b16 %v656
          %v1688 = vunpack.c.l.b16 %v657
          %v1689 = vunpack.c.l.b16 %v658
          %v1690 = vunpack.c.l.b16 %v659
          %v1691 = vunpack.c.l.b16 %v660
          %v1692 = vunpack.c.l.b16 %v661
          %v1693 = vunpack.c.l.b16 %v662
          %v1694 = vunpack.c.l.b16 %v663
          %v1695 = vunpack.c.l.b16 %v664
          %v1696 = vunpack.c.l.b16 %v665
          %v1697 = vunpack.c.l.b16 %v666
          %v1698 = vunpack.c.l.b16 %v667
          %v1699 = vunpack.c.l.b16 %v668
          %v1700 = vunpack.c.l.b16 %v669
          %v1701 = vunpack.c.l.b16 %v670
          %v1702 = vunpack.c.l.b16 %v671
          %v1703 = vunpack.c.l.b16 %v672
          %v1704 = vunpack.c.l.b16 %v673
          %v1705 = vunpack.c.l.b16 %v674
          %v1706 = vunpack.c.l.b16 %v675
          %v1707 = vunpack.c.l.b16 %v676
          %v1708 = vunpack.c.l.b16 %v677
          %v1709 = vunpack.c.l.b16 %v678
          %v1710 = vunpack.c.l.b16 %v679
          %v1711 = vunpack.c.l.b16 %v680
          %v1712 = vunpack.c.l.b16 %v681
          %v1713 = vunpack.c.l.b16 %v682
          %v1714 = vunpack.c.l.b16 %v683
          %v1715 = vunpack.c.l.b16 %v684
          %v1716 = vunpack.c.l.b16 %v685
          %v1717 = vunpack.c.l.b16 %v686
          %v1718 = vunpack.c.l.b16 %v687
          %v1719 = vunpack.c.l.b16 %v688
          %v1720 = vunpack.c.l.b16 %v689
          %v1721 = vunpack.c.l.b16 %v690
          %v1722 = vunpack.c.l.b16 %v691
          %v1723 = vunpack.c.l.b16 %v692
          %v1724 = vunpack.c.l.b16 %v693
          %v1725 = vunpack.c.l.b16 %v694
          %v1726 = vunpack.c.l.b16 %v695
          %v1727 = vunpack.c.l.b16 %v696
          %v1728 = vunpack.c.l.b16 %v697
          %v1729 = vunpack.c.l.b16 %v698
          %v1730 = vunpack.c.l.b16 %v699
          %v1731 = vunpack.c.l.b16 %v700
          %v1732 = vunpack.c.l.b16 %v701
          %v1733 = vunpack.c.l.b16 %v702
          %v1734 = vunpack.c.l.b16 %v703
          %v1735 = vunpack.c.l.b16 %v704
          %v1736 = vunpack.c.l.b16 %v705
          %v1737 = vunpack.c.l.b16 %v706
          %v1738 = vunpack.c.l.b16 %v707
          %v1739 = vunpack.c.l.b16 %v708
          %v1740 = vunpack.c.l.b16 %v709
          %v1741 = vunpack.c.l.b16 %v710
          %v1742 = vunpack.c.l.b16 %v711
          %v1743 = vunpack.c.l.b16 %v712
          %v1744 = vunpack.c.l.b16 %v713
          %v1745 = vunpack.c.l.b16 %v714
          %v1746 = vunpack.c.l.b16 %v715
          %v1747 = vunpack.c.l.b16 %v716
          %v1748 = vunpack.c.l.b16 %v717
          %v1749 = vunpack.c.l.b16 %v718
          %v1750 = vunpack.c.l.b16 %v719
          %v1751 = vunpack.c.l.b16 %v720
          %v1752 = vunpack.c.l.b16 %v721
          %v1753 = vunpack.c.l.b16 %v722
          %v1754 = vunpack.c.l.b16 %v723
          %v1755 = vunpack.c.l.b16 %v724
          %v1756 = vunpack.c.l.b16 %v725
          %v1757 = vunpack.c.l.b16 %v726
          %v1758 = vunpack.c.l.b16 %v727
          %v1759 = vunpack.c.l.b16 %v728
          %v1760 = vunpack.c.l.b16 %v729
          %v1761 = vunpack.c.l.b16 %v730
          %v1762 = vunpack.c.l.b16 %v731
          %v1763 = vunpack.c.l.b16 %v732
          %v1764 = vunpack.c.l.b16 %v733
          %v1765 = vunpack.c.l.b16 %v734
          %v1766 = vunpack.c.l.b16 %v735
          %v1767 = vunpack.c.l.b16 %v736
          %v1768 = vunpack.c.l.b16 %v737
          %v1769 = vunpack.c.l.b16 %v738
          %v1770 = vunpack.c.l.b16 %v739
          %v1771 = vunpack.c.l.b16 %v740
          %v1772 = vunpack.c.l.b16 %v741
          %v1773 = vunpack.c.l.b16 %v742
          %v1774 = vunpack.c.l.b16 %v743
          %v1775 = vunpack.c.l.b16 %v744
          %v1776 = vunpack.c.l.b16 %v745
          %v1777 = vunpack.c.l.b16 %v746
          %v1778 = vunpack.c.l.b16 %v747
          %v1779 = vunpack.c.l.b16 %v748
          %v1780 = vunpack.c.l.b16 %v749
          %v1781 = vunpack.c.l.b16 %v750
          %v1782 = vunpack.c.l.b16 %v751
          %v1783 = vunpack.c.l.b16 %v752
          %v1784 = vunpack.c.l.b16 %v753
          %v1785 = vunpack.c.l.b16 %v754
          %v1786 = vunpack.c.l.b16 %v755
          %v1787 = vunpack.c.l.b16 %v756
          %v1788 = vunpack.c.l.b16 %v757
          %v1789 = vunpack.c.l.b16 %v758
          %v1790 = vunpack.c.l.b16 %v759
          %v1791 = vunpack.c.l.b16 %v760
          %v1792 = vunpack.c.l.b16 %v761
          %v1793 = vunpack.c.l.b16 %v762
          %v1794 = vunpack.c.l.b16 %v763
          %v1795 = vunpack.c.l.b16 %v764
          %v1796 = vunpack.c.l.b16 %v765
          %v1797 = vunpack.c.l.b16 %v766
          %v1798 = vunpack.c.l.b16 %v767
          %v1799 = vunpack.c.l.b16 %v768
          %v1800 = vunpack.c.l.b16 %v769
          %v1801 = vunpack.c.l.b16 %v770
          %v1802 = vunpack.c.l.b16 %v771
          %v1803 = vunpack.c.l.b16 %v772
          %v1804 = vunpack.c.l.b16 %v773
          %v1805 = vunpack.c.l.b16 %v774
          %v1806 = vunpack.c.l.b16 %v775
          %v1807 = vunpack.c.l.b16 %v776
          %v1808 = vunpack.c.l.b16 %v777
          %v1809 = vunpack.c.l.b16 %v778
          %v1810 = vunpack.c.l.b16 %v779
          %v1811 = vunpack.c.l.b16 %v780
          %v1812 = vunpack.c.l.b16 %v781
          %v1813 = vunpack.c.l.b16 %v782
          %v1814 = vunpack.c.l.b16 %v783
          %v1815 = vunpack.c.l.b16 %v784
          %v1816 = vunpack.c.l.b16 %v785
          %v1817 = vunpack.c.l.b16 %v786
          %v1818 = vunpack.c.l.b16 %v787
          %v1819 = vunpack.c.l.b16 %v788
          %v1820 = vunpack.c.l.b16 %v789
          %v1821 = vunpack.c.l.b16 %v790
          %v1822 = vunpack.c.l.b16 %v791
          %v1823 = vunpack.c.l.b16 %v792
          %v1824 = vunpack.c.l.b16 %v793
          %v1825 = vunpack.c.l.b16 %v794
          %v1826 = vunpack.c.l.b16 %v795
          %v1827 = vunpack.c.l.b16 %v796
          %v1828 = vunpack.c.l.b16 %v797
          %v1829 = vunpack.c.l.b16 %v798
          %v1830 = vunpack.c.l.b16 %v799
          %v1831 = vunpack.c.l.b16 %v800
          %v1832 = vunpack.c.l.b16 %v801
          %v1833 = vunpack.c.l.b16 %v802
          %v1834 = vunpack.c.l.b16 %v803
          %v1835 = vunpack.c.l.b16 %v804
          %v1836 = vunpack.c.l.b16 %v805
          %v1837 = vunpack.c.l.b16 %v806
          %v1838 = vunpack.c.l.b16 %v807
          %v1839 = vunpack.c.l.b16 %v808
          %v1840 = vunpack.c.l.b16 %v809
          %v1841 = vunpack.c.l.b16 %v810
          %v1842 = vunpack.c.l.b16 %v811
          %v1843 = vunpack.c.l.b16 %v812
          %v1844 = vunpack.c.l.b16 %v813
          %v1845 = vunpack.c.l.b16 %v814
          %v1846 = vunpack.c.l.b16 %v815
          %v1847 = vunpack.c.l.b16 %v816
          %v1848 = vunpack.c.l.b16 %v817
          %v1849 = vunpack.c.l.b16 %v818
          %v1850 = vunpack.c.l.b16 %v819
          %v1851 = vunpack.c.l.b16 %v820
          %v1852 = vunpack.c.l.b16 %v821
          %v1853 = vunpack.c.l.b16 %v822
          %v1854 = vunpack.c.l.b16 %v823
          %v1855 = vunpack.c.l.b16 %v824
          %v1856 = vunpack.c.l.b16 %v825
          %v1857 = vunpack.c.l.b16 %v826
          %v1858 = vunpack.c.l.b16 %v827
          %v1859 = vunpack.c.l.b16 %v828
          %v1860 = vunpack.c.l.b16 %v829
          %v1861 = vunpack.c.l.b16 %v830
          %v1862 = vunpack.c.l.b16 %v831
          %v1863 = vunpack.c.l.b16 %v832
          %v1864 = vunpack.c.l.b16 %v833
          %v1865 = vunpack.c.l.b16 %v834
          %v1866 = vunpack.c.l.b16 %v835
          %v1867 = vunpack.c.l.b16 %v836
          %v1868 = vunpack.c.l.b16 %v837
          %v1869 = vunpack.c.l.b16 %v838
          %v1870 = vunpack.c.l.b16 %v839
          %v1871 = vunpack.c.l.b16 %v840
          %v1872 = vunpack.c.l.b16 %v841
          %v1873 = vunpack.c.l.b16 %v842
          %v1874 = vunpack.c.l.b16 %v843
          %v1875 = vunpack.c.l.b16 %v844
          %v1876 = vunpack.c.l.b16 %v845
          %v1877 = vunpack.c.l.b16 %v846
          %v1878 = vunpack.c.l.b16 %v847
          %v1879 = vunpack.c.l.b16 %v848
          %v1880 = vunpack.c.l.b16 %v849
          %v1881 = vunpack.c.l.b16 %v850
          %v1882 = vunpack.c.l.b16 %v851
          %v1883 = vunpack.c.l.b16 %v852
          %v1884 = vunpack.c.l.b16 %v853
          %v1885 = vunpack.c.l.b16 %v854
          %v1886 = vunpack.c.l.b16 %v855
          %v1887 = vunpack.c.l.b16 %v856
          %v1888 = vunpack.c.l.b16 %v857
          %v1889 = vunpack.c.l.b16 %v858
          %v1890 = vunpack.c.l.b16 %v859
          %v1891 = vunpack.c.l.b16 %v860
          %v1892 = vunpack.c.l.b16 %v861
          %v1893 = vunpack.c.l.b16 %v862
          %v1894 = vunpack.c.l.b16 %v863
          %v1895 = vunpack.c.l.b16 %v864
          %v1896 = vunpack.c.l.b16 %v865
          %v1897 = vunpack.c.l.b16 %v866
          %v1898 = vunpack.c.l.b16 %v867
          %v1899 = vunpack.c.l.b16 %v868
          %v1900 = vunpack.c.l.b16 %v869
          %v1901 = vunpack.c.l.b16 %v870
          %v1902 = vunpack.c.l.b16 %v871
          %v1903 = vunpack.c.l.b16 %v872
          %v1904 = vunpack.c.l.b16 %v873
          %v1905 = vunpack.c.l.b16 %v874
          %v1906 = vunpack.c.l.b16 %v875
          %v1907 = vunpack.c.l.b16 %v876
          %v1908 = vunpack.c.l.b16 %v877
          %v1909 = vunpack.c.l.b16 %v878
          %v1910 = vunpack.c.l.b16 %v879
          %v1911 = vunpack.c.l.b16 %v880
          %v1912 = vunpack.c.l.b16 %v881
          %v1913 = vunpack.c.l.b16 %v882
          %v1914 = vunpack.c.l.b16 %v883
          %v1915 = vunpack.c.l.b16 %v884
          %v1916 = vunpack.c.l.b16 %v885
          %v1917 = vunpack.c.l.b16 %v886
          %v1918 = vunpack.c.l.b16 %v887
          %v1919 = vunpack.c.l.b16 %v888
          %v1920 = vunpack.c.l.b16 %v889
          %v1921 = vunpack.c.l.b16 %v890
          %v1922 = vunpack.c.l.b16 %v891
          %v1923 = vunpack.c.l.b16 %v892
          %v1924 = vunpack.c.l.b16 %v893
          %v1925 = vunpack.c.l.b16 %v894
          %v1926 = vunpack.c.l.b16 %v895
          %v1927 = vunpack.c.l.b16 %v896
          %v1928 = vunpack.c.l.b16 %v897
          %v1929 = vunpack.c.l.b16 %v898
          %v1930 = vunpack.c.l.b16 %v899
          %v1931 = vunpack.c.l.b16 %v900
          %v1932 = vunpack.c.l.b16 %v901
          %v1933 = vunpack.c.l.b16 %v902
          %v1934 = vunpack.c.l.b16 %v903
          %v1935 = vunpack.c.l.b16 %v904
          %v1936 = vunpack.c.l.b16 %v905
          %v1937 = vunpack.c.l.b16 %v906
          %v1938 = vunpack.c.l.b16 %v907
          %v1939 = vunpack.c.l.b16 %v908
          %v1940 = vunpack.c.l.b16 %v909
          %v1941 = vunpack.c.l.b16 %v910
          %v1942 = vunpack.c.l.b16 %v911
          %v1943 = vunpack.c.l.b16 %v912
          %v1944 = vunpack.c.l.b16 %v913
          %v1945 = vunpack.c.l.b16 %v914
          %v1946 = vunpack.c.l.b16 %v915
          %v1947 = vunpack.c.l.b16 %v916
          %v1948 = vunpack.c.l.b16 %v917
          %v1949 = vunpack.c.l.b16 %v918
          %v1950 = vunpack.c.l.b16 %v919
          %v1951 = vunpack.c.l.b16 %v920
          %v1952 = vunpack.c.l.b16 %v921
          %v1953 = vunpack.c.l.b16 %v922
          %v1954 = vunpack.c.l.b16 %v923
          %v1955 = vunpack.c.l.b16 %v924
          %v1956 = vunpack.c.l.b16 %v925
          %v1957 = vunpack.c.l.b16 %v926
          %v1958 = vunpack.c.l.b16 %v927
          %v1959 = vunpack.c.l.b16 %v928
          %v1960 = vunpack.c.l.b16 %v929
          %v1961 = vunpack.c.l.b16 %v930
          %v1962 = vunpack.c.l.b16 %v931
          %v1963 = vunpack.c.l.b16 %v932
          %v1964 = vunpack.c.l.b16 %v933
          %v1965 = vunpack.c.l.b16 %v934
          %v1966 = vunpack.c.l.b16 %v935
          %v1967 = vunpack.c.l.b16 %v936
          %v1968 = vunpack.c.l.b16 %v937
          %v1969 = vunpack.c.l.b16 %v938
          %v1970 = vunpack.c.l.b16 %v939
          %v1971 = vunpack.c.l.b16 %v940
          %v1972 = vunpack.c.l.b16 %v941
          %v1973 = vunpack.c.l.b16 %v942
          %v1974 = vunpack.c.l.b16 %v943
          %v1975 = vunpack.c.l.b16 %v944
          %v1976 = vunpack.c.l.b16 %v945
          %v1977 = vunpack.c.l.b16 %v946
          %v1978 = vunpack.c.l.b16 %v947
          %v1979 = vunpack.c.l.b16 %v948
          %v1980 = vunpack.c.l.b16 %v949
          %v1981 = vunpack.c.l.b16 %v950
          %v1982 = vunpack.c.l.b16 %v951
          %v1983 = vunpack.c.l.b16 %v952
          %v1984 = vunpack.c.l.b16 %v953
          %v1985 = vunpack.c.l.b16 %v954
          %v1986 = vunpack.c.l.b16 %v955
          %v1987 = vunpack.c.l.b16 %v956
          %v1988 = vunpack.c.l.b16 %v957
          %v1989 = vunpack.c.l.b16 %v958
          %v1990 = vunpack.c.l.b16 %v959
          %v1991 = vunpack.c.l.b16 %v960
          %v1992 = vunpack.c.l.b16 %v961
          %v1993 = vunpack.c.l.b16 %v962
          %v1994 = vunpack.c.l.b16 %v963
          %v1995 = vunpack.c.l.b16 %v964
          %v1996 = vunpack.c.l.b16 %v965
          %v1997 = vunpack.c.l.b16 %v966
          %v1998 = vunpack.c.l.b16 %v967
          %v1999 = vunpack.c.l.b16 %v968
          %v2000 = vunpack.c.l.b16 %v969
          %v2001 = vunpack.c.l.b16 %v970
          %v2002 = vunpack.c.l.b16 %v971
          %v2003 = vunpack.c.l.b16 %v972
          %v2004 = vunpack.c.l.b16 %v973
          %v2005 = vunpack.c.l.b16 %v974
          %v2006 = vunpack.c.l.b16 %v975
          %v2007 = vunpack.c.l.b16 %v976
          %v2008 = vunpack.c.l.b16 %v977
          %v2009 = vunpack.c.l.b16 %v978
          %v2010 = vunpack.c.l.b16 %v979
          %v2011 = vunpack.c.l.b16 %v980
          %v2012 = vunpack.c.l.b16 %v981
          %v2013 = vunpack.c.l.b16 %v982
          %v2014 = vunpack.c.l.b16 %v983
          %v2015 = vunpack.c.l.b16 %v984
          %v2016 = vunpack.c.l.b16 %v985
          %v2017 = vunpack.c.l.b16 %v986
          %v2018 = vunpack.c.l.b16 %v987
          %v2019 = vunpack.c.l.b16 %v988
          %v2020 = vunpack.c.l.b16 %v989
          %v2021 = vunpack.c.l.b16 %v990
          %v2022 = vunpack.c.l.b16 %v991
          %v2023 = vunpack.c.l.b16 %v992
          %v2024 = vunpack.c.l.b16 %v993
          %v2025 = vunpack.c.l.b16 %v994
          %v2026 = vunpack.c.l.b16 %v995
          %v2027 = vunpack.c.l.b16 %v996
          %v2028 = vunpack.c.l.b16 %v997
          %v2029 = vunpack.c.l.b16 %v998
          %v2030 = vunpack.c.l.b16 %v999
          %v2031 = vunpack.c.l.b16 %v1000
          %v2032 = vunpack.c.l.b16 %v1001
          %v2033 = vunpack.c.l.b16 %v1002
          %v2034 = vunpack.c.l.b16 %v1003
          %v2035 = vunpack.c.l.b16 %v1004
          %v2036 = vunpack.c.l.b16 %v1005
          %v2037 = vunpack.c.l.b16 %v1006
          %v2038 = vunpack.c.l.b16 %v1007
          %v2039 = vunpack.c.l.b16 %v1008
          %v2040 = vunpack.c.l.b16 %v1009
          %v2041 = vunpack.c.l.b16 %v1010
          %v2042 = vunpack.c.l.b16 %v1011
          %v2043 = vunpack.c.l.b16 %v1012
          %v2044 = vunpack.c.l.b16 %v1013
          %v2045 = vunpack.c.l.b16 %v1014
          %v2046 = vunpack.c.l.b16 %v1015
          %v2047 = vunpack.c.l.b16 %v1016
          %v2048 = vunpack.c.l.b16 %v1017
          %v2049 = vunpack.c.l.b16 %v1018
          %v2050 = vunpack.c.l.b16 %v1019
          %v2051 = vunpack.c.l.b16 %v1020
          %v2052 = vunpack.c.l.b16 %v1021
          %v2053 = vunpack.c.l.b16 %v1022
          %v2054 = vunpack.c.l.b16 %v1023
          %v2055 = vunpack.c.l.b16 %v1024
          %v2056 = vunpack.c.l.b16 %v1025
          %v2057 = vunpack.c.l.b16 %v1026
          %v2058 = vunpack.c.l.b16 %v1027
          %v2059 = vunpack.c.l.b16 %v1028
          %v2060 = vunpack.c.l.b16 %v1029
          %v2061 = vunpack.c.l.b16 %v1030
          %v2062 = vunpack.c.l.b16 %v1031
          %v2063 = vunpack.c.l.b16 %v1032
          %v2064 = vunpack.c.l.b16 %v1033
          %v2065 = vunpack.c.l.b16 %v1034
          %v2066 = vunpack.c.l.b16 %v1035
          %v2067 = vunpack.c.l.b16 %v1036
          %v2068 = vunpack.c.l.b16 %v1037
          %v2069 = vunpack.c.l.b16 %v1038
          %v2070 = vunpack.c.l.b16 %v1039
          %v2071 = vunpack.c.l.b16 %v1040
          %v2072 = vunpack.c.l.b16 %v1041
          %v2073 = vunpack.c.l.b16 %v1042
          %v2074 = vunpack.c.l.b16 %v1043
          %v2075 = vunpack.c.l.b16 %v1044
          %v2076 = vunpack.c.l.b16 %v1045
          %v2077 = vunpack.c.l.b16 %v1046
          %v2078 = vunpack.c.l.b16 %v1047
          %v2079 = vunpack.c.l.b16 %v1048
          %v2080 = vunpack.c.l.b16 %v1049
          %v2081 = vunpack.c.l.b16 %v1050
          %v2082 = vunpack.c.l.b16 %v1051
          %v2083 = vunpack.c.l.b16 %v1052
          %v2084 = vunpack.c.l.b16 %v1053
          %v2085 = vunpack.c.l.b16 %v1054
          %v2086 = vunpack.c.l.b16 %v1055
          %v2087 = vunpack.c.l.b16 %v1056
          %v2088 = vunpack.c.l.b16 %v1057
          %v2089 = vunpack.c.l.b16 %v1058
          %v2090 = vunpack.c.l.b16 %v1059
          %v2091 = vunpack.c.l.b16 %v1060
          %v2092 = vunpack.c.l.b16 %v1061
          %v2093 = vunpack.c.l.b16 %v1062
          %v2094 = vunpack.c.l.b16 %v1063
          %v2095 = vunpack.c.l.b16 %v1064
          %v2096 = vunpack.c.l.b16 %v1065
          %v2097 = vunpack.c.l.b16 %v1066
          %v2098 = vunpack.c.l.b16 %v1067
          %v2099 = vunpack.c.l.b16 %v1068
          %v2100 = vunpack.c.l.b16 %v1069
          %v2101 = vunpack.c.l.b16 %v1070
          %v2102 = vunpack.c.l.b16 %v1071
          %v2103 = vunpack.c.l.b16 %v1072
          %v2104 = vunpack.c.l.b16 %v1073
          %v2105 = vunpack.c.l.b16 %v1074
          %v2106 = vunpack.c.l.b16 %v1075
          %v2107 = vunpack.c.l.b16 %v1076
          %v2108 = vunpack.c.l.b16 %v1077
          %v2109 = vunpack.c.l.b16 %v1078
          %v2110 = vunpack.c.l.b16 %v1079
          %v2111 = vunpack.c.l.b16 %v1080
          %v2112 = vunpack.c.l.b16 %v1081
          %v2113 = vunpack.c.l.b16 %v1082
          %v2114 = vunpack.c.l.b16 %v1083
          %v2115 = vunpack.c.l.b16 %v1084
          %v2116 = vunpack.c.l.b16 %v1085
          %v2117 = vunpack.c.l.b16 %v1086
          %v2118 = vunpack.c.l.b16 %v1087
          %v2119 = vunpack.c.l.b16 %v1088
          %v2120 = vunpack.c.l.b16 %v1089
          %v2121 = vunpack.c.l.b16 %v1090
          %v2122 = vunpack.c.l.b16 %v1091
          %v2123 = vunpack.c.l.b16 %v1092
          %v2124 = vunpack.c.l.b16 %v1093
          %v2125 = vunpack.c.l.b16 %v1094
          %v2126 = vunpack.c.l.b16 %v1095
          %v2127 = vunpack.c.l.b16 %v1096
          %v2128 = vunpack.c.l.b16 %v1097
          %v2129 = vunpack.c.l.b16 %v1098
          %v2130 = vunpack.c.l.b16 %v1099
          %v2131 = vunpack.c.l.b16 %v1100
          %v2132 = vunpack.c.l.b16 %v1101
          %v2133 = vunpack.c.l.b16 %v1102
          %v2134 = vunpack.c.l.b16 %v1103
          %v2135 = vunpack.c.l.b16 %v1104
          %v2136 = vunpack.c.l.b16 %v1105
          %v2137 = vunpack.c.l.b16 %v1106
          %v2138 = vunpack.c.l.b16 %v1107
          %v2139 = vunpack.c.l.b16 %v1108
          %v2140 = vunpack.c.l.b16 %v1109
          %v2141 = vunpack.c.l.b16 %v1110
          %v2142 = vunpack.c.l.b16 %v1111
          %v2143 = vunpack.c.l.b16 %v1112
          %v2144 = vunpack.c.l.b16 %v1113
          %v2145 = vunpack.c.l.b16 %v1114
          %v2146 = vunpack.c.l.b16 %v1115
          %v2147 = vpack.c.b16 %v1636, %v1635
          %v2148 = vpack.c.b16 %v1638, %v1637
          %v2149 = vpack.c.b16 %v1640, %v1639
          %v2150 = vpack.c.b16 %v1642, %v1641
          %v2151 = vpack.c.b16 %v1644, %v1643
          %v2152 = vpack.c.b16 %v1646, %v1645
          %v2153 = vpack.c.b16 %v1648, %v1647
          %v2154 = vpack.c.b16 %v1650, %v1649
          %v2155 = vpack.c.b16 %v1652, %v1651
          %v2156 = vpack.c.b16 %v1654, %v1653
          %v2157 = vpack.c.b16 %v1656, %v1655
          %v2158 = vpack.c.b16 %v1658, %v1657
          %v2159 = vpack.c.b16 %v1660, %v1659
          %v2160 = vpack.c.b16 %v1662, %v1661
          %v2161 = vpack.c.b16 %v1664, %v1663
          %v2162 = vpack.c.b16 %v1666, %v1665
          %v2163 = vpack.c.b16 %v1668, %v1667
          %v2164 = vpack.c.b16 %v1670, %v1669
          %v2165 = vpack.c.b16 %v1672, %v1671
          %v2166 = vpack.c.b16 %v1674, %v1673
          %v2167 = vpack.c.b16 %v1676, %v1675
          %v2168 = vpack.c.b16 %v1678, %v1677
          %v2169 = vpack.c.b16 %v1680, %v1679
          %v2170 = vpack.c.b16 %v1682, %v1681
          %v2171 = vpack.c.b16 %v1684, %v1683
          %v2172 = vpack.c.b16 %v1686, %v1685
          %v2173 = vpack.c.b16 %v1688, %v1687
          %v2174 = vpack.c.b16 %v1690, %v1689
          %v2175 = vpack.c.b16 %v1692, %v1691
          %v2176 = vpack.c.b16 %v1694, %v1693
          %v2177 = vpack.c.b16 %v1696, %v1695
          %v2178 = vpack.c.b16 %v1698, %v1697
          %v2179 = vpack.c.b16 %v1700, %v1699
          %v2180 = vpack.c.b16 %v1702, %v1701
          %v2181 = vpack.c.b16 %v1704, %v1703
          %v2182 = vpack.c.b16 %v1706, %v1705
          %v2183 = vpack.c.b16 %v1708, %v1707
          %v2184 = vpack.c.b16 %v1710, %v1709
          %v2185 = vpack.c.b16 %v1712, %v1711
          %v2186 = vpack.c.b16 %v1714, %v1713
          %v2187 = vpack.c.b16 %v1716, %v1715
          %v2188 = vpack.c.b16 %v1718, %v1717
          %v2189 = vpack.c.b16 %v1720, %v1719
          %v2190 = vpack.c.b16 %v1722, %v1721
          %v2191 = vpack.c.b16 %v1724, %v1723
          %v2192 = vpack.c.b16 %v1726, %v1725
          %v2193 = vpack.c.b16 %v1728, %v1727
          %v2194 = vpack.c.b16 %v1730, %v1729
          %v2195 = vpack.c.b16 %v1732, %v1731
          %v2196 = vpack.c.b16 %v1734, %v1733
          %v2197 = vpack.c.b16 %v1736, %v1735
          %v2198 = vpack.c.b16 %v1738, %v1737
          %v2199 = vpack.c.b16 %v1740, %v1739
          %v2200 = vpack.c.b16 %v1742, %v1741
          %v2201 = vpack.c.b16 %v1744, %v1743
          %v2202 = vpack.c.b16 %v1746, %v1745
          %v2203 = vpack.c.b16 %v1748, %v1747
          %v2204 = vpack.c.b16 %v1750, %v1749
          %v2205 = vpack.c.b16 %v1752, %v1751
          %v2206 = vpack.c.b16 %v1754, %v1753
          %v2207 = vpack.c.b16 %v1756, %v1755
          %v2208 = vpack.c.b16 %v1758, %v1757
          %v2209 = vpack.c.b16 %v1760, %v1759
          %v2210 = vpack.c.b16 %v1762, %v1761
          %v2211 = vpack.c.b16 %v1764, %v1763
          %v2212 = vpack.c.b16 %v1766, %v1765
          %v2213 = vpack.c.b16 %v1768, %v1767
          %v2214 = vpack.c.b16 %v1770, %v1769
          %v2215 = vpack.c.b16 %v1772, %v1771
          %v2216 = vpack.c.b16 %v1774, %v1773
          %v2217 = vpack.c.b16 %v1776, %v1775
          %v2218 = vpack.c.b16 %v1778, %v1777
          %v2219 = vpack.c.b16 %v1780, %v1779
          %v2220 = vpack.c.b16 %v1782, %v1781
          %v2221 = vpack.c.b16 %v1784, %v1783
          %v2222 = vpack.c.b16 %v1786, %v1785
          %v2223 = vpack.c.b16 %v1788, %v1787
          %v2224 = vpack.c.b16 %v1790, %v1789
          %v2225 = vpack.c.b16 %v1792, %v1791
          %v2226 = vpack.c.b16 %v1794, %v1793
          %v2227 = vpack.c.b16 %v1796, %v1795
          %v2228 = vpack.c.b16 %v1798, %v1797
          %v2229 = vpack.c.b16 %v1800, %v1799
          %v2230 = vpack.c.b16 %v1802, %v1801
          %v2231 = vpack.c.b16 %v1804, %v1803
          %v2232 = vpack.c.b16 %v1806, %v1805
          %v2233 = vpack.c.b16 %v1808, %v1807
          %v2234 = vpack.c.b16 %v1810, %v1809
          %v2235 = vpack.c.b16 %v1812, %v1811
          %v2236 = vpack.c.b16 %v1814, %v1813
          %v2237 = vpack.c.b16 %v1816, %v1815
          %v2238 = vpack.c.b16 %v1818, %v1817
          %v2239 = vpack.c.b16 %v1820, %v1819
          %v2240 = vpack.c.b16 %v1822, %v1821
          %v2241 = vpack.c.b16 %v1824, %v1823
          %v2242 = vpack.c.b16 %v1826, %v1825
          %v2243 = vpack.c.b16 %v1828, %v1827
          %v2244 = vpack.c.b16 %v1830, %v1829
          %v2245 = vpack.c.b16 %v1832, %v1831
          %v2246 = vpack.c.b16 %v1834, %v1833
          %v2247 = vpack.c.b16 %v1836, %v1835
          %v2248 = vpack.c.b16 %v1838, %v1837
          %v2249 = vpack.c.b16 %v1840, %v1839
          %v2250 = vpack.c.b16 %v1842, %v1841
          %v2251 = vpack.c.b16 %v1844, %v1843
          %v2252 = vpack.c.b16 %v1846, %v1845
          %v2253 = vpack.c.b16 %v1848, %v1847
          %v2254 = vpack.c.b16 %v1850, %v1849
          %v2255 = vpack.c.b16 %v1852, %v1851
          %v2256 = vpack.c.b16 %v1854, %v1853
          %v2257 = vpack.c.b16 %v1856, %v1855
          %v2258 = vpack.c.b16 %v1858, %v1857
          %v2259 = vpack.c.b16 %v1860, %v1859
          %v2260 = vpack.c.b16 %v1862, %v1861
          %v2261 = vpack.c.b16 %v1864, %v1863
          %v2262 = vpack.c.b16 %v1866, %v1865
          %v2263 = vpack.c.b16 %v1868, %v1867
          %v2264 = vpack.c.b16 %v1870, %v1869
          %v2265 = vpack.c.b16 %v1872, %v1871
          %v2266 = vpack.c.b16 %v1874, %v1873
          %v2267 = vpack.c.b16 %v1876, %v1875
          %v2268 = vpack.c.b16 %v1878, %v1877
          %v2269 = vpack.c.b16 %v1880, %v1879
          %v2270 = vpack.c.b16 %v1882, %v1881
          %v2271 = vpack.c.b16 %v1884, %v1883
          %v2272 = vpack.c.b16 %v1886, %v1885
          %v2273 = vpack.c.b16 %v1888, %v1887
          %v2274 = vpack.c.b16 %v1890, %v1889
          %v2275 = vpack.c.b16 %v1892, %v1891
          %v2276 = vpack.c.b16 %v1894, %v1893
          %v2277 = vpack.c.b16 %v1896, %v1895
          %v2278 = vpack.c.b16 %v1898, %v1897
          %v2279 = vpack.c.b16 %v1900, %v1899
          %v2280 = vpack.c.b16 %v1902, %v1901
          %v2281 = vpack.c.b16 %v1904, %v1903
          %v2282 = vpack.c.b16 %v1906, %v1905
          %v2283 = vpack.c.b16 %v1908, %v1907
          %v2284 = vpack.c.b16 %v1910, %v1909
          %v2285 = vpack.c.b16 %v1912, %v1911
          %v2286 = vpack.c.b16 %v1914, %v1913
          %v2287 = vpack.c.b16 %v1916, %v1915
          %v2288 = vpack.c.b16 %v1918, %v1917
          %v2289 = vpack.c.b16 %v1920, %v1919
          %v2290 = vpack.c.b16 %v1922, %v1921
          %v2291 = vpack.c.b16 %v1924, %v1923
          %v2292 = vpack.c.b16 %v1926, %v1925
          %v2293 = vpack.c.b16 %v1928, %v1927
          %v2294 = vpack.c.b16 %v1930, %v1929
          %v2295 = vpack.c.b16 %v1932, %v1931
          %v2296 = vpack.c.b16 %v1934, %v1933
          %v2297 = vpack.c.b16 %v1936, %v1935
          %v2298 = vpack.c.b16 %v1938, %v1937
          %v2299 = vpack.c.b16 %v1940, %v1939
          %v2300 = vpack.c.b16 %v1942, %v1941
          %v2301 = vpack.c.b16 %v1944, %v1943
          %v2302 = vpack.c.b16 %v1946, %v1945
          %v2303 = vpack.c.b16 %v1948, %v1947
          %v2304 = vpack.c.b16 %v1950, %v1949
          %v2305 = vpack.c.b16 %v1952, %v1951
          %v2306 = vpack.c.b16 %v1954, %v1953
          %v2307 = vpack.c.b16 %v1956, %v1955
          %v2308 = vpack.c.b16 %v1958, %v1957
          %v2309 = vpack.c.b16 %v1960, %v1959
          %v2310 = vpack.c.b16 %v1962, %v1961
          %v2311 = vpack.c.b16 %v1964, %v1963
          %v2312 = vpack.c.b16 %v1966, %v1965
          %v2313 = vpack.c.b16 %v1968, %v1967
          %v2314 = vpack.c.b16 %v1970, %v1969
          %v2315 = vpack.c.b16 %v1972, %v1971
          %v2316 = vpack.c.b16 %v1974, %v1973
          %v2317 = vpack.c.b16 %v1976, %v1975
          %v2318 = vpack.c.b16 %v1978, %v1977
          %v2319 = vpack.c.b16 %v1980, %v1979
          %v2320 = vpack.c.b16 %v1982, %v1981
          %v2321 = vpack.c.b16 %v1984, %v1983
          %v2322 = vpack.c.b16 %v1986, %v1985
          %v2323 = vpack.c.b16 %v1988, %v1987
          %v2324 = vpack.c.b16 %v1990, %v1989
          %v2325 = vpack.c.b16 %v1992, %v1991
          %v2326 = vpack.c.b16 %v1994, %v1993
          %v2327 = vpack.c.b16 %v1996, %v1995
          %v2328 = vpack.c.b16 %v1998, %v1997
          %v2329 = vpack.c.b16 %v2000, %v1999
          %v2330 = vpack.c.b16 %v2002, %v2001
          %v2331 = vpack.c.b16 %v2004, %v2003
          %v2332 = vpack.c.b16 %v2006, %v2005
          %v2333 = vpack.c.b16 %v2008, %v2007
          %v2334 = vpack.c.b16 %v2010, %v2009
          %v2335 = vpack.c.b16 %v2012, %v2011
          %v2336 = vpack.c.b16 %v2014, %v2013
          %v2337 = vpack.c.b16 %v2016, %v2015
          %v2338 = vpack.c.b16 %v2018, %v2017
          %v2339 = vpack.c.b16 %v2020, %v2019
          %v2340 = vpack.c.b16 %v2022, %v2021
          %v2341 = vpack.c.b16 %v2024, %v2023
          %v2342 = vpack.c.b16 %v2026, %v2025
          %v2343 = vpack.c.b16 %v2028, %v2027
          %v2344 = vpack.c.b16 %v2030, %v2029
          %v2345 = vpack.c.b16 %v2032, %v2031
          %v2346 = vpack.c.b16 %v2034, %v2033
          %v2347 = vpack.c.b16 %v2036, %v2035
          %v2348 = vpack.c.b16 %v2038, %v2037
          %v2349 = vpack.c.b16 %v2040, %v2039
          %v2350 = vpack.c.b16 %v2042, %v2041
          %v2351 = vpack.c.b16 %v2044, %v2043
          %v2352 = vpack.c.b16 %v2046, %v2045
          %v2353 = vpack.c.b16 %v2048, %v2047
          %v2354 = vpack.c.b16 %v2050, %v2049
          %v2355 = vpack.c.b16 %v2052, %v2051
          %v2356 = vpack.c.b16 %v2054, %v2053
          %v2357 = vpack.c.b16 %v2056, %v2055
          %v2358 = vpack.c.b16 %v2058, %v2057
          %v2359 = vpack.c.b16 %v2060, %v2059
          %v2360 = vpack.c.b16 %v2062, %v2061
          %v2361 = vpack.c.b16 %v2064, %v2063
          %v2362 = vpack.c.b16 %v2066, %v2065
          %v2363 = vpack.c.b16 %v2068, %v2067
          %v2364 = vpack.c.b16 %v2070, %v2069
          %v2365 = vpack.c.b16 %v2072, %v2071
          %v2366 = vpack.c.b16 %v2074, %v2073
          %v2367 = vpack.c.b16 %v2076, %v2075
          %v2368 = vpack.c.b16 %v2078, %v2077
          %v2369 = vpack.c.b16 %v2080, %v2079
          %v2370 = vpack.c.b16 %v2082, %v2081
          %v2371 = vpack.c.b16 %v2084, %v2083
          %v2372 = vpack.c.b16 %v2086, %v2085
          %v2373 = vpack.c.b16 %v2088, %v2087
          %v2374 = vpack.c.b16 %v2090, %v2089
          %v2375 = vpack.c.b16 %v2092, %v2091
          %v2376 = vpack.c.b16 %v2094, %v2093
          %v2377 = vpack.c.b16 %v2096, %v2095
          %v2378 = vpack.c.b16 %v2098, %v2097
          %v2379 = vpack.c.b16 %v2100, %v2099
          %v2380 = vpack.c.b16 %v2102, %v2101
          %v2381 = vpack.c.b16 %v2104, %v2103
          %v2382 = vpack.c.b16 %v2106, %v2105
          %v2383 = vpack.c.b16 %v2108, %v2107
          %v2384 = vpack.c.b16 %v2110, %v2109
          %v2385 = vpack.c.b16 %v2112, %v2111
          %v2386 = vpack.c.b16 %v2114, %v2113
          %v2387 = vpack.c.b16 %v2116, %v2115
          %v2388 = vpack.c.b16 %v2118, %v2117
          %v2389 = vpack.c.b16 %v2120, %v2119
          %v2390 = vpack.c.b16 %v2122, %v2121
          %v2391 = vpack.c.b16 %v2124, %v2123
          %v2392 = vpack.c.b16 %v2126, %v2125
          %v2393 = vpack.c.b16 %v2128, %v2127
          %v2394 = vpack.c.b16 %v2130, %v2129
          %v2395 = vpack.c.b16 %v2132, %v2131
          %v2396 = vpack.c.b16 %v2134, %v2133
          %v2397 = vpack.c.b16 %v2136, %v2135
          %v2398 = vpack.c.b16 %v2138, %v2137
          %v2399 = vpack.c.b16 %v2140, %v2139
          %v2400 = vpack.c.b16 %v2142, %v2141
          %v2401 = vpack.c.b16 %v2144, %v2143
          %v2402 = vpack.c.b16 %v2146, %v2145
          %2659 = vmatprep.subr.bf16.mxu0 0
          %2660 = vmatpush1.bf16.msra.mxu0 %v2147
          %2661 = vmatprep.subr.bf16.mxu0 0
          %2662 = vmatpush1.bf16.msra.mxu0 %v2148
          %2663 = vmatprep.subr.bf16.mxu0 0
          %2664 = vmatpush1.bf16.msra.mxu0 %v2149
          %2665 = vmatprep.subr.bf16.mxu0 0
          %2666 = vmatpush1.bf16.msra.mxu0 %v2150
          %2667 = vmatprep.subr.bf16.mxu0 0
          %2668 = vmatpush1.bf16.msra.mxu0 %v2151
          %2669 = vmatprep.subr.bf16.mxu0 0
          %2670 = vmatpush1.bf16.msra.mxu0 %v2152
          %2671 = vmatprep.subr.bf16.mxu0 0
          %2672 = vmatpush1.bf16.msra.mxu0 %v2153
          %2673 = vmatprep.subr.bf16.mxu0 0
          %2674 = vmatpush1.bf16.msra.mxu0 %v2154
          %2675 = vmatprep.subr.bf16.mxu0 0
          %2676 = vmatpush1.bf16.msra.mxu0 %v2155
          %2677 = vmatprep.subr.bf16.mxu0 0
          %2678 = vmatpush1.bf16.msra.mxu0 %v2156
          %2679 = vmatprep.subr.bf16.mxu0 0
          %2680 = vmatpush1.bf16.msra.mxu0 %v2157
          %2681 = vmatprep.subr.bf16.mxu0 0
          %2682 = vmatpush1.bf16.msra.mxu0 %v2158
          %2683 = vmatprep.subr.bf16.mxu0 0
          %2684 = vmatpush1.bf16.msra.mxu0 %v2159
          %2685 = vmatprep.subr.bf16.mxu0 0
          %2686 = vmatpush1.bf16.msra.mxu0 %v2160
          %2687 = vmatprep.subr.bf16.mxu0 0
          %2688 = vmatpush1.bf16.msra.mxu0 %v2161
          %2689 = vmatprep.subr.bf16.mxu0 0
          %2690 = vmatpush1.bf16.msra.mxu0 %v2162
          %2691 = vmatprep.mubr.bf16.mxu0 %v573
          %2692 = vmatmul.mubr.bf16.gmra.mrb[0].mxu0 %v572
          %v2693 = vpop.f32.mrb[0].mxu0
          %v2694 = vadd.f32 %v1121, %v2693
          %v2695 = vpop.f32.mrb[0].mxu0
          %v2696 = vpop.f32.mrb[0].mxu0
          %v2697 = vpop.f32.mrb[0].mxu0
          %2698 = vdwg.mxu0
          %2699 = vmatprep.subr.bf16.mxu0 0
          %2700 = vmatpush1.bf16.msra.mxu0 %v2163
          %2701 = vmatprep.subr.bf16.mxu0 0
          %2702 = vmatpush1.bf16.msra.mxu0 %v2164
          %2703 = vmatprep.subr.bf16.mxu0 0
          %2704 = vmatpush1.bf16.msra.mxu0 %v2165
          %2705 = vmatprep.subr.bf16.mxu0 0
          %2706 = vmatpush1.bf16.msra.mxu0 %v2166
          %2707 = vmatprep.subr.bf16.mxu0 0
          %2708 = vmatpush1.bf16.msra.mxu0 %v2167
          %2709 = vmatprep.subr.bf16.mxu0 0
          %2710 = vmatpush1.bf16.msra.mxu0 %v2168
          %2711 = vmatprep.subr.bf16.mxu0 0
          %2712 = vmatpush1.bf16.msra.mxu0 %v2169
          %2713 = vmatprep.subr.bf16.mxu0 0
          %2714 = vmatpush1.bf16.msra.mxu0 %v2170
          %2715 = vmatprep.subr.bf16.mxu0 0
          %2716 = vmatpush1.bf16.msra.mxu0 %v2171
          %2717 = vmatprep.subr.bf16.mxu0 0
          %2718 = vmatpush1.bf16.msra.mxu0 %v2172
          %2719 = vmatprep.subr.bf16.mxu0 0
          %2720 = vmatpush1.bf16.msra.mxu0 %v2173
          %2721 = vmatprep.subr.bf16.mxu0 0
          %2722 = vmatpush1.bf16.msra.mxu0 %v2174
          %2723 = vmatprep.subr.bf16.mxu0 0
          %2724 = vmatpush1.bf16.msra.mxu0 %v2175
          %2725 = vmatprep.subr.bf16.mxu0 0
          %2726 = vmatpush1.bf16.msra.mxu0 %v2176
          %2727 = vmatprep.subr.bf16.mxu0 0
          %2728 = vmatpush1.bf16.msra.mxu0 %v2177
          %2729 = vmatprep.subr.bf16.mxu0 0
          %2730 = vmatpush1.bf16.msra.mxu0 %v2178
          %2731 = vmatprep.mubr.bf16.mxu0 %v575
          %2732 = vmatmul.mubr.bf16.gmra.mrb[0].mxu0 %v574
          %v2733 = vpop.f32.mrb[0].mxu0
          %v2734 = vadd.f32 %v2694, %v2733
          %v2735 = vpop.f32.mrb[0].mxu0
          %v2736 = vpop.f32.mrb[0].mxu0
          %v2737 = vpop.f32.mrb[0].mxu0
          %2738 = vdwg.mxu0
          %2739 = vmatprep.subr.bf16.mxu0 0
          %2740 = vmatpush1.bf16.msra.mxu0 %v2179
          %2741 = vmatprep.subr.bf16.mxu0 0
          %2742 = vmatpush1.bf16.msra.mxu0 %v2180
          %2743 = vmatprep.subr.bf16.mxu0 0
          %2744 = vmatpush1.bf16.msra.mxu0 %v2181
          %2745 = vmatprep.subr.bf16.mxu0 0
          %2746 = vmatpush1.bf16.msra.mxu0 %v2182
          %2747 = vmatprep.subr.bf16.mxu0 0
          %2748 = vmatpush1.bf16.msra.mxu0 %v2183
          %2749 = vmatprep.subr.bf16.mxu0 0
          %2750 = vmatpush1.bf16.msra.mxu0 %v2184
          %2751 = vmatprep.subr.bf16.mxu0 0
          %2752 = vmatpush1.bf16.msra.mxu0 %v2185
          %2753 = vmatprep.subr.bf16.mxu0 0
          %2754 = vmatpush1.bf16.msra.mxu0 %v2186
          %2755 = vmatprep.subr.bf16.mxu0 0
          %2756 = vmatpush1.bf16.msra.mxu0 %v2187
          %2757 = vmatprep.subr.bf16.mxu0 0
          %2758 = vmatpush1.bf16.msra.mxu0 %v2188
          %2759 = vmatprep.subr.bf16.mxu0 0
          %2760 = vmatpush1.bf16.msra.mxu0 %v2189
          %2761 = vmatprep.subr.bf16.mxu0 0
          %2762 = vmatpush1.bf16.msra.mxu0 %v2190
          %2763 = vmatprep.subr.bf16.mxu0 0
          %2764 = vmatpush1.bf16.msra.mxu0 %v2191
          %2765 = vmatprep.subr.bf16.mxu0 0
          %2766 = vmatpush1.bf16.msra.mxu0 %v2192
          %2767 = vmatprep.subr.bf16.mxu0 0
          %2768 = vmatpush1.bf16.msra.mxu0 %v2193
          %2769 = vmatprep.subr.bf16.mxu0 0
          %2770 = vmatpush1.bf16.msra.mxu0 %v2194
          %2771 = vmatprep.mubr.bf16.mxu0 %v577
          %2772 = vmatmul.mubr.bf16.gmra.mrb[0].mxu0 %v576
          %v2773 = vpop.f32.mrb[0].mxu0
          %v2774 = vadd.f32 %v2734, %v2773
          %v2775 = vpop.f32.mrb[0].mxu0
          %v2776 = vpop.f32.mrb[0].mxu0
          %v2777 = vpop.f32.mrb[0].mxu0
          %2778 = vdwg.mxu0
          %2779 = vmatprep.subr.bf16.mxu0 0
          %2780 = vmatpush1.bf16.msra.mxu0 %v2195
          %2781 = vmatprep.subr.bf16.mxu0 0
          %2782 = vmatpush1.bf16.msra.mxu0 %v2196
          %2783 = vmatprep.subr.bf16.mxu0 0
          %2784 = vmatpush1.bf16.msra.mxu0 %v2197
          %2785 = vmatprep.subr.bf16.mxu0 0
          %2786 = vmatpush1.bf16.msra.mxu0 %v2198
          %2787 = vmatprep.subr.bf16.mxu0 0
          %2788 = vmatpush1.bf16.msra.mxu0 %v2199
          %2789 = vmatprep.subr.bf16.mxu0 0
          %2790 = vmatpush1.bf16.msra.mxu0 %v2200
          %2791 = vmatprep.subr.bf16.mxu0 0
          %2792 = vmatpush1.bf16.msra.mxu0 %v2201
          %2793 = vmatprep.subr.bf16.mxu0 0
          %2794 = vmatpush1.bf16.msra.mxu0 %v2202
          %2795 = vmatprep.subr.bf16.mxu0 0
          %2796 = vmatpush1.bf16.msra.mxu0 %v2203
          %2797 = vmatprep.subr.bf16.mxu0 0
          %2798 = vmatpush1.bf16.msra.mxu0 %v2204
          %2799 = vmatprep.subr.bf16.mxu0 0
          %2800 = vmatpush1.bf16.msra.mxu0 %v2205
          %2801 = vmatprep.subr.bf16.mxu0 0
          %2802 = vmatpush1.bf16.msra.mxu0 %v2206
          %2803 = vmatprep.subr.bf16.mxu0 0
          %2804 = vmatpush1.bf16.msra.mxu0 %v2207
          %2805 = vmatprep.subr.bf16.mxu0 0
          %2806 = vmatpush1.bf16.msra.mxu0 %v2208
          %2807 = vmatprep.subr.bf16.mxu0 0
          %2808 = vmatpush1.bf16.msra.mxu0 %v2209
          %2809 = vmatprep.subr.bf16.mxu0 0
          %2810 = vmatpush1.bf16.msra.mxu0 %v2210
          %2811 = vmatprep.mubr.bf16.mxu0 %v579
          %2812 = vmatmul.mubr.bf16.gmra.mrb[0].mxu0 %v578
          %v2813 = vpop.f32.mrb[0].mxu0
          %v2814 = vadd.f32 %v2774, %v2813
          %v2815 = vpop.f32.mrb[0].mxu0
          %v2816 = vpop.f32.mrb[0].mxu0
          %v2817 = vpop.f32.mrb[0].mxu0
          %2818 = vdwg.mxu0
          %2819 = vmatprep.subr.bf16.mxu0 0
          %2820 = vmatpush1.bf16.msra.mxu0 %v2211
          %2821 = vmatprep.subr.bf16.mxu0 0
          %2822 = vmatpush1.bf16.msra.mxu0 %v2212
          %2823 = vmatprep.subr.bf16.mxu0 0
          %2824 = vmatpush1.bf16.msra.mxu0 %v2213
          %2825 = vmatprep.subr.bf16.mxu0 0
          %2826 = vmatpush1.bf16.msra.mxu0 %v2214
          %2827 = vmatprep.subr.bf16.mxu0 0
          %2828 = vmatpush1.bf16.msra.mxu0 %v2215
          %2829 = vmatprep.subr.bf16.mxu0 0
          %2830 = vmatpush1.bf16.msra.mxu0 %v2216
          %2831 = vmatprep.subr.bf16.mxu0 0
          %2832 = vmatpush1.bf16.msra.mxu0 %v2217
          %2833 = vmatprep.subr.bf16.mxu0 0
          %2834 = vmatpush1.bf16.msra.mxu0 %v2218
          %2835 = vmatprep.subr.bf16.mxu0 0
          %2836 = vmatpush1.bf16.msra.mxu0 %v2219
          %2837 = vmatprep.subr.bf16.mxu0 0
          %2838 = vmatpush1.bf16.msra.mxu0 %v2220
          %2839 = vmatprep.subr.bf16.mxu0 0
          %2840 = vmatpush1.bf16.msra.mxu0 %v2221
          %2841 = vmatprep.subr.bf16.mxu0 0
          %2842 = vmatpush1.bf16.msra.mxu0 %v2222
          %2843 = vmatprep.subr.bf16.mxu0 0
          %2844 = vmatpush1.bf16.msra.mxu0 %v2223
          %2845 = vmatprep.subr.bf16.mxu0 0
          %2846 = vmatpush1.bf16.msra.mxu0 %v2224
          %2847 = vmatprep.subr.bf16.mxu0 0
          %2848 = vmatpush1.bf16.msra.mxu0 %v2225
          %2849 = vmatprep.subr.bf16.mxu0 0
          %2850 = vmatpush1.bf16.msra.mxu0 %v2226
          %2851 = vmatprep.mubr.bf16.mxu0 %v581
          %2852 = vmatmul.mubr.bf16.gmra.mrb[0].mxu0 %v580
          %v2853 = vpop.f32.mrb[0].mxu0
          %v2854 = vadd.f32 %v2814, %v2853
          %v2855 = vpop.f32.mrb[0].mxu0
          %v2856 = vpop.f32.mrb[0].mxu0
          %v2857 = vpop.f32.mrb[0].mxu0
          %2858 = vdwg.mxu0
          %2859 = vmatprep.subr.bf16.mxu0 0
          %2860 = vmatpush1.bf16.msra.mxu0 %v2227
          %2861 = vmatprep.subr.bf16.mxu0 0
          %2862 = vmatpush1.bf16.msra.mxu0 %v2228
          %2863 = vmatprep.subr.bf16.mxu0 0
          %2864 = vmatpush1.bf16.msra.mxu0 %v2229
          %2865 = vmatprep.subr.bf16.mxu0 0
          %2866 = vmatpush1.bf16.msra.mxu0 %v2230
          %2867 = vmatprep.subr.bf16.mxu0 0
          %2868 = vmatpush1.bf16.msra.mxu0 %v2231
          %2869 = vmatprep.subr.bf16.mxu0 0
          %2870 = vmatpush1.bf16.msra.mxu0 %v2232
          %2871 = vmatprep.subr.bf16.mxu0 0
          %2872 = vmatpush1.bf16.msra.mxu0 %v2233
          %2873 = vmatprep.subr.bf16.mxu0 0
          %2874 = vmatpush1.bf16.msra.mxu0 %v2234
          %2875 = vmatprep.subr.bf16.mxu0 0
          %2876 = vmatpush1.bf16.msra.mxu0 %v2235
          %2877 = vmatprep.subr.bf16.mxu0 0
          %2878 = vmatpush1.bf16.msra.mxu0 %v2236
          %2879 = vmatprep.subr.bf16.mxu0 0
          %2880 = vmatpush1.bf16.msra.mxu0 %v2237
          %2881 = vmatprep.subr.bf16.mxu0 0
          %2882 = vmatpush1.bf16.msra.mxu0 %v2238
          %2883 = vmatprep.subr.bf16.mxu0 0
          %2884 = vmatpush1.bf16.msra.mxu0 %v2239
          %2885 = vmatprep.subr.bf16.mxu0 0
          %2886 = vmatpush1.bf16.msra.mxu0 %v2240
          %2887 = vmatprep.subr.bf16.mxu0 0
          %2888 = vmatpush1.bf16.msra.mxu0 %v2241
          %2889 = vmatprep.subr.bf16.mxu0 0
          %2890 = vmatpush1.bf16.msra.mxu0 %v2242
          %2891 = vmatprep.mubr.bf16.mxu0 %v583
          %2892 = vmatmul.mubr.bf16.gmra.mrb[0].mxu0 %v582
          %v2893 = vpop.f32.mrb[0].mxu0
          %v2894 = vadd.f32 %v2854, %v2893
          %v2895 = vpop.f32.mrb[0].mxu0
          %v2896 = vpop.f32.mrb[0].mxu0
          %v2897 = vpop.f32.mrb[0].mxu0
          %2898 = vdwg.mxu0
          %2899 = vmatprep.subr.bf16.mxu0 0
          %2900 = vmatpush1.bf16.msra.mxu0 %v2243
          %2901 = vmatprep.subr.bf16.mxu0 0
          %2902 = vmatpush1.bf16.msra.mxu0 %v2244
          %2903 = vmatprep.subr.bf16.mxu0 0
          %2904 = vmatpush1.bf16.msra.mxu0 %v2245
          %2905 = vmatprep.subr.bf16.mxu0 0
          %2906 = vmatpush1.bf16.msra.mxu0 %v2246
          %2907 = vmatprep.subr.bf16.mxu0 0
          %2908 = vmatpush1.bf16.msra.mxu0 %v2247
          %2909 = vmatprep.subr.bf16.mxu0 0
          %2910 = vmatpush1.bf16.msra.mxu0 %v2248
          %2911 = vmatprep.subr.bf16.mxu0 0
          %2912 = vmatpush1.bf16.msra.mxu0 %v2249
          %2913 = vmatprep.subr.bf16.mxu0 0
          %2914 = vmatpush1.bf16.msra.mxu0 %v2250
          %2915 = vmatprep.subr.bf16.mxu0 0
          %2916 = vmatpush1.bf16.msra.mxu0 %v2251
          %2917 = vmatprep.subr.bf16.mxu0 0
          %2918 = vmatpush1.bf16.msra.mxu0 %v2252
          %2919 = vmatprep.subr.bf16.mxu0 0
          %2920 = vmatpush1.bf16.msra.mxu0 %v2253
          %2921 = vmatprep.subr.bf16.mxu0 0
          %2922 = vmatpush1.bf16.msra.mxu0 %v2254
          %2923 = vmatprep.subr.bf16.mxu0 0
          %2924 = vmatpush1.bf16.msra.mxu0 %v2255
          %2925 = vmatprep.subr.bf16.mxu0 0
          %2926 = vmatpush1.bf16.msra.mxu0 %v2256
          %2927 = vmatprep.subr.bf16.mxu0 0
          %2928 = vmatpush1.bf16.msra.mxu0 %v2257
          %2929 = vmatprep.subr.bf16.mxu0 0
          %2930 = vmatpush1.bf16.msra.mxu0 %v2258
          %2931 = vmatprep.mubr.bf16.mxu0 %v585
          %2932 = vmatmul.mubr.bf16.gmra.mrb[0].mxu0 %v584
          %v2933 = vpop.f32.mrb[0].mxu0
          %v2934 = vadd.f32 %v2894, %v2933
          %v2935 = vpop.f32.mrb[0].mxu0
          %v2936 = vpop.f32.mrb[0].mxu0
          %v2937 = vpop.f32.mrb[0].mxu0
          %2938 = vdwg.mxu0
          %2939 = vmatprep.subr.bf16.mxu0 0
          %2940 = vmatpush1.bf16.msra.mxu0 %v2259
          %2941 = vmatprep.subr.bf16.mxu0 0
          %2942 = vmatpush1.bf16.msra.mxu0 %v2260
          %2943 = vmatprep.subr.bf16.mxu0 0
          %2944 = vmatpush1.bf16.msra.mxu0 %v2261
          %2945 = vmatprep.subr.bf16.mxu0 0
          %2946 = vmatpush1.bf16.msra.mxu0 %v2262
          %2947 = vmatprep.subr.bf16.mxu0 0
          %2948 = vmatpush1.bf16.msra.mxu0 %v2263
          %2949 = vmatprep.subr.bf16.mxu0 0
          %2950 = vmatpush1.bf16.msra.mxu0 %v2264
          %2951 = vmatprep.subr.bf16.mxu0 0
          %2952 = vmatpush1.bf16.msra.mxu0 %v2265
          %2953 = vmatprep.subr.bf16.mxu0 0
          %2954 = vmatpush1.bf16.msra.mxu0 %v2266
          %2955 = vmatprep.subr.bf16.mxu0 0
          %2956 = vmatpush1.bf16.msra.mxu0 %v2267
          %2957 = vmatprep.subr.bf16.mxu0 0
          %2958 = vmatpush1.bf16.msra.mxu0 %v2268
          %2959 = vmatprep.subr.bf16.mxu0 0
          %2960 = vmatpush1.bf16.msra.mxu0 %v2269
          %2961 = vmatprep.subr.bf16.mxu0 0
          %2962 = vmatpush1.bf16.msra.mxu0 %v2270
          %2963 = vmatprep.subr.bf16.mxu0 0
          %2964 = vmatpush1.bf16.msra.mxu0 %v2271
          %2965 = vmatprep.subr.bf16.mxu0 0
          %2966 = vmatpush1.bf16.msra.mxu0 %v2272
          %2967 = vmatprep.subr.bf16.mxu0 0
          %2968 = vmatpush1.bf16.msra.mxu0 %v2273
          %2969 = vmatprep.subr.bf16.mxu0 0
          %2970 = vmatpush1.bf16.msra.mxu0 %v2274
          %2971 = vmatprep.mubr.bf16.mxu0 %v587
          %2972 = vmatmul.mubr.bf16.gmra.mrb[0].mxu0 %v586
          %v2973 = vpop.f32.mrb[0].mxu0
          %v2974 = vadd.f32 %v2934, %v2973
          %v2975 = vpop.f32.mrb[0].mxu0
          %v2976 = vpop.f32.mrb[0].mxu0
          %v2977 = vpop.f32.mrb[0].mxu0
          %2978 = vdwg.mxu0
          %2979 = vmatprep.subr.bf16.mxu0 0
          %2980 = vmatpush1.bf16.msra.mxu0 %v2275
          %2981 = vmatprep.subr.bf16.mxu0 0
          %2982 = vmatpush1.bf16.msra.mxu0 %v2276
          %2983 = vmatprep.subr.bf16.mxu0 0
          %2984 = vmatpush1.bf16.msra.mxu0 %v2277
          %2985 = vmatprep.subr.bf16.mxu0 0
          %2986 = vmatpush1.bf16.msra.mxu0 %v2278
          %2987 = vmatprep.subr.bf16.mxu0 0
          %2988 = vmatpush1.bf16.msra.mxu0 %v2279
          %2989 = vmatprep.subr.bf16.mxu0 0
          %2990 = vmatpush1.bf16.msra.mxu0 %v2280
          %2991 = vmatprep.subr.bf16.mxu0 0
          %2992 = vmatpush1.bf16.msra.mxu0 %v2281
          %2993 = vmatprep.subr.bf16.mxu0 0
          %2994 = vmatpush1.bf16.msra.mxu0 %v2282
          %2995 = vmatprep.subr.bf16.mxu0 0
          %2996 = vmatpush1.bf16.msra.mxu0 %v2283
          %2997 = vmatprep.subr.bf16.mxu0 0
          %2998 = vmatpush1.bf16.msra.mxu0 %v2284
          %2999 = vmatprep.subr.bf16.mxu0 0
          %3000 = vmatpush1.bf16.msra.mxu0 %v2285
          %3001 = vmatprep.subr.bf16.mxu0 0
          %3002 = vmatpush1.bf16.msra.mxu0 %v2286
          %3003 = vmatprep.subr.bf16.mxu0 0
          %3004 = vmatpush1.bf16.msra.mxu0 %v2287
          %3005 = vmatprep.subr.bf16.mxu0 0
          %3006 = vmatpush1.bf16.msra.mxu0 %v2288
          %3007 = vmatprep.subr.bf16.mxu0 0
          %3008 = vmatpush1.bf16.msra.mxu0 %v2289
          %3009 = vmatprep.subr.bf16.mxu0 0
          %3010 = vmatpush1.bf16.msra.mxu0 %v2290
          %3011 = vmatprep.mubr.bf16.mxu0 %v589
          %3012 = vmatmul.mubr.bf16.gmra.mrb[0].mxu0 %v588
          %v3013 = vpop.f32.mrb[0].mxu0
          %v3014 = vadd.f32 %v2974, %v3013
          %v3015 = vpop.f32.mrb[0].mxu0
          %v3016 = vpop.f32.mrb[0].mxu0
          %v3017 = vpop.f32.mrb[0].mxu0
          %3018 = vdwg.mxu0
          %3019 = vmatprep.subr.bf16.mxu0 0
          %3020 = vmatpush1.bf16.msra.mxu0 %v2291
          %3021 = vmatprep.subr.bf16.mxu0 0
          %3022 = vmatpush1.bf16.msra.mxu0 %v2292
          %3023 = vmatprep.subr.bf16.mxu0 0
          %3024 = vmatpush1.bf16.msra.mxu0 %v2293
          %3025 = vmatprep.subr.bf16.mxu0 0
          %3026 = vmatpush1.bf16.msra.mxu0 %v2294
          %3027 = vmatprep.subr.bf16.mxu0 0
          %3028 = vmatpush1.bf16.msra.mxu0 %v2295
          %3029 = vmatprep.subr.bf16.mxu0 0
          %3030 = vmatpush1.bf16.msra.mxu0 %v2296
          %3031 = vmatprep.subr.bf16.mxu0 0
          %3032 = vmatpush1.bf16.msra.mxu0 %v2297
          %3033 = vmatprep.subr.bf16.mxu0 0
          %3034 = vmatpush1.bf16.msra.mxu0 %v2298
          %3035 = vmatprep.subr.bf16.mxu0 0
          %3036 = vmatpush1.bf16.msra.mxu0 %v2299
          %3037 = vmatprep.subr.bf16.mxu0 0
          %3038 = vmatpush1.bf16.msra.mxu0 %v2300
          %3039 = vmatprep.subr.bf16.mxu0 0
          %3040 = vmatpush1.bf16.msra.mxu0 %v2301
          %3041 = vmatprep.subr.bf16.mxu0 0
          %3042 = vmatpush1.bf16.msra.mxu0 %v2302
          %3043 = vmatprep.subr.bf16.mxu0 0
          %3044 = vmatpush1.bf16.msra.mxu0 %v2303
          %3045 = vmatprep.subr.bf16.mxu0 0
          %3046 = vmatpush1.bf16.msra.mxu0 %v2304
          %3047 = vmatprep.subr.bf16.mxu0 0
          %3048 = vmatpush1.bf16.msra.mxu0 %v2305
          %3049 = vmatprep.subr.bf16.mxu0 0
          %3050 = vmatpush1.bf16.msra.mxu0 %v2306
          %3051 = vmatprep.mubr.bf16.mxu0 %v591
          %3052 = vmatmul.mubr.bf16.gmra.mrb[0].mxu0 %v590
          %v3053 = vpop.f32.mrb[0].mxu0
          %v3054 = vadd.f32 %v3014, %v3053
          %v3055 = vpop.f32.mrb[0].mxu0
          %v3056 = vpop.f32.mrb[0].mxu0
          %v3057 = vpop.f32.mrb[0].mxu0
          %3058 = vdwg.mxu0
          %3059 = vmatprep.subr.bf16.mxu0 0
          %3060 = vmatpush1.bf16.msra.mxu0 %v2307
          %3061 = vmatprep.subr.bf16.mxu0 0
          %3062 = vmatpush1.bf16.msra.mxu0 %v2308
          %3063 = vmatprep.subr.bf16.mxu0 0
          %3064 = vmatpush1.bf16.msra.mxu0 %v2309
          %3065 = vmatprep.subr.bf16.mxu0 0
          %3066 = vmatpush1.bf16.msra.mxu0 %v2310
          %3067 = vmatprep.subr.bf16.mxu0 0
          %3068 = vmatpush1.bf16.msra.mxu0 %v2311
          %3069 = vmatprep.subr.bf16.mxu0 0
          %3070 = vmatpush1.bf16.msra.mxu0 %v2312
          %3071 = vmatprep.subr.bf16.mxu0 0
          %3072 = vmatpush1.bf16.msra.mxu0 %v2313
          %3073 = vmatprep.subr.bf16.mxu0 0
          %3074 = vmatpush1.bf16.msra.mxu0 %v2314
          %3075 = vmatprep.subr.bf16.mxu0 0
          %3076 = vmatpush1.bf16.msra.mxu0 %v2315
          %3077 = vmatprep.subr.bf16.mxu0 0
          %3078 = vmatpush1.bf16.msra.mxu0 %v2316
          %3079 = vmatprep.subr.bf16.mxu0 0
          %3080 = vmatpush1.bf16.msra.mxu0 %v2317
          %3081 = vmatprep.subr.bf16.mxu0 0
          %3082 = vmatpush1.bf16.msra.mxu0 %v2318
          %3083 = vmatprep.subr.bf16.mxu0 0
          %3084 = vmatpush1.bf16.msra.mxu0 %v2319
          %3085 = vmatprep.subr.bf16.mxu0 0
          %3086 = vmatpush1.bf16.msra.mxu0 %v2320
          %3087 = vmatprep.subr.bf16.mxu0 0
          %3088 = vmatpush1.bf16.msra.mxu0 %v2321
          %3089 = vmatprep.subr.bf16.mxu0 0
          %3090 = vmatpush1.bf16.msra.mxu0 %v2322
          %3091 = vmatprep.mubr.bf16.mxu0 %v593
          %3092 = vmatmul.mubr.bf16.gmra.mrb[0].mxu0 %v592
          %v3093 = vpop.f32.mrb[0].mxu0
          %v3094 = vadd.f32 %v3054, %v3093
          %v3095 = vpop.f32.mrb[0].mxu0
          %v3096 = vpop.f32.mrb[0].mxu0
          %v3097 = vpop.f32.mrb[0].mxu0
          %3098 = vdwg.mxu0
          %3099 = vmatprep.subr.bf16.mxu0 0
          %3100 = vmatpush1.bf16.msra.mxu0 %v2323
          %3101 = vmatprep.subr.bf16.mxu0 0
          %3102 = vmatpush1.bf16.msra.mxu0 %v2324
          %3103 = vmatprep.subr.bf16.mxu0 0
          %3104 = vmatpush1.bf16.msra.mxu0 %v2325
          %3105 = vmatprep.subr.bf16.mxu0 0
          %3106 = vmatpush1.bf16.msra.mxu0 %v2326
          %3107 = vmatprep.subr.bf16.mxu0 0
          %3108 = vmatpush1.bf16.msra.mxu0 %v2327
          %3109 = vmatprep.subr.bf16.mxu0 0
          %3110 = vmatpush1.bf16.msra.mxu0 %v2328
          %3111 = vmatprep.subr.bf16.mxu0 0
          %3112 = vmatpush1.bf16.msra.mxu0 %v2329
          %3113 = vmatprep.subr.bf16.mxu0 0
          %3114 = vmatpush1.bf16.msra.mxu0 %v2330
          %3115 = vmatprep.subr.bf16.mxu0 0
          %3116 = vmatpush1.bf16.msra.mxu0 %v2331
          %3117 = vmatprep.subr.bf16.mxu0 0
          %3118 = vmatpush1.bf16.msra.mxu0 %v2332
          %3119 = vmatprep.subr.bf16.mxu0 0
          %3120 = vmatpush1.bf16.msra.mxu0 %v2333
          %3121 = vmatprep.subr.bf16.mxu0 0
          %3122 = vmatpush1.bf16.msra.mxu0 %v2334
          %3123 = vmatprep.subr.bf16.mxu0 0
          %3124 = vmatpush1.bf16.msra.mxu0 %v2335
          %3125 = vmatprep.subr.bf16.mxu0 0
          %3126 = vmatpush1.bf16.msra.mxu0 %v2336
          %3127 = vmatprep.subr.bf16.mxu0 0
          %3128 = vmatpush1.bf16.msra.mxu0 %v2337
          %3129 = vmatprep.subr.bf16.mxu0 0
          %3130 = vmatpush1.bf16.msra.mxu0 %v2338
          %3131 = vmatprep.mubr.bf16.mxu0 %v595
          %3132 = vmatmul.mubr.bf16.gmra.mrb[0].mxu0 %v594
          %v3133 = vpop.f32.mrb[0].mxu0
          %v3134 = vadd.f32 %v3094, %v3133
          %v3135 = vpop.f32.mrb[0].mxu0
          %v3136 = vpop.f32.mrb[0].mxu0
          %v3137 = vpop.f32.mrb[0].mxu0
          %3138 = vdwg.mxu0
          %3139 = vmatprep.subr.bf16.mxu0 0
          %3140 = vmatpush1.bf16.msra.mxu0 %v2339
          %3141 = vmatprep.subr.bf16.mxu0 0
          %3142 = vmatpush1.bf16.msra.mxu0 %v2340
          %3143 = vmatprep.subr.bf16.mxu0 0
          %3144 = vmatpush1.bf16.msra.mxu0 %v2341
          %3145 = vmatprep.subr.bf16.mxu0 0
          %3146 = vmatpush1.bf16.msra.mxu0 %v2342
          %3147 = vmatprep.subr.bf16.mxu0 0
          %3148 = vmatpush1.bf16.msra.mxu0 %v2343
          %3149 = vmatprep.subr.bf16.mxu0 0
          %3150 = vmatpush1.bf16.msra.mxu0 %v2344
          %3151 = vmatprep.subr.bf16.mxu0 0
          %3152 = vmatpush1.bf16.msra.mxu0 %v2345
          %3153 = vmatprep.subr.bf16.mxu0 0
          %3154 = vmatpush1.bf16.msra.mxu0 %v2346
          %3155 = vmatprep.subr.bf16.mxu0 0
          %3156 = vmatpush1.bf16.msra.mxu0 %v2347
          %3157 = vmatprep.subr.bf16.mxu0 0
          %3158 = vmatpush1.bf16.msra.mxu0 %v2348
          %3159 = vmatprep.subr.bf16.mxu0 0
          %3160 = vmatpush1.bf16.msra.mxu0 %v2349
          %3161 = vmatprep.subr.bf16.mxu0 0
          %3162 = vmatpush1.bf16.msra.mxu0 %v2350
          %3163 = vmatprep.subr.bf16.mxu0 0
          %3164 = vmatpush1.bf16.msra.mxu0 %v2351
          %3165 = vmatprep.subr.bf16.mxu0 0
          %3166 = vmatpush1.bf16.msra.mxu0 %v2352
          %3167 = vmatprep.subr.bf16.mxu0 0
          %3168 = vmatpush1.bf16.msra.mxu0 %v2353
          %3169 = vmatprep.subr.bf16.mxu0 0
          %3170 = vmatpush1.bf16.msra.mxu0 %v2354
          %3171 = vmatprep.mubr.bf16.mxu0 %v597
          %3172 = vmatmul.mubr.bf16.gmra.mrb[0].mxu0 %v596
          %v3173 = vpop.f32.mrb[0].mxu0
          %v3174 = vadd.f32 %v3134, %v3173
          %v3175 = vpop.f32.mrb[0].mxu0
          %v3176 = vpop.f32.mrb[0].mxu0
          %v3177 = vpop.f32.mrb[0].mxu0
          %3178 = vdwg.mxu0
          %3179 = vmatprep.subr.bf16.mxu0 0
          %3180 = vmatpush1.bf16.msra.mxu0 %v2355
          %3181 = vmatprep.subr.bf16.mxu0 0
          %3182 = vmatpush1.bf16.msra.mxu0 %v2356
          %3183 = vmatprep.subr.bf16.mxu0 0
          %3184 = vmatpush1.bf16.msra.mxu0 %v2357
          %3185 = vmatprep.subr.bf16.mxu0 0
          %3186 = vmatpush1.bf16.msra.mxu0 %v2358
          %3187 = vmatprep.subr.bf16.mxu0 0
          %3188 = vmatpush1.bf16.msra.mxu0 %v2359
          %3189 = vmatprep.subr.bf16.mxu0 0
          %3190 = vmatpush1.bf16.msra.mxu0 %v2360
          %3191 = vmatprep.subr.bf16.mxu0 0
          %3192 = vmatpush1.bf16.msra.mxu0 %v2361
          %3193 = vmatprep.subr.bf16.mxu0 0
          %3194 = vmatpush1.bf16.msra.mxu0 %v2362
          %3195 = vmatprep.subr.bf16.mxu0 0
          %3196 = vmatpush1.bf16.msra.mxu0 %v2363
          %3197 = vmatprep.subr.bf16.mxu0 0
          %3198 = vmatpush1.bf16.msra.mxu0 %v2364
          %3199 = vmatprep.subr.bf16.mxu0 0
          %3200 = vmatpush1.bf16.msra.mxu0 %v2365
          %3201 = vmatprep.subr.bf16.mxu0 0
          %3202 = vmatpush1.bf16.msra.mxu0 %v2366
          %3203 = vmatprep.subr.bf16.mxu0 0
          %3204 = vmatpush1.bf16.msra.mxu0 %v2367
          %3205 = vmatprep.subr.bf16.mxu0 0
          %3206 = vmatpush1.bf16.msra.mxu0 %v2368
          %3207 = vmatprep.subr.bf16.mxu0 0
          %3208 = vmatpush1.bf16.msra.mxu0 %v2369
          %3209 = vmatprep.subr.bf16.mxu0 0
          %3210 = vmatpush1.bf16.msra.mxu0 %v2370
          %3211 = vmatprep.mubr.bf16.mxu0 %v599
          %3212 = vmatmul.mubr.bf16.gmra.mrb[0].mxu0 %v598
          %v3213 = vpop.f32.mrb[0].mxu0
          %v3214 = vadd.f32 %v3174, %v3213
          %v3215 = vpop.f32.mrb[0].mxu0
          %v3216 = vpop.f32.mrb[0].mxu0
          %v3217 = vpop.f32.mrb[0].mxu0
          %3218 = vdwg.mxu0
          %3219 = vmatprep.subr.bf16.mxu0 0
          %3220 = vmatpush1.bf16.msra.mxu0 %v2371
          %3221 = vmatprep.subr.bf16.mxu0 0
          %3222 = vmatpush1.bf16.msra.mxu0 %v2372
          %3223 = vmatprep.subr.bf16.mxu0 0
          %3224 = vmatpush1.bf16.msra.mxu0 %v2373
          %3225 = vmatprep.subr.bf16.mxu0 0
          %3226 = vmatpush1.bf16.msra.mxu0 %v2374
          %3227 = vmatprep.subr.bf16.mxu0 0
          %3228 = vmatpush1.bf16.msra.mxu0 %v2375
          %3229 = vmatprep.subr.bf16.mxu0 0
          %3230 = vmatpush1.bf16.msra.mxu0 %v2376
          %3231 = vmatprep.subr.bf16.mxu0 0
          %3232 = vmatpush1.bf16.msra.mxu0 %v2377
          %3233 = vmatprep.subr.bf16.mxu0 0
          %3234 = vmatpush1.bf16.msra.mxu0 %v2378
          %3235 = vmatprep.subr.bf16.mxu0 0
          %3236 = vmatpush1.bf16.msra.mxu0 %v2379
          %3237 = vmatprep.subr.bf16.mxu0 0
          %3238 = vmatpush1.bf16.msra.mxu0 %v2380
          %3239 = vmatprep.subr.bf16.mxu0 0
          %3240 = vmatpush1.bf16.msra.mxu0 %v2381
          %3241 = vmatprep.subr.bf16.mxu0 0
          %3242 = vmatpush1.bf16.msra.mxu0 %v2382
          %3243 = vmatprep.subr.bf16.mxu0 0
          %3244 = vmatpush1.bf16.msra.mxu0 %v2383
          %3245 = vmatprep.subr.bf16.mxu0 0
          %3246 = vmatpush1.bf16.msra.mxu0 %v2384
          %3247 = vmatprep.subr.bf16.mxu0 0
          %3248 = vmatpush1.bf16.msra.mxu0 %v2385
          %3249 = vmatprep.subr.bf16.mxu0 0
          %3250 = vmatpush1.bf16.msra.mxu0 %v2386
          %3251 = vmatprep.mubr.bf16.mxu0 %v601
          %3252 = vmatmul.mubr.bf16.gmra.mrb[0].mxu0 %v600
          %v3253 = vpop.f32.mrb[0].mxu0
          %v3254 = vadd.f32 %v3214, %v3253
          %v3255 = vpop.f32.mrb[0].mxu0
          %v3256 = vpop.f32.mrb[0].mxu0
          %v3257 = vpop.f32.mrb[0].mxu0
          %3258 = vdwg.mxu0
          %3259 = vmatprep.subr.bf16.mxu0 0
          %3260 = vmatpush1.bf16.msra.mxu0 %v2387
          %3261 = vmatprep.subr.bf16.mxu0 0
          %3262 = vmatpush1.bf16.msra.mxu0 %v2388
          %3263 = vmatprep.subr.bf16.mxu0 0
          %3264 = vmatpush1.bf16.msra.mxu0 %v2389
          %3265 = vmatprep.subr.bf16.mxu0 0
          %3266 = vmatpush1.bf16.msra.mxu0 %v2390
          %3267 = vmatprep.subr.bf16.mxu0 0
          %3268 = vmatpush1.bf16.msra.mxu0 %v2391
          %3269 = vmatprep.subr.bf16.mxu0 0
          %3270 = vmatpush1.bf16.msra.mxu0 %v2392
          %3271 = vmatprep.subr.bf16.mxu0 0
          %3272 = vmatpush1.bf16.msra.mxu0 %v2393
          %3273 = vmatprep.subr.bf16.mxu0 0
          %3274 = vmatpush1.bf16.msra.mxu0 %v2394
          %3275 = vmatprep.subr.bf16.mxu0 0
          %3276 = vmatpush1.bf16.msra.mxu0 %v2395
          %3277 = vmatprep.subr.bf16.mxu0 0
          %3278 = vmatpush1.bf16.msra.mxu0 %v2396
          %3279 = vmatprep.subr.bf16.mxu0 0
          %3280 = vmatpush1.bf16.msra.mxu0 %v2397
          %3281 = vmatprep.subr.bf16.mxu0 0
          %3282 = vmatpush1.bf16.msra.mxu0 %v2398
          %3283 = vmatprep.subr.bf16.mxu0 0
          %3284 = vmatpush1.bf16.msra.mxu0 %v2399
          %3285 = vmatprep.subr.bf16.mxu0 0
          %3286 = vmatpush1.bf16.msra.mxu0 %v2400
          %3287 = vmatprep.subr.bf16.mxu0 0
          %3288 = vmatpush1.bf16.msra.mxu0 %v2401
          %3289 = vmatprep.subr.bf16.mxu0 0
          %3290 = vmatpush1.bf16.msra.mxu0 %v2402
          %3291 = vmatprep.mubr.bf16.mxu0 %v603
          %3292 = vmatmul.mubr.bf16.gmra.mrb[0].mxu0 %v602
          %v3293 = vpop.f32.mrb[0].mxu0
          %v3294 = vadd.f32 %v3254, %v3293
          %v3295 = vpop.f32.mrb[0].mxu0
          %v3296 = vpop.f32.mrb[0].mxu0
          %v3297 = vpop.f32.mrb[0].mxu0
          %3298 = vdwg.mxu0
          %v3299 = vlaneseq
          %v3300 = vshrl.u32 %v3299, 7
          %vm3301 = vcmp.lt.s32.totalorder %v3300, 2
          %v3302 = vsel %vm3301, 1, 0
          %v3303 = vcvt.s32.f32 %v3302
          %v3304 = vmul.f32 %v3294, %v3303
          %v3305 = vrot.slane %v3304, 4
          %v3306 = vadd.f32 %v3304, %v3305
          %v3307 = vrot.slane %v3306, 2
          %v3308 = vadd.f32 %v3306, %v3307
          %v3309 = vrot.slane %v3308, 1
          %v3310 = vadd.f32 %v3308, %v3309
          %v3311 = vmul.f32 %v3310, 0.5
          %v3312 = vsub.f32 %v3294, %v3311
          %v3313 = vmul.f32 %v3312, %v3312
          %v3314 = vmul.f32 %v3313, %v3303
          %v3315 = vrot.slane %v3314, 4
          %v3316 = vadd.f32 %v3314, %v3315
          %v3317 = vrot.slane %v3316, 2
          %v3318 = vadd.f32 %v3316, %v3317
          %v3319 = vrot.slane %v3318, 1
          %v3320 = vadd.f32 %v3318, %v3319
          %v3321 = vmul.f32 %v3320, 0.5
          %v3322 = vld [vmem:[%s3] sm:$0x1]
          %v3324 = vlaneseq
          %v3325 = vshrl.u32 %v3324, 7
          %v3326 = vsub.s32 0, %v3325
          %v3327 = vrot.slane %v3322, %v3326
          %v3329 = vmul.f32 %v3327, %v3312
          %v3330 = vadd.f32 %v3321, 1e-05
          %v3331 = vrsqrt.pop %v3330
          %v3332 = vmul.f32 %v3329, %v3331
          %v3333 = vld [vmem:[%s4] sm:$0x1]
          %v3335 = vlaneseq
          %v3336 = vshrl.u32 %v3335, 7
          %v3337 = vsub.s32 0, %v3336
          %v3338 = vrot.slane %v3333, %v3337
          %v3340 = vadd.f32 %v3332, %v3338
          %3341 = vst [vmem:[#allocation2] sm:$0xff] %v3340
        $region88: #{tpu_custom_call.1} parent=63 // pred_fallthru
          _
        %v3342 = vld [vmem:[#allocation2] sm:$0xff]
        %v3343 = vpack.c.bf16 %v3342, %v3342
        %v3344 = vld [vmem:[%s464] sm:$0xf]
        %v3345 = vld [vmem:[%s464 + $0x4] sm:$0xf]
        %v3346 = vld [vmem:[%s464 + $0x8] sm:$0xf]
        %v3347 = vld [vmem:[%s464 + $0xc] sm:$0xf]
        %v3348 = vld [vmem:[%s464 + $0x10] sm:$0xf]
        %v3349 = vld [vmem:[%s464 + $0x14] sm:$0xf]
        %v3350 = vld [vmem:[%s464 + $0x18] sm:$0xf]
        %v3351 = vld [vmem:[%s464 + $0x1c] sm:$0xf]
        %v3352 = vld [vmem:[%s464 + $0x20] sm:$0xf]
        %v3353 = vld [vmem:[%s464 + $0x24] sm:$0xf]
        %v3354 = vld [vmem:[%s464 + $0x28] sm:$0xf]
        %v3355 = vld [vmem:[%s464 + $0x2c] sm:$0xf]
        %v3356 = vld [vmem:[%s464 + $0x30] sm:$0xf]
        %v3357 = vld [vmem:[%s464 + $0x34] sm:$0xf]
        %v3358 = vld [vmem:[%s464 + $0x38] sm:$0xf]
        %v3359 = vld [vmem:[%s464 + $0x3c] sm:$0xf]
        %v3360 = vld [vmem:[%s531] sm:$0x1]
        %v3362 = vlaneseq
        %v3363 = vshrl.u32 %v3362, 7
        %v3364 = vsub.s32 0, %v3363
        %v3365 = vrot.slane %v3360, %v3364
        %v3383 = vunpack.c.l.b16 %v3344
        %v3384 = vunpack.c.l.b16 %v3345
        %v3385 = vunpack.c.l.b16 %v3346
        %v3386 = vunpack.c.l.b16 %v3347
        %v3387 = vunpack.c.l.b16 %v3348
        %v3388 = vunpack.c.l.b16 %v3349
        %v3389 = vunpack.c.l.b16 %v3350
        %v3390 = vunpack.c.l.b16 %v3351
        %v3391 = vunpack.c.l.b16 %v3352
        %v3392 = vunpack.c.l.b16 %v3353
        %v3393 = vunpack.c.l.b16 %v3354
        %v3394 = vunpack.c.l.b16 %v3355
        %v3395 = vunpack.c.l.b16 %v3356
        %v3396 = vunpack.c.l.b16 %v3357
        %v3397 = vunpack.c.l.b16 %v3358
        %v3398 = vunpack.c.l.b16 %v3359
        %v3399 = vpack.c.b16 %v3384, %v3383
        %v3400 = vpack.c.b16 %v3386, %v3385
        %v3401 = vpack.c.b16 %v3388, %v3387
        %v3402 = vpack.c.b16 %v3390, %v3389
        %v3403 = vpack.c.b16 %v3392, %v3391
        %v3404 = vpack.c.b16 %v3394, %v3393
        %v3405 = vpack.c.b16 %v3396, %v3395
        %v3406 = vpack.c.b16 %v3398, %v3397
        %3415 = vmatprep.subr.bf16.mxu0 0
        %3416 = vmatpush1.bf16.msra.mxu0 %v3399
        %3417 = vmatprep.subr.bf16.mxu0 0
        %3418 = vmatpush1.bf16.msra.mxu0 %v3400
        %3419 = vmatprep.subr.bf16.mxu0 0
        %3420 = vmatpush1.bf16.msra.mxu0 %v3401
        %3421 = vmatprep.subr.bf16.mxu0 0
        %3422 = vmatpush1.bf16.msra.mxu0 %v3402
        %3423 = vmatprep.subr.bf16.mxu0 0
        %3424 = vmatpush1.bf16.msra.mxu0 %v3403
        %3425 = vmatprep.subr.bf16.mxu0 0
        %3426 = vmatpush1.bf16.msra.mxu0 %v3404
        %3427 = vmatprep.subr.bf16.mxu0 0
        %3428 = vmatpush1.bf16.msra.mxu0 %v3405
        %3429 = vmatprep.subr.bf16.mxu0 0
        %3430 = vmatpush1.bf16.msra.mxu0 %v3406
        %3431 = vmatprep.subr.bf16.mxu0 0
        %3432 = vmatpush1.bf16.msra.mxu0 0
        %3433 = vmatprep.subr.bf16.mxu0 0
        %3434 = vmatpush1.bf16.msra.mxu0 0
        %3435 = vmatprep.subr.bf16.mxu0 0
        %3436 = vmatpush1.bf16.msra.mxu0 0
        %3437 = vmatprep.subr.bf16.mxu0 0
        %3438 = vmatpush1.bf16.msra.mxu0 0
        %3439 = vmatprep.subr.bf16.mxu0 0
        %3440 = vmatpush1.bf16.msra.mxu0 0
        %3441 = vmatprep.subr.bf16.mxu0 0
        %3442 = vmatpush1.bf16.msra.mxu0 0
        %3443 = vmatprep.subr.bf16.mxu0 0
        %3444 = vmatpush1.bf16.msra.mxu0 0
        %3445 = vmatprep.subr.bf16.mxu0 0
        %3446 = vmatpush1.bf16.msra.mxu0 0
        %3447 = vmatprep.mubr.bf16.mxu0 0
        %3448 = vmatmul.mubr.bf16.gmra.mrb[0].mxu0 %v3343
        %v3449 = vpop.f32.mrb[0].mxu0
        %v3450 = vadd.f32 %v3365, %v3449
        %v3451 = vpop.f32.mrb[0].mxu0
        %v3452 = vpop.f32.mrb[0].mxu0
        %v3453 = vpop.f32.mrb[0].mxu0
        %3454 = vdwg.mxu0
        %v3455 = vmax.f32 %v3450, 0.0
        %v3456 = vpack.c.bf16 %v3455, %v3455
        %v3457 = vld [vmem:[%s473] sm:$0xf]
        %v3458 = vld [vmem:[%s473 + $0x4] sm:$0xf]
        %v3459 = vld [vmem:[%s473 + $0x8] sm:$0xf]
        %v3460 = vld [vmem:[%s473 + $0xc] sm:$0xf]
        %v3461 = vld [vmem:[%s473 + $0x10] sm:$0xf]
        %v3462 = vld [vmem:[%s473 + $0x14] sm:$0xf]
        %v3463 = vld [vmem:[%s473 + $0x18] sm:$0xf]
        %v3464 = vld [vmem:[%s473 + $0x1c] sm:$0xf]
        %v3465 = vld [vmem:[%s473 + $0x20] sm:$0xf]
        %v3466 = vld [vmem:[%s473 + $0x24] sm:$0xf]
        %v3467 = vld [vmem:[%s473 + $0x28] sm:$0xf]
        %v3468 = vld [vmem:[%s473 + $0x2c] sm:$0xf]
        %v3469 = vld [vmem:[%s473 + $0x30] sm:$0xf]
        %v3470 = vld [vmem:[%s473 + $0x34] sm:$0xf]
        %v3471 = vld [vmem:[%s473 + $0x38] sm:$0xf]
        %v3472 = vld [vmem:[%s473 + $0x3c] sm:$0xf]
        %v3473 = vld [vmem:[%s534] sm:$0x1]
        %v3475 = vlaneseq
        %v3476 = vshrl.u32 %v3475, 7
        %v3477 = vsub.s32 0, %v3476
        %v3478 = vrot.slane %v3473, %v3477
        %v3496 = vunpack.c.l.b16 %v3457
        %v3497 = vunpack.c.l.b16 %v3458
        %v3498 = vunpack.c.l.b16 %v3459
        %v3499 = vunpack.c.l.b16 %v3460
        %v3500 = vunpack.c.l.b16 %v3461
        %v3501 = vunpack.c.l.b16 %v3462
        %v3502 = vunpack.c.l.b16 %v3463
        %v3503 = vunpack.c.l.b16 %v3464
        %v3504 = vunpack.c.l.b16 %v3465
        %v3505 = vunpack.c.l.b16 %v3466
        %v3506 = vunpack.c.l.b16 %v3467
        %v3507 = vunpack.c.l.b16 %v3468
        %v3508 = vunpack.c.l.b16 %v3469
        %v3509 = vunpack.c.l.b16 %v3470
        %v3510 = vunpack.c.l.b16 %v3471
        %v3511 = vunpack.c.l.b16 %v3472
        %v3512 = vpack.c.b16 %v3497, %v3496
        %v3513 = vpack.c.b16 %v3499, %v3498
        %v3514 = vpack.c.b16 %v3501, %v3500
        %v3515 = vpack.c.b16 %v3503, %v3502
        %v3516 = vpack.c.b16 %v3505, %v3504
        %v3517 = vpack.c.b16 %v3507, %v3506
        %v3518 = vpack.c.b16 %v3509, %v3508
        %v3519 = vpack.c.b16 %v3511, %v3510
        %3528 = vmatprep.subr.bf16.mxu0 0
        %3529 = vmatpush1.bf16.msra.mxu0 %v3512
        %3530 = vmatprep.subr.bf16.mxu0 0
        %3531 = vmatpush1.bf16.msra.mxu0 %v3513
        %3532 = vmatprep.subr.bf16.mxu0 0
        %3533 = vmatpush1.bf16.msra.mxu0 %v3514
        %3534 = vmatprep.subr.bf16.mxu0 0
        %3535 = vmatpush1.bf16.msra.mxu0 %v3515
        %3536 = vmatprep.subr.bf16.mxu0 0
        %3537 = vmatpush1.bf16.msra.mxu0 %v3516
        %3538 = vmatprep.subr.bf16.mxu0 0
        %3539 = vmatpush1.bf16.msra.mxu0 %v3517
        %3540 = vmatprep.subr.bf16.mxu0 0
        %3541 = vmatpush1.bf16.msra.mxu0 %v3518
        %3542 = vmatprep.subr.bf16.mxu0 0
        %3543 = vmatpush1.bf16.msra.mxu0 %v3519
        %3544 = vmatprep.subr.bf16.mxu0 0
        %3545 = vmatpush1.bf16.msra.mxu0 0
        %3546 = vmatprep.subr.bf16.mxu0 0
        %3547 = vmatpush1.bf16.msra.mxu0 0
        %3548 = vmatprep.subr.bf16.mxu0 0
        %3549 = vmatpush1.bf16.msra.mxu0 0
        %3550 = vmatprep.subr.bf16.mxu0 0
        %3551 = vmatpush1.bf16.msra.mxu0 0
        %3552 = vmatprep.subr.bf16.mxu0 0
        %3553 = vmatpush1.bf16.msra.mxu0 0
        %3554 = vmatprep.subr.bf16.mxu0 0
        %3555 = vmatpush1.bf16.msra.mxu0 0
        %3556 = vmatprep.subr.bf16.mxu0 0
        %3557 = vmatpush1.bf16.msra.mxu0 0
        %3558 = vmatprep.subr.bf16.mxu0 0
        %3559 = vmatpush1.bf16.msra.mxu0 0
        %3560 = vmatprep.mubr.bf16.mxu0 0
        %3561 = vmatmul.mubr.bf16.gmra.mrb[0].mxu0 %v3456
        %v3562 = vpop.f32.mrb[0].mxu0
        %v3563 = vadd.f32 %v3478, %v3562
        %v3564 = vpop.f32.mrb[0].mxu0
        %v3565 = vpop.f32.mrb[0].mxu0
        %v3566 = vpop.f32.mrb[0].mxu0
        %3567 = vdwg.mxu0
        %v3568 = vmul.f32 %v3563, 0.5
        %v3569 = vadd.f32 %v3342, %v3568
        %3570 = vst [vmem:[#allocation2] sm:$0xff] %v3569
        %3571 = vst [vmem:[%s528] sm:$0xff] %v3569
        %p3572 = scmp.eq.s32.totalorder %s30, 1
        // Predicated region
        $region89: #{tpu_custom_call.1} parent=63 // pred_check
          %p3573 = pneg %p3572
        $region90: #{tpu_custom_call.1} parent=63 // pred_check_branch
          %3575 = sbr.rel (%p3573) target = $region92
        $region91: #{tpu_custom_call.1} parent=63 // pred_region
          %v3576 = vpack.c.bf16 %v3569, %v3569
          %v3577 = vld [vmem:[#allocation10] sm:$0xf]
          %v3578 = vld [vmem:[#allocation10 + $0x4] sm:$0xf]
          %v3579 = vld [vmem:[#allocation10 + $0x8] sm:$0xf]
          %v3580 = vld [vmem:[#allocation10 + $0xc] sm:$0xf]
          %v3581 = vld [vmem:[#allocation10 + $0x10] sm:$0xf]
          %v3582 = vld [vmem:[#allocation10 + $0x14] sm:$0xf]
          %v3583 = vld [vmem:[#allocation10 + $0x18] sm:$0xf]
          %v3584 = vld [vmem:[#allocation10 + $0x1c] sm:$0xf]
          %v3585 = vld [vmem:[#allocation10 + $0x20] sm:$0xf]
          %v3586 = vld [vmem:[#allocation10 + $0x24] sm:$0xf]
          %v3587 = vld [vmem:[#allocation10 + $0x28] sm:$0xf]
          %v3588 = vld [vmem:[#allocation10 + $0x2c] sm:$0xf]
          %v3589 = vld [vmem:[#allocation10 + $0x30] sm:$0xf]
          %v3590 = vld [vmem:[#allocation10 + $0x34] sm:$0xf]
          %v3591 = vld [vmem:[#allocation10 + $0x38] sm:$0xf]
          %v3592 = vld [vmem:[#allocation10 + $0x3c] sm:$0xf]
          %v3593 = vld [vmem:[%s10] sm:$0x1]
          %v3595 = vlaneseq
          %v3596 = vshrl.u32 %v3595, 7
          %v3597 = vsub.s32 0, %v3596
          %v3598 = vrot.slane %v3593, %v3597
          %v3616 = vunpack.c.l.b16 %v3577
          %v3617 = vunpack.c.l.b16 %v3578
          %v3618 = vunpack.c.l.b16 %v3579
          %v3619 = vunpack.c.l.b16 %v3580
          %v3620 = vunpack.c.l.b16 %v3581
          %v3621 = vunpack.c.l.b16 %v3582
          %v3622 = vunpack.c.l.b16 %v3583
          %v3623 = vunpack.c.l.b16 %v3584
          %v3624 = vunpack.c.l.b16 %v3585
          %v3625 = vunpack.c.l.b16 %v3586
          %v3626 = vunpack.c.l.b16 %v3587
          %v3627 = vunpack.c.l.b16 %v3588
          %v3628 = vunpack.c.l.b16 %v3589
          %v3629 = vunpack.c.l.b16 %v3590
          %v3630 = vunpack.c.l.b16 %v3591
          %v3631 = vunpack.c.l.b16 %v3592
          %v3632 = vpack.c.b16 %v3617, %v3616
          %v3633 = vpack.c.b16 %v3619, %v3618
          %v3634 = vpack.c.b16 %v3621, %v3620
          %v3635 = vpack.c.b16 %v3623, %v3622
          %v3636 = vpack.c.b16 %v3625, %v3624
          %v3637 = vpack.c.b16 %v3627, %v3626
          %v3638 = vpack.c.b16 %v3629, %v3628
          %v3639 = vpack.c.b16 %v3631, %v3630
          %3648 = vmatprep.subr.bf16.mxu0 0
          %3649 = vmatpush1.bf16.msra.mxu0 %v3632
          %3650 = vmatprep.subr.bf16.mxu0 0
          %3651 = vmatpush1.bf16.msra.mxu0 %v3633
          %3652 = vmatprep.subr.bf16.mxu0 0
          %3653 = vmatpush1.bf16.msra.mxu0 %v3634
          %3654 = vmatprep.subr.bf16.mxu0 0
          %3655 = vmatpush1.bf16.msra.mxu0 %v3635
          %3656 = vmatprep.subr.bf16.mxu0 0
          %3657 = vmatpush1.bf16.msra.mxu0 %v3636
          %3658 = vmatprep.subr.bf16.mxu0 0
          %3659 = vmatpush1.bf16.msra.mxu0 %v3637
          %3660 = vmatprep.subr.bf16.mxu0 0
          %3661 = vmatpush1.bf16.msra.mxu0 %v3638
          %3662 = vmatprep.subr.bf16.mxu0 0
          %3663 = vmatpush1.bf16.msra.mxu0 %v3639
          %3664 = vmatprep.subr.bf16.mxu0 0
          %3665 = vmatpush1.bf16.msra.mxu0 0
          %3666 = vmatprep.subr.bf16.mxu0 0
          %3667 = vmatpush1.bf16.msra.mxu0 0
          %3668 = vmatprep.subr.bf16.mxu0 0
          %3669 = vmatpush1.bf16.msra.mxu0 0
          %3670 = vmatprep.subr.bf16.mxu0 0
          %3671 = vmatpush1.bf16.msra.mxu0 0
          %3672 = vmatprep.subr.bf16.mxu0 0
          %3673 = vmatpush1.bf16.msra.mxu0 0
          %3674 = vmatprep.subr.bf16.mxu0 0
          %3675 = vmatpush1.bf16.msra.mxu0 0
          %3676 = vmatprep.subr.bf16.mxu0 0
          %3677 = vmatpush1.bf16.msra.mxu0 0
          %3678 = vmatprep.subr.bf16.mxu0 0
          %3679 = vmatpush1.bf16.msra.mxu0 0
          %3680 = vmatprep.mubr.bf16.mxu0 0
          %3681 = vmatmul.mubr.bf16.gmra.mrb[0].mxu0 %v3576
          %v3682 = vpop.f32.mrb[0].mxu0
          %v3683 = vadd.f32 %v3598, %v3682
          %v3684 = vpop.f32.mrb[0].mxu0
          %v3685 = vpop.f32.mrb[0].mxu0
          %v3686 = vpop.f32.mrb[0].mxu0
          %3687 = vdwg.mxu0
          %3688 = vst [vmem:[#allocation11] sm:$0xff] %v3683
        $region92: #{tpu_custom_call.1} parent=63 // pred_fallthru
          _
        %s3689 = sand.u32 %s310, 1
        %s3690 = scalar_lea.sflag [#allocation13], %s3689
        %s3691 = sand.u32 %s310, 1
        %s3692 = smul.addr %s3691, 8
        %s3693 = scalar_lea.vmem [#allocation12], %s3692
        // Predicated region
        $region93: #{tpu_custom_call.1} parent=63 // pred_check
          %p3694 = pneg %p294
        $region94: #{tpu_custom_call.1} parent=63 // pred_check_branch
          %3696 = sbr.rel (%p3694) target = $region96
        $region95: #{tpu_custom_call.1} parent=63 // pred_region
          %s3698 = ssub.s32 128, 128
          %3699 = vsyncadd [#allocation5], %s3698
          %s3701 = sshll.u32 [#allocation11], 4
          %s3702 = int_to_ptr.vmem [resolvable:$true] %s3701
          %3704 = dma.vmem_to_hbm [thread:$0]  %s3702, 128, %s11, [#allocation5]
        $region96: #{tpu_custom_call.1} parent=63 // pred_fallthru
          _
        // Predicated region
        $region97: #{tpu_custom_call.1} parent=63 // pred_check
          %p3705 = pneg %p320
        $region98: #{tpu_custom_call.1} parent=63 // pred_check_branch
          %3707 = sbr.rel (%p3705) target = $region100
        $region99: #{tpu_custom_call.1} parent=63 // pred_region
          %s3709 = ssub.s32 128, 128
          %3710 = vsyncadd %s3690, %s3709
          %s3711 = smul.addr %s30, 128
          %s3712 = scalar_lea.hbm %s12, %s3711
          %s3714 = sshll.u32 %s3693, 4
          %s3715 = int_to_ptr.vmem [resolvable:$true] %s3714
          %3717 = dma.vmem_to_hbm [thread:$0]  %s3715, 128, %s3712, %s3690
        $region100: #{tpu_custom_call.1} parent=63 // pred_fallthru
          _
        // Predicated region
        $region101: #{tpu_custom_call.1} parent=63 // pred_check
          %p3718 = pneg %p294
        $region102: #{tpu_custom_call.1} parent=63 // pred_check_branch
          %3720 = sbr.rel (%p3718) target = $region104
        $region103: #{tpu_custom_call.1} parent=63 // pred_region
          %3721 = dma.done [#allocation5], 128
        $region104: #{tpu_custom_call.1} parent=63 // pred_fallthru
          _
      $region64: #{tpu_custom_call.1} parent=5 // pred_fallthru
        _
      %p3722 = scmp.le.s32.totalorder 2, %s25
      // Predicated region
      $region105: #{tpu_custom_call.1} parent=5 // pred_check
        %p3723 = pneg %p3722
      $region106: #{tpu_custom_call.1} parent=5 // pred_check_branch
        %3725 = sbr.rel (%p3723) target = $region108
      $region107: #{tpu_custom_call.1} parent=5 // pred_region
        %s3726 = ssub.s32 %s25, 2
        // Predicated region
        $region109: #{tpu_custom_call.1} parent=107 // pred_check
          %p3727 = pneg %p326
        $region110: #{tpu_custom_call.1} parent=107 // pred_check_branch
          %3729 = sbr.rel (%p3727) target = $region112
        $region111: #{tpu_custom_call.1} parent=107 // pred_region
          %s3730 = sand.u32 %s311, 1
          %s3731 = scalar_lea.sflag [#allocation13], %s3730
          %s3732 = sand.u32 %s311, 1
          %s3733 = smul.addr %s3732, 8
          %s3734 = scalar_lea.vmem [#allocation12], %s3733
          %3735 = dma.done %s3731, 128
        $region112: #{tpu_custom_call.1} parent=107 // pred_fallthru
          _
      $region108: #{tpu_custom_call.1} parent=5 // pred_fallthru
        _
    $region6: #{tpu_custom_call.1} parent=1 // loop_footer
      %s29 = sadd.s32 1, %s25
    $region7: #{tpu_custom_call.1} parent=1 // loop_footer_branch
      %24 = sbr.rel target = $region3
    $region8: #{tpu_custom_call.1} parent=1 // loop_exit
      _
    %3736 = vsyncpa [#allocation4], 1
    %s3737 = scalar_lea.sflag [#allocation4], 1
    %3738 = vsyncpa %s3737, 1
    %3739 = vsyncpa [#allocation7], 1
    %3740 = vsyncpa [#allocation5], 1
    %s3741 = scalar_lea.sflag [#allocation5], 1
    %3742 = vsyncpa %s3741, 1
    %3743 = vsyncpa [#allocation13], 1
    %s3744 = scalar_lea.sflag [#allocation13], 1
    %3745 = vsyncpa %s3744, 1

</llo_original>
